<compile_context>
chip_gen: v5e
topology: v5e:2x2
jax: 0.10.0
libtpu: 0.0.40
codegen_flags: <defaults>
</compile_context>

<pallas_src>
import jax
import jax.numpy as jnp
from jax import lax
from jax.experimental import pallas as pl
from jax.experimental.pallas import tpu as pltpu

LRELU_SLOPE = 0.2
BN_EPS = 1e-5


# --------------------------- fused Pallas kernel ----------------------------

def make_discriminator_kernel(N, H, W, channels):
    """Build the fused 4-layer kernel.  channels = [nc, ndf, 2ndf, 4ndf, 1]."""
    layers = []
    ih, iw = H, W
    for l in range(4):
        assert ih % 2 == 0 and iw % 2 == 0, "spatial dims must stay even"
        oh, ow = ih // 2, iw // 2
        layers.append(dict(cin=channels[l], cout=channels[l + 1],
                           ih=ih, iw=iw, oh=oh, ow=ow,
                           wh=iw // 2 + 1,
                           P=N * oh * ow, K=16 * channels[l]))
        ih, iw = oh, ow

    # Scratch (all VMEM, all tiny at these shapes):
    #   - one (P, 16*Cin) patch buffer per layer
    #   - parity-packed padded activation buffers for the inputs of layers 2..4
    #   - one (P, Cout) staging buffer per non-final layer for the scatter
    scratch_shapes = [pltpu.VMEM((d["P"], d["K"]), jnp.float32) for d in layers]
    scratch_shapes += [
        pltpu.VMEM((N * (d["ih"] + 2) * d["wh"], 2 * d["cin"]), jnp.float32)
        for d in layers[1:]
    ]
    scratch_shapes += [
        pltpu.VMEM((d["P"], d["cout"]), jnp.float32) for d in layers[:3]
    ]

    def act_row(d, n, h, j):
        # row index into a parity-packed padded activation buffer for layer d
        return (n * (d["ih"] + 2) + h) * d["wh"] + j

    def build_patches(src_ref, pbuf_ref, d):
        """im2col for one layer.  src_ref: parity-packed padded input.
        Writes pbuf rows in (n, oh, ow) order, columns in (kh, kw, ci) order.
        All loads/stores are static, contiguous, unit-stride."""
        OW, cin = d["ow"], d["cin"]
        for n in range(N):
            for oh in range(d["oh"]):
                r0 = (n * d["oh"] + oh) * OW
                for kh in range(4):
                    h = 2 * oh + kh
                    for dw in range(2):                     # covers kw = 2*dw, 2*dw+1
                        base = act_row(d, n, h, dw)
                        blk = src_ref[pl.ds(base, OW), :]   # (OW, 2*cin)
                        col0 = (kh * 4 + 2 * dw) * cin
                        pbuf_ref[pl.ds(r0, OW), pl.ds(col0, 2 * cin)] = blk

    def scatter_activation(y, ybuf_ref, dst_ref, d, d_next):
        """Scatter layer output y (P, cout), rows (n, oh, ow), into the next
        layer's zero-initialized parity-packed padded input buffer.

        y is staged once to VMEM, then re-read with stride-2 sublane loads so
        the scatter is 2 contiguous (OW/2, cout) block stores per (n, oh)
        instead of OW single-row masked stores."""
        cout, OH, OW = d["cout"], d["oh"], d["ow"]
        half = OW // 2
        ybuf_ref[...] = y                                   # one contiguous store
        for n in range(N):
            for oh in range(OH):
                r0 = (n * OH + oh) * OW
                base = act_row(d_next, n, oh + 1, 0)
                # even ow -> padded wp = ow+1 odd -> parity slot 1, rows base..base+half-1
                dst_ref[pl.ds(base, half), pl.ds(cout, cout)] = \
                    ybuf_ref[pl.ds(r0, half, stride=2), :]
                # odd ow  -> padded wp = ow+1 even -> parity slot 0, rows base+1..base+half
                dst_ref[pl.ds(base + 1, half), pl.ds(0, cout)] = \
                    ybuf_ref[pl.ds(r0 + 1, half, stride=2), :]

    def lrelu(v):
        return jnp.where(v > 0, v, LRELU_SLOPE * v)

    def bn(v, g, b):
        # training-mode batch stats over all P rows (exact shape, no padding),
        # biased variance -- matches nn.BatchNorm2d in training mode.
        mu = jnp.mean(v, axis=0, keepdims=True)
        var = jnp.mean(jnp.square(v - mu), axis=0, keepdims=True)
        return (v - mu) * lax.rsqrt(var + BN_EPS) * g + b

    def kernel(x_ref, w1_ref, w2_ref, g2_ref, b2_ref, w3_ref, g3_ref, b3_ref,
               w4_ref, o_ref, pb0, pb1, pb2, pb3, a1, a2, a3, yb1, yb2, yb3):
        pbufs = [pb0, pb1, pb2, pb3]
        acts = [a1, a2, a3]
        ybufs = [yb1, yb2, yb3]

        # zero the padded activation buffers so their borders read as 0
        for a in acts:
            a[...] = jnp.zeros(a.shape, jnp.float32)

        # ---- layer 1: conv -> LeakyReLU ----
        build_patches(x_ref, pbufs[0], layers[0])
        y = jnp.dot(pbufs[0][...], w1_ref[...], preferred_element_type=jnp.float32)
        y = lrelu(y)
        scatter_activation(y, ybufs[0], acts[0], layers[0], layers[1])

        # ---- layer 2: conv -> BN -> LeakyReLU ----
        build_patches(acts[0], pbufs[1], layers[1])
        y = jnp.dot(pbufs[1][...], w2_ref[...], preferred_element_type=jnp.float32)
        y = lrelu(bn(y, g2_ref[...], b2_ref[...]))
        scatter_activation(y, ybufs[1], acts[1], layers[1], layers[2])

        # ---- layer 3: conv -> BN -> LeakyReLU ----
        build_patches(acts[1], pbufs[2], layers[2])
        y = jnp.dot(pbufs[2][...], w3_ref[...], preferred_element_type=jnp.float32)
        y = lrelu(bn(y, g3_ref[...], b3_ref[...]))
        scatter_activation(y, ybufs[2], acts[2], layers[2], layers[3])

        # ---- layer 4: conv -> Sigmoid (stable; divide via pl.reciprocal) ----
        build_patches(acts[2], pbufs[3], layers[3])
        y = jnp.dot(pbufs[3][...], w4_ref[...], preferred_element_type=jnp.float32)
        z = jnp.exp(-jnp.abs(y))
        o_ref[...] = jnp.where(y >= 0, 1.0, z) * pl.reciprocal(1.0 + z, approx=False)

    return kernel, scratch_shapes, layers


# -------------------------------- JAX glue ----------------------------------

def discriminator_forward(x_nchw, params):
    """Matches PyTorch Discriminator.forward (module in default training mode)."""
    N, nc, H, W = x_nchw.shape
    channels = [nc,
                params["w1"].shape[1], params["w2"].shape[1],
                params["w3"].shape[1], params["w4"].shape[1]]
    kernel, scratch_shapes, layers = make_discriminator_kernel(N, H, W, channels)

    # Input prep (a handful of cheap XLA ops, done once): NCHW -> NHWC (a pure
    # reshape when nc == 1), zero-pad spatially by 1, and pack the two W
    # parities into the channel axis so every in-kernel im2col access is a
    # contiguous unit-stride slice.
    if nc == 1:
        x = x_nchw.reshape(N, H, W, 1)
    else:
        x = jnp.transpose(x_nchw, (0, 2, 3, 1))
    x = x.astype(jnp.float32)
    xp = jnp.pad(x, ((0, 0), (1, 1), (1, 1), (0, 0)))
    wh = W // 2 + 1
    x_packed = xp.reshape(N * (H + 2) * wh, 2 * nc)

    d_last = layers[-1]
    out_rows = N * d_last["oh"] * d_last["ow"]

    flops = 2 * sum(d["P"] * d["K"] * d["cout"] for d in layers)
    transcendentals = out_rows + sum(d["cout"] for d in layers[1:3])
    bytes_accessed = 4 * (x_packed.size
                          + sum(int(p.size) for p in params.values())
                          + out_rows)

    vmem = pl.BlockSpec(memory_space=pltpu.MemorySpace.VMEM)
    out = pl.pallas_call(
        kernel,
        out_shape=jax.ShapeDtypeStruct((out_rows, 1), jnp.float32),
        in_specs=[vmem] * 9,
        out_specs=vmem,
        scratch_shapes=scratch_shapes,
        cost_estimate=pl.CostEstimate(flops=int(flops),
                                      transcendentals=int(transcendentals),
                                      bytes_accessed=int(bytes_accessed)),
    )(x_packed,
      params["w1"], params["w2"], params["g2"], params["b2"],
      params["w3"], params["g3"], params["b3"], params["w4"])

    # PyTorch: output.view(-1, 1).squeeze(1) on (N, 1, OH, OW) -> (N*OH*OW,)
    return out.reshape(-1)


def init_params(key, nc=1, ndf=8):
    """Deterministic synthetic params; shapes follow the nn.Module __init__."""
    ks = jax.random.split(key, 6)

    def w(k, kh, kw, cin, cout):
        # flattened (KH*KW*Cin, Cout), DCGAN-style N(0, 0.02) init
        return (0.02 * jax.random.normal(k, (kh, kw, cin, cout), jnp.float32)
                ).reshape(kh * kw * cin, cout)

    return {
        "w1": w(ks[0], 4, 4, nc, ndf),
        "w2": w(ks[1], 4, 4, ndf, ndf * 2),
        "g2": 1.0 + 0.02 * jax.random.normal(ks[4], (1, ndf * 2), jnp.float32),
        "b2": jnp.zeros((1, ndf * 2), jnp.float32),
        "w3": w(ks[2], 4, 4, ndf * 2, ndf * 4),
        "g3": 1.0 + 0.02 * jax.random.normal(ks[5], (1, ndf * 4), jnp.float32),
        "b3": jnp.zeros((1, ndf * 4), jnp.float32),
        "w4": w(ks[3], 4, 4, ndf * 4, 1),
    }


if __name__ == "__main__":
    key = jax.random.PRNGKey(0)
    k_x, k_p = jax.random.split(key)

    # Small shapes: batch=2, nc=1, 16x16 input -> spatial 16->8->4->2->1
    x = jax.random.normal(k_x, (2, 1, 16, 16), jnp.float32)
    params = init_params(k_p, nc=1, ndf=8)

    fwd = jax.jit(lambda inp: discriminator_forward(inp, params))
    out = jax.block_until_ready(fwd(x))

    assert out.shape == (2,), out.shape
    assert bool(jnp.all(jnp.isfinite(out)))
    assert bool(jnp.all((out >= 0.0) & (out <= 1.0)))   # sigmoid range
    print("KERNEL_OK")
</pallas_src>

<mosaic_0001>
module attributes {stable_mosaic.version = 11 : i64} {
  func.func @kernel(%arg0: memref<324x2xf32, #tpu.memory_space<vmem>>, %arg1: memref<16x8xf32, #tpu.memory_space<vmem>>, %arg2: memref<128x16xf32, #tpu.memory_space<vmem>>, %arg3: memref<1x16xf32, #tpu.memory_space<vmem>>, %arg4: memref<1x16xf32, #tpu.memory_space<vmem>>, %arg5: memref<256x32xf32, #tpu.memory_space<vmem>>, %arg6: memref<1x32xf32, #tpu.memory_space<vmem>>, %arg7: memref<1x32xf32, #tpu.memory_space<vmem>>, %arg8: memref<512x1xf32, #tpu.memory_space<vmem>>, %arg9: memref<2x1xf32, #tpu.memory_space<vmem>>, %arg10: memref<128x16xf32, #tpu.memory_space<vmem>>, %arg11: memref<32x128xf32, #tpu.memory_space<vmem>>, %arg12: memref<8x256xf32, #tpu.memory_space<vmem>>, %arg13: memref<2x512xf32, #tpu.memory_space<vmem>>, %arg14: memref<100x16xf32, #tpu.memory_space<vmem>>, %arg15: memref<36x32xf32, #tpu.memory_space<vmem>>, %arg16: memref<16x64xf32, #tpu.memory_space<vmem>>, %arg17: memref<128x8xf32, #tpu.memory_space<vmem>>, %arg18: memref<32x16xf32, #tpu.memory_space<vmem>>, %arg19: memref<8x32xf32, #tpu.memory_space<vmem>>) attributes {dimension_semantics = [], scalar_prefetch = 0 : i64, scratch_operands = 10 : i64, tpu.core_type = #tpu.core_type<tc>} {
    %cst = arith.constant 0.000000e+00 : f32
    %0 = vector.broadcast %cst : f32 to vector<100x16xf32>
    %c0 = arith.constant 0 : index
    %c0_0 = arith.constant 0 : index
    %1 = vector.load %arg14[%c0, %c0_0] : memref<100x16xf32, #tpu.memory_space<vmem>>, vector<100x16xf32>
    tpu.vector_store %arg14[%c0, %c0_0], %0 {strides = array<i32>} : memref<100x16xf32, #tpu.memory_space<vmem>>, vector<100x16xf32>,
    %cst_1 = arith.constant 0.000000e+00 : f32
    %2 = vector.broadcast %cst_1 : f32 to vector<36x32xf32>
    %c0_2 = arith.constant 0 : index
    %c0_3 = arith.constant 0 : index
    %3 = vector.load %arg15[%c0_2, %c0_3] : memref<36x32xf32, #tpu.memory_space<vmem>>, vector<36x32xf32>
    tpu.vector_store %arg15[%c0_2, %c0_3], %2 {strides = array<i32>} : memref<36x32xf32, #tpu.memory_space<vmem>>, vector<36x32xf32>,
    %cst_4 = arith.constant 0.000000e+00 : f32
    %4 = vector.broadcast %cst_4 : f32 to vector<16x64xf32>
    %c0_5 = arith.constant 0 : index
    %c0_6 = arith.constant 0 : index
    %5 = vector.load %arg16[%c0_5, %c0_6] : memref<16x64xf32, #tpu.memory_space<vmem>>, vector<16x64xf32>
    tpu.vector_store %arg16[%c0_5, %c0_6], %4 {strides = array<i32>} : memref<16x64xf32, #tpu.memory_space<vmem>>, vector<16x64xf32>,
    %c0_7 = arith.constant 0 : index
    %c0_8 = arith.constant 0 : index
    %6 = vector.load %arg0[%c0_7, %c0_8] : memref<324x2xf32, #tpu.memory_space<vmem>>, vector<8x2xf32>
    %c0_9 = arith.constant 0 : index
    %c0_10 = arith.constant 0 : index
    %7 = vector.load %arg10[%c0_9, %c0_10] : memref<128x16xf32, #tpu.memory_space<vmem>>, vector<8x2xf32>
    tpu.vector_store %arg10[%c0_9, %c0_10], %6 {strides = array<i32>} : memref<128x16xf32, #tpu.memory_space<vmem>>, vector<8x2xf32>,
    %c1 = arith.constant 1 : index
    %c0_11 = arith.constant 0 : index
    %8 = vector.load %arg0[%c1, %c0_11] : memref<324x2xf32, #tpu.memory_space<vmem>>, vector<8x2xf32>
    %c0_12 = arith.constant 0 : index
    %c2 = arith.constant 2 : index
    %9 = vector.load %arg10[%c0_12, %c2] : memref<128x16xf32, #tpu.memory_space<vmem>>, vector<8x2xf32>
    tpu.vector_store %arg10[%c0_12, %c2], %8 {strides = array<i32>} : memref<128x16xf32, #tpu.memory_space<vmem>>, vector<8x2xf32>,
    %c9 = arith.constant 9 : index
    %c0_13 = arith.constant 0 : index
    %10 = vector.load %arg0[%c9, %c0_13] : memref<324x2xf32, #tpu.memory_space<vmem>>, vector<8x2xf32>
    %c0_14 = arith.constant 0 : index
    %c4 = arith.constant 4 : index
    %11 = vector.load %arg10[%c0_14, %c4] : memref<128x16xf32, #tpu.memory_space<vmem>>, vector<8x2xf32>
    tpu.vector_store %arg10[%c0_14, %c4], %10 {strides = array<i32>} : memref<128x16xf32, #tpu.memory_space<vmem>>, vector<8x2xf32>,
    %c10 = arith.constant 10 : index
    %c0_15 = arith.constant 0 : index
    %12 = vector.load %arg0[%c10, %c0_15] : memref<324x2xf32, #tpu.memory_space<vmem>>, vector<8x2xf32>
    %c0_16 = arith.constant 0 : index
    %c6 = arith.constant 6 : index
    %13 = vector.load %arg10[%c0_16, %c6] : memref<128x16xf32, #tpu.memory_space<vmem>>, vector<8x2xf32>
    tpu.vector_store %arg10[%c0_16, %c6], %12 {strides = array<i32>} : memref<128x16xf32, #tpu.memory_space<vmem>>, vector<8x2xf32>,
    %c18 = arith.constant 18 : index
    %c0_17 = arith.constant 0 : index
    %14 = vector.load %arg0[%c18, %c0_17] : memref<324x2xf32, #tpu.memory_space<vmem>>, vector<8x2xf32>
    %c0_18 = arith.constant 0 : index
    %c8 = arith.constant 8 : index
    %15 = vector.load %arg10[%c0_18, %c8] : memref<128x16xf32, #tpu.memory_space<vmem>>, vector<8x2xf32>
    tpu.vector_store %arg10[%c0_18, %c8], %14 {strides = array<i32>} : memref<128x16xf32, #tpu.memory_space<vmem>>, vector<8x2xf32>,
    %c19 = arith.constant 19 : index
    %c0_19 = arith.constant 0 : index
    %16 = vector.load %arg0[%c19, %c0_19] : memref<324x2xf32, #tpu.memory_space<vmem>>, vector<8x2xf32>
    %c0_20 = arith.constant 0 : index
    %c10_21 = arith.constant 10 : index
    %17 = vector.load %arg10[%c0_20, %c10_21] : memref<128x16xf32, #tpu.memory_space<vmem>>, vector<8x2xf32>
    tpu.vector_store %arg10[%c0_20, %c10_21], %16 {strides = array<i32>} : memref<128x16xf32, #tpu.memory_space<vmem>>, vector<8x2xf32>,
    %c27 = arith.constant 27 : index
    %c0_22 = arith.constant 0 : index
    %18 = vector.load %arg0[%c27, %c0_22] : memref<324x2xf32, #tpu.memory_space<vmem>>, vector<8x2xf32>
    %c0_23 = arith.constant 0 : index
    %c12 = arith.constant 12 : index
    %19 = vector.load %arg10[%c0_23, %c12] : memref<128x16xf32, #tpu.memory_space<vmem>>, vector<8x2xf32>
    tpu.vector_store %arg10[%c0_23, %c12], %18 {strides = array<i32>} : memref<128x16xf32, #tpu.memory_space<vmem>>, vector<8x2xf32>,
    %c28 = arith.constant 28 : index
    %c0_24 = arith.constant 0 : index
    %20 = vector.load %arg0[%c28, %c0_24] : memref<324x2xf32, #tpu.memory_space<vmem>>, vector<8x2xf32>
    %c0_25 = arith.constant 0 : index
    %c14 = arith.constant 14 : index
    %21 = vector.load %arg10[%c0_25, %c14] : memref<128x16xf32, #tpu.memory_space<vmem>>, vector<8x2xf32>
    tpu.vector_store %arg10[%c0_25, %c14], %20 {strides = array<i32>} : memref<128x16xf32, #tpu.memory_space<vmem>>, vector<8x2xf32>,
    %c18_26 = arith.constant 18 : index
    %c0_27 = arith.constant 0 : index
    %22 = vector.load %arg0[%c18_26, %c0_27] : memref<324x2xf32, #tpu.memory_space<vmem>>, vector<8x2xf32>
    %c8_28 = arith.constant 8 : index
    %c0_29 = arith.constant 0 : index
    %23 = vector.load %arg10[%c8_28, %c0_29] : memref<128x16xf32, #tpu.memory_space<vmem>>, vector<8x2xf32>
    tpu.vector_store %arg10[%c8_28, %c0_29], %22 {strides = array<i32>} : memref<128x16xf32, #tpu.memory_space<vmem>>, vector<8x2xf32>,
    %c19_30 = arith.constant 19 : index
    %c0_31 = arith.constant 0 : index
    %24 = vector.load %arg0[%c19_30, %c0_31] : memref<324x2xf32, #tpu.memory_space<vmem>>, vector<8x2xf32>
    %c8_32 = arith.constant 8 : index
    %c2_33 = arith.constant 2 : index
    %25 = vector.load %arg10[%c8_32, %c2_33] : memref<128x16xf32, #tpu.memory_space<vmem>>, vector<8x2xf32>
    tpu.vector_store %arg10[%c8_32, %c2_33], %24 {strides = array<i32>} : memref<128x16xf32, #tpu.memory_space<vmem>>, vector<8x2xf32>,
    %c27_34 = arith.constant 27 : index
    %c0_35 = arith.constant 0 : index
    %26 = vector.load %arg0[%c27_34, %c0_35] : memref<324x2xf32, #tpu.memory_space<vmem>>, vector<8x2xf32>
    %c8_36 = arith.constant 8 : index
    %c4_37 = arith.constant 4 : index
    %27 = vector.load %arg10[%c8_36, %c4_37] : memref<128x16xf32, #tpu.memory_space<vmem>>, vector<8x2xf32>
    tpu.vector_store %arg10[%c8_36, %c4_37], %26 {strides = array<i32>} : memref<128x16xf32, #tpu.memory_space<vmem>>, vector<8x2xf32>,
    %c28_38 = arith.constant 28 : index
    %c0_39 = arith.constant 0 : index
    %28 = vector.load %arg0[%c28_38, %c0_39] : memref<324x2xf32, #tpu.memory_space<vmem>>, vector<8x2xf32>
    %c8_40 = arith.constant 8 : index
    %c6_41 = arith.constant 6 : index
    %29 = vector.load %arg10[%c8_40, %c6_41] : memref<128x16xf32, #tpu.memory_space<vmem>>, vector<8x2xf32>
    tpu.vector_store %arg10[%c8_40, %c6_41], %28 {strides = array<i32>} : memref<128x16xf32, #tpu.memory_space<vmem>>, vector<8x2xf32>,
    %c36 = arith.constant 36 : index
    %c0_42 = arith.constant 0 : index
    %30 = vector.load %arg0[%c36, %c0_42] : memref<324x2xf32, #tpu.memory_space<vmem>>, vector<8x2xf32>
    %c8_43 = arith.constant 8 : index
    %c8_44 = arith.constant 8 : index
    %31 = vector.load %arg10[%c8_43, %c8_44] : memref<128x16xf32, #tpu.memory_space<vmem>>, vector<8x2xf32>
    tpu.vector_store %arg10[%c8_43, %c8_44], %30 {strides = array<i32>} : memref<128x16xf32, #tpu.memory_space<vmem>>, vector<8x2xf32>,
    %c37 = arith.constant 37 : index
    %c0_45 = arith.constant 0 : index
    %32 = vector.load %arg0[%c37, %c0_45] : memref<324x2xf32, #tpu.memory_space<vmem>>, vector<8x2xf32>
    %c8_46 = arith.constant 8 : index
    %c10_47 = arith.constant 10 : index
    %33 = vector.load %arg10[%c8_46, %c10_47] : memref<128x16xf32, #tpu.memory_space<vmem>>, vector<8x2xf32>
    tpu.vector_store %arg10[%c8_46, %c10_47], %32 {strides = array<i32>} : memref<128x16xf32, #tpu.memory_space<vmem>>, vector<8x2xf32>,
    %c45 = arith.constant 45 : index
    %c0_48 = arith.constant 0 : index
    %34 = vector.load %arg0[%c45, %c0_48] : memref<324x2xf32, #tpu.memory_space<vmem>>, vector<8x2xf32>
    %c8_49 = arith.constant 8 : index
    %c12_50 = arith.constant 12 : index
    %35 = vector.load %arg10[%c8_49, %c12_50] : memref<128x16xf32, #tpu.memory_space<vmem>>, vector<8x2xf32>
    tpu.vector_store %arg10[%c8_49, %c12_50], %34 {strides = array<i32>} : memref<128x16xf32, #tpu.memory_space<vmem>>, vector<8x2xf32>,
    %c46 = arith.constant 46 : index
    %c0_51 = arith.constant 0 : index
    %36 = vector.load %arg0[%c46, %c0_51] : memref<324x2xf32, #tpu.memory_space<vmem>>, vector<8x2xf32>
    %c8_52 = arith.constant 8 : index
    %c14_53 = arith.constant 14 : index
    %37 = vector.load %arg10[%c8_52, %c14_53] : memref<128x16xf32, #tpu.memory_space<vmem>>, vector<8x2xf32>
    tpu.vector_store %arg10[%c8_52, %c14_53], %36 {strides = array<i32>} : memref<128x16xf32, #tpu.memory_space<vmem>>, vector<8x2xf32>,
    %c36_54 = arith.constant 36 : index
    %c0_55 = arith.constant 0 : index
    %38 = vector.load %arg0[%c36_54, %c0_55] : memref<324x2xf32, #tpu.memory_space<vmem>>, vector<8x2xf32>
    %c16 = arith.constant 16 : index
    %c0_56 = arith.constant 0 : index
    %39 = vector.load %arg10[%c16, %c0_56] : memref<128x16xf32, #tpu.memory_space<vmem>>, vector<8x2xf32>
    tpu.vector_store %arg10[%c16, %c0_56], %38 {strides = array<i32>} : memref<128x16xf32, #tpu.memory_space<vmem>>, vector<8x2xf32>,
    %c37_57 = arith.constant 37 : index
    %c0_58 = arith.constant 0 : index
    %40 = vector.load %arg0[%c37_57, %c0_58] : memref<324x2xf32, #tpu.memory_space<vmem>>, vector<8x2xf32>
    %c16_59 = arith.constant 16 : index
    %c2_60 = arith.constant 2 : index
    %41 = vector.load %arg10[%c16_59, %c2_60] : memref<128x16xf32, #tpu.memory_space<vmem>>, vector<8x2xf32>
    tpu.vector_store %arg10[%c16_59, %c2_60], %40 {strides = array<i32>} : memref<128x16xf32, #tpu.memory_space<vmem>>, vector<8x2xf32>,
    %c45_61 = arith.constant 45 : index
    %c0_62 = arith.constant 0 : index
    %42 = vector.load %arg0[%c45_61, %c0_62] : memref<324x2xf32, #tpu.memory_space<vmem>>, vector<8x2xf32>
    %c16_63 = arith.constant 16 : index
    %c4_64 = arith.constant 4 : index
    %43 = vector.load %arg10[%c16_63, %c4_64] : memref<128x16xf32, #tpu.memory_space<vmem>>, vector<8x2xf32>
    tpu.vector_store %arg10[%c16_63, %c4_64], %42 {strides = array<i32>} : memref<128x16xf32, #tpu.memory_space<vmem>>, vector<8x2xf32>,
    %c46_65 = arith.constant 46 : index
    %c0_66 = arith.constant 0 : index
    %44 = vector.load %arg0[%c46_65, %c0_66] : memref<324x2xf32, #tpu.memory_space<vmem>>, vector<8x2xf32>
    %c16_67 = arith.constant 16 : index
    %c6_68 = arith.constant 6 : index
    %45 = vector.load %arg10[%c16_67, %c6_68] : memref<128x16xf32, #tpu.memory_space<vmem>>, vector<8x2xf32>
    tpu.vector_store %arg10[%c16_67, %c6_68], %44 {strides = array<i32>} : memref<128x16xf32, #tpu.memory_space<vmem>>, vector<8x2xf32>,
    %c54 = arith.constant 54 : index
    %c0_69 = arith.constant 0 : index
    %46 = vector.load %arg0[%c54, %c0_69] : memref<324x2xf32, #tpu.memory_space<vmem>>, vector<8x2xf32>
    %c16_70 = arith.constant 16 : index
    %c8_71 = arith.constant 8 : index
    %47 = vector.load %arg10[%c16_70, %c8_71] : memref<128x16xf32, #tpu.memory_space<vmem>>, vector<8x2xf32>
    tpu.vector_store %arg10[%c16_70, %c8_71], %46 {strides = array<i32>} : memref<128x16xf32, #tpu.memory_space<vmem>>, vector<8x2xf32>,
    %c55 = arith.constant 55 : index
    %c0_72 = arith.constant 0 : index
    %48 = vector.load %arg0[%c55, %c0_72] : memref<324x2xf32, #tpu.memory_space<vmem>>, vector<8x2xf32>
    %c16_73 = arith.constant 16 : index
    %c10_74 = arith.constant 10 : index
    %49 = vector.load %arg10[%c16_73, %c10_74] : memref<128x16xf32, #tpu.memory_space<vmem>>, vector<8x2xf32>
    tpu.vector_store %arg10[%c16_73, %c10_74], %48 {strides = array<i32>} : memref<128x16xf32, #tpu.memory_space<vmem>>, vector<8x2xf32>,
    %c63 = arith.constant 63 : index
    %c0_75 = arith.constant 0 : index
    %50 = vector.load %arg0[%c63, %c0_75] : memref<324x2xf32, #tpu.memory_space<vmem>>, vector<8x2xf32>
    %c16_76 = arith.constant 16 : index
    %c12_77 = arith.constant 12 : index
    %51 = vector.load %arg10[%c16_76, %c12_77] : memref<128x16xf32, #tpu.memory_space<vmem>>, vector<8x2xf32>
    tpu.vector_store %arg10[%c16_76, %c12_77], %50 {strides = array<i32>} : memref<128x16xf32, #tpu.memory_space<vmem>>, vector<8x2xf32>,
    %c64 = arith.constant 64 : index
    %c0_78 = arith.constant 0 : index
    %52 = vector.load %arg0[%c64, %c0_78] : memref<324x2xf32, #tpu.memory_space<vmem>>, vector<8x2xf32>
    %c16_79 = arith.constant 16 : index
    %c14_80 = arith.constant 14 : index
    %53 = vector.load %arg10[%c16_79, %c14_80] : memref<128x16xf32, #tpu.memory_space<vmem>>, vector<8x2xf32>
    tpu.vector_store %arg10[%c16_79, %c14_80], %52 {strides = array<i32>} : memref<128x16xf32, #tpu.memory_space<vmem>>, vector<8x2xf32>,
    %c54_81 = arith.constant 54 : index
    %c0_82 = arith.constant 0 : index
    %54 = vector.load %arg0[%c54_81, %c0_82] : memref<324x2xf32, #tpu.memory_space<vmem>>, vector<8x2xf32>
    %c24 = arith.constant 24 : index
    %c0_83 = arith.constant 0 : index
    %55 = vector.load %arg10[%c24, %c0_83] : memref<128x16xf32, #tpu.memory_space<vmem>>, vector<8x2xf32>
    tpu.vector_store %arg10[%c24, %c0_83], %54 {strides = array<i32>} : memref<128x16xf32, #tpu.memory_space<vmem>>, vector<8x2xf32>,
    %c55_84 = arith.constant 55 : index
    %c0_85 = arith.constant 0 : index
    %56 = vector.load %arg0[%c55_84, %c0_85] : memref<324x2xf32, #tpu.memory_space<vmem>>, vector<8x2xf32>
    %c24_86 = arith.constant 24 : index
    %c2_87 = arith.constant 2 : index
    %57 = vector.load %arg10[%c24_86, %c2_87] : memref<128x16xf32, #tpu.memory_space<vmem>>, vector<8x2xf32>
    tpu.vector_store %arg10[%c24_86, %c2_87], %56 {strides = array<i32>} : memref<128x16xf32, #tpu.memory_space<vmem>>, vector<8x2xf32>,
    %c63_88 = arith.constant 63 : index
    %c0_89 = arith.constant 0 : index
    %58 = vector.load %arg0[%c63_88, %c0_89] : memref<324x2xf32, #tpu.memory_space<vmem>>, vector<8x2xf32>
    %c24_90 = arith.constant 24 : index
    %c4_91 = arith.constant 4 : index
    %59 = vector.load %arg10[%c24_90, %c4_91] : memref<128x16xf32, #tpu.memory_space<vmem>>, vector<8x2xf32>
    tpu.vector_store %arg10[%c24_90, %c4_91], %58 {strides = array<i32>} : memref<128x16xf32, #tpu.memory_space<vmem>>, vector<8x2xf32>,
    %c64_92 = arith.constant 64 : index
    %c0_93 = arith.constant 0 : index
    %60 = vector.load %arg0[%c64_92, %c0_93] : memref<324x2xf32, #tpu.memory_space<vmem>>, vector<8x2xf32>
    %c24_94 = arith.constant 24 : index
    %c6_95 = arith.constant 6 : index
    %61 = vector.load %arg10[%c24_94, %c6_95] : memref<128x16xf32, #tpu.memory_space<vmem>>, vector<8x2xf32>
    tpu.vector_store %arg10[%c24_94, %c6_95], %60 {strides = array<i32>} : memref<128x16xf32, #tpu.memory_space<vmem>>, vector<8x2xf32>,
    %c72 = arith.constant 72 : index
    %c0_96 = arith.constant 0 : index
    %62 = vector.load %arg0[%c72, %c0_96] : memref<324x2xf32, #tpu.memory_space<vmem>>, vector<8x2xf32>
    %c24_97 = arith.constant 24 : index
    %c8_98 = arith.constant 8 : index
    %63 = vector.load %arg10[%c24_97, %c8_98] : memref<128x16xf32, #tpu.memory_space<vmem>>, vector<8x2xf32>
    tpu.vector_store %arg10[%c24_97, %c8_98], %62 {strides = array<i32>} : memref<128x16xf32, #tpu.memory_space<vmem>>, vector<8x2xf32>,
    %c73 = arith.constant 73 : index
    %c0_99 = arith.constant 0 : index
    %64 = vector.load %arg0[%c73, %c0_99] : memref<324x2xf32, #tpu.memory_space<vmem>>, vector<8x2xf32>
    %c24_100 = arith.constant 24 : index
    %c10_101 = arith.constant 10 : index
    %65 = vector.load %arg10[%c24_100, %c10_101] : memref<128x16xf32, #tpu.memory_space<vmem>>, vector<8x2xf32>
    tpu.vector_store %arg10[%c24_100, %c10_101], %64 {strides = array<i32>} : memref<128x16xf32, #tpu.memory_space<vmem>>, vector<8x2xf32>,
    %c81 = arith.constant 81 : index
    %c0_102 = arith.constant 0 : index
    %66 = vector.load %arg0[%c81, %c0_102] : memref<324x2xf32, #tpu.memory_space<vmem>>, vector<8x2xf32>
    %c24_103 = arith.constant 24 : index
    %c12_104 = arith.constant 12 : index
    %67 = vector.load %arg10[%c24_103, %c12_104] : memref<128x16xf32, #tpu.memory_space<vmem>>, vector<8x2xf32>
    tpu.vector_store %arg10[%c24_103, %c12_104], %66 {strides = array<i32>} : memref<128x16xf32, #tpu.memory_space<vmem>>, vector<8x2xf32>,
    %c82 = arith.constant 82 : index
    %c0_105 = arith.constant 0 : index
    %68 = vector.load %arg0[%c82, %c0_105] : memref<324x2xf32, #tpu.memory_space<vmem>>, vector<8x2xf32>
    %c24_106 = arith.constant 24 : index
    %c14_107 = arith.constant 14 : index
    %69 = vector.load %arg10[%c24_106, %c14_107] : memref<128x16xf32, #tpu.memory_space<vmem>>, vector<8x2xf32>
    tpu.vector_store %arg10[%c24_106, %c14_107], %68 {strides = array<i32>} : memref<128x16xf32, #tpu.memory_space<vmem>>, vector<8x2xf32>,
    %c72_108 = arith.constant 72 : index
    %c0_109 = arith.constant 0 : index
    %70 = vector.load %arg0[%c72_108, %c0_109] : memref<324x2xf32, #tpu.memory_space<vmem>>, vector<8x2xf32>
    %c32 = arith.constant 32 : index
    %c0_110 = arith.constant 0 : index
    %71 = vector.load %arg10[%c32, %c0_110] : memref<128x16xf32, #tpu.memory_space<vmem>>, vector<8x2xf32>
    tpu.vector_store %arg10[%c32, %c0_110], %70 {strides = array<i32>} : memref<128x16xf32, #tpu.memory_space<vmem>>, vector<8x2xf32>,
    %c73_111 = arith.constant 73 : index
    %c0_112 = arith.constant 0 : index
    %72 = vector.load %arg0[%c73_111, %c0_112] : memref<324x2xf32, #tpu.memory_space<vmem>>, vector<8x2xf32>
    %c32_113 = arith.constant 32 : index
    %c2_114 = arith.constant 2 : index
    %73 = vector.load %arg10[%c32_113, %c2_114] : memref<128x16xf32, #tpu.memory_space<vmem>>, vector<8x2xf32>
    tpu.vector_store %arg10[%c32_113, %c2_114], %72 {strides = array<i32>} : memref<128x16xf32, #tpu.memory_space<vmem>>, vector<8x2xf32>,
    %c81_115 = arith.constant 81 : index
    %c0_116 = arith.constant 0 : index
    %74 = vector.load %arg0[%c81_115, %c0_116] : memref<324x2xf32, #tpu.memory_space<vmem>>, vector<8x2xf32>
    %c32_117 = arith.constant 32 : index
    %c4_118 = arith.constant 4 : index
    %75 = vector.load %arg10[%c32_117, %c4_118] : memref<128x16xf32, #tpu.memory_space<vmem>>, vector<8x2xf32>
    tpu.vector_store %arg10[%c32_117, %c4_118], %74 {strides = array<i32>} : memref<128x16xf32, #tpu.memory_space<vmem>>, vector<8x2xf32>,
    %c82_119 = arith.constant 82 : index
    %c0_120 = arith.constant 0 : index
    %76 = vector.load %arg0[%c82_119, %c0_120] : memref<324x2xf32, #tpu.memory_space<vmem>>, vector<8x2xf32>
    %c32_121 = arith.constant 32 : index
    %c6_122 = arith.constant 6 : index
    %77 = vector.load %arg10[%c32_121, %c6_122] : memref<128x16xf32, #tpu.memory_space<vmem>>, vector<8x2xf32>
    tpu.vector_store %arg10[%c32_121, %c6_122], %76 {strides = array<i32>} : memref<128x16xf32, #tpu.memory_space<vmem>>, vector<8x2xf32>,
    %c90 = arith.constant 90 : index
    %c0_123 = arith.constant 0 : index
    %78 = vector.load %arg0[%c90, %c0_123] : memref<324x2xf32, #tpu.memory_space<vmem>>, vector<8x2xf32>
    %c32_124 = arith.constant 32 : index
    %c8_125 = arith.constant 8 : index
    %79 = vector.load %arg10[%c32_124, %c8_125] : memref<128x16xf32, #tpu.memory_space<vmem>>, vector<8x2xf32>
    tpu.vector_store %arg10[%c32_124, %c8_125], %78 {strides = array<i32>} : memref<128x16xf32, #tpu.memory_space<vmem>>, vector<8x2xf32>,
    %c91 = arith.constant 91 : index
    %c0_126 = arith.constant 0 : index
    %80 = vector.load %arg0[%c91, %c0_126] : memref<324x2xf32, #tpu.memory_space<vmem>>, vector<8x2xf32>
    %c32_127 = arith.constant 32 : index
    %c10_128 = arith.constant 10 : index
    %81 = vector.load %arg10[%c32_127, %c10_128] : memref<128x16xf32, #tpu.memory_space<vmem>>, vector<8x2xf32>
    tpu.vector_store %arg10[%c32_127, %c10_128], %80 {strides = array<i32>} : memref<128x16xf32, #tpu.memory_space<vmem>>, vector<8x2xf32>,
    %c99 = arith.constant 99 : index
    %c0_129 = arith.constant 0 : index
    %82 = vector.load %arg0[%c99, %c0_129] : memref<324x2xf32, #tpu.memory_space<vmem>>, vector<8x2xf32>
    %c32_130 = arith.constant 32 : index
    %c12_131 = arith.constant 12 : index
    %83 = vector.load %arg10[%c32_130, %c12_131] : memref<128x16xf32, #tpu.memory_space<vmem>>, vector<8x2xf32>
    tpu.vector_store %arg10[%c32_130, %c12_131], %82 {strides = array<i32>} : memref<128x16xf32, #tpu.memory_space<vmem>>, vector<8x2xf32>,
    %c100 = arith.constant 100 : index
    %c0_132 = arith.constant 0 : index
    %84 = vector.load %arg0[%c100, %c0_132] : memref<324x2xf32, #tpu.memory_space<vmem>>, vector<8x2xf32>
    %c32_133 = arith.constant 32 : index
    %c14_134 = arith.constant 14 : index
    %85 = vector.load %arg10[%c32_133, %c14_134] : memref<128x16xf32, #tpu.memory_space<vmem>>, vector<8x2xf32>
    tpu.vector_store %arg10[%c32_133, %c14_134], %84 {strides = array<i32>} : memref<128x16xf32, #tpu.memory_space<vmem>>, vector<8x2xf32>,
    %c90_135 = arith.constant 90 : index
    %c0_136 = arith.constant 0 : index
    %86 = vector.load %arg0[%c90_135, %c0_136] : memref<324x2xf32, #tpu.memory_space<vmem>>, vector<8x2xf32>
    %c40 = arith.constant 40 : index
    %c0_137 = arith.constant 0 : index
    %87 = vector.load %arg10[%c40, %c0_137] : memref<128x16xf32, #tpu.memory_space<vmem>>, vector<8x2xf32>
    tpu.vector_store %arg10[%c40, %c0_137], %86 {strides = array<i32>} : memref<128x16xf32, #tpu.memory_space<vmem>>, vector<8x2xf32>,
    %c91_138 = arith.constant 91 : index
    %c0_139 = arith.constant 0 : index
    %88 = vector.load %arg0[%c91_138, %c0_139] : memref<324x2xf32, #tpu.memory_space<vmem>>, vector<8x2xf32>
    %c40_140 = arith.constant 40 : index
    %c2_141 = arith.constant 2 : index
    %89 = vector.load %arg10[%c40_140, %c2_141] : memref<128x16xf32, #tpu.memory_space<vmem>>, vector<8x2xf32>
    tpu.vector_store %arg10[%c40_140, %c2_141], %88 {strides = array<i32>} : memref<128x16xf32, #tpu.memory_space<vmem>>, vector<8x2xf32>,
    %c99_142 = arith.constant 99 : index
    %c0_143 = arith.constant 0 : index
    %90 = vector.load %arg0[%c99_142, %c0_143] : memref<324x2xf32, #tpu.memory_space<vmem>>, vector<8x2xf32>
    %c40_144 = arith.constant 40 : index
    %c4_145 = arith.constant 4 : index
    %91 = vector.load %arg10[%c40_144, %c4_145] : memref<128x16xf32, #tpu.memory_space<vmem>>, vector<8x2xf32>
    tpu.vector_store %arg10[%c40_144, %c4_145], %90 {strides = array<i32>} : memref<128x16xf32, #tpu.memory_space<vmem>>, vector<8x2xf32>,
    %c100_146 = arith.constant 100 : index
    %c0_147 = arith.constant 0 : index
    %92 = vector.load %arg0[%c100_146, %c0_147] : memref<324x2xf32, #tpu.memory_space<vmem>>, vector<8x2xf32>
    %c40_148 = arith.constant 40 : index
    %c6_149 = arith.constant 6 : index
    %93 = vector.load %arg10[%c40_148, %c6_149] : memref<128x16xf32, #tpu.memory_space<vmem>>, vector<8x2xf32>
    tpu.vector_store %arg10[%c40_148, %c6_149], %92 {strides = array<i32>} : memref<128x16xf32, #tpu.memory_space<vmem>>, vector<8x2xf32>,
    %c108 = arith.constant 108 : index
    %c0_150 = arith.constant 0 : index
    %94 = vector.load %arg0[%c108, %c0_150] : memref<324x2xf32, #tpu.memory_space<vmem>>, vector<8x2xf32>
    %c40_151 = arith.constant 40 : index
    %c8_152 = arith.constant 8 : index
    %95 = vector.load %arg10[%c40_151, %c8_152] : memref<128x16xf32, #tpu.memory_space<vmem>>, vector<8x2xf32>
    tpu.vector_store %arg10[%c40_151, %c8_152], %94 {strides = array<i32>} : memref<128x16xf32, #tpu.memory_space<vmem>>, vector<8x2xf32>,
    %c109 = arith.constant 109 : index
    %c0_153 = arith.constant 0 : index
    %96 = vector.load %arg0[%c109, %c0_153] : memref<324x2xf32, #tpu.memory_space<vmem>>, vector<8x2xf32>
    %c40_154 = arith.constant 40 : index
    %c10_155 = arith.constant 10 : index
    %97 = vector.load %arg10[%c40_154, %c10_155] : memref<128x16xf32, #tpu.memory_space<vmem>>, vector<8x2xf32>
    tpu.vector_store %arg10[%c40_154, %c10_155], %96 {strides = array<i32>} : memref<128x16xf32, #tpu.memory_space<vmem>>, vector<8x2xf32>,
    %c117 = arith.constant 117 : index
    %c0_156 = arith.constant 0 : index
    %98 = vector.load %arg0[%c117, %c0_156] : memref<324x2xf32, #tpu.memory_space<vmem>>, vector<8x2xf32>
    %c40_157 = arith.constant 40 : index
    %c12_158 = arith.constant 12 : index
    %99 = vector.load %arg10[%c40_157, %c12_158] : memref<128x16xf32, #tpu.memory_space<vmem>>, vector<8x2xf32>
    tpu.vector_store %arg10[%c40_157, %c12_158], %98 {strides = array<i32>} : memref<128x16xf32, #tpu.memory_space<vmem>>, vector<8x2xf32>,
    %c118 = arith.constant 118 : index
    %c0_159 = arith.constant 0 : index
    %100 = vector.load %arg0[%c118, %c0_159] : memref<324x2xf32, #tpu.memory_space<vmem>>, vector<8x2xf32>
    %c40_160 = arith.constant 40 : index
    %c14_161 = arith.constant 14 : index
    %101 = vector.load %arg10[%c40_160, %c14_161] : memref<128x16xf32, #tpu.memory_space<vmem>>, vector<8x2xf32>
    tpu.vector_store %arg10[%c40_160, %c14_161], %100 {strides = array<i32>} : memref<128x16xf32, #tpu.memory_space<vmem>>, vector<8x2xf32>,
    %c108_162 = arith.constant 108 : index
    %c0_163 = arith.constant 0 : index
    %102 = vector.load %arg0[%c108_162, %c0_163] : memref<324x2xf32, #tpu.memory_space<vmem>>, vector<8x2xf32>
    %c48 = arith.constant 48 : index
    %c0_164 = arith.constant 0 : index
    %103 = vector.load %arg10[%c48, %c0_164] : memref<128x16xf32, #tpu.memory_space<vmem>>, vector<8x2xf32>
    tpu.vector_store %arg10[%c48, %c0_164], %102 {strides = array<i32>} : memref<128x16xf32, #tpu.memory_space<vmem>>, vector<8x2xf32>,
    %c109_165 = arith.constant 109 : index
    %c0_166 = arith.constant 0 : index
    %104 = vector.load %arg0[%c109_165, %c0_166] : memref<324x2xf32, #tpu.memory_space<vmem>>, vector<8x2xf32>
    %c48_167 = arith.constant 48 : index
    %c2_168 = arith.constant 2 : index
    %105 = vector.load %arg10[%c48_167, %c2_168] : memref<128x16xf32, #tpu.memory_space<vmem>>, vector<8x2xf32>
    tpu.vector_store %arg10[%c48_167, %c2_168], %104 {strides = array<i32>} : memref<128x16xf32, #tpu.memory_space<vmem>>, vector<8x2xf32>,
    %c117_169 = arith.constant 117 : index
    %c0_170 = arith.constant 0 : index
    %106 = vector.load %arg0[%c117_169, %c0_170] : memref<324x2xf32, #tpu.memory_space<vmem>>, vector<8x2xf32>
    %c48_171 = arith.constant 48 : index
    %c4_172 = arith.constant 4 : index
    %107 = vector.load %arg10[%c48_171, %c4_172] : memref<128x16xf32, #tpu.memory_space<vmem>>, vector<8x2xf32>
    tpu.vector_store %arg10[%c48_171, %c4_172], %106 {strides = array<i32>} : memref<128x16xf32, #tpu.memory_space<vmem>>, vector<8x2xf32>,
    %c118_173 = arith.constant 118 : index
    %c0_174 = arith.constant 0 : index
    %108 = vector.load %arg0[%c118_173, %c0_174] : memref<324x2xf32, #tpu.memory_space<vmem>>, vector<8x2xf32>
    %c48_175 = arith.constant 48 : index
    %c6_176 = arith.constant 6 : index
    %109 = vector.load %arg10[%c48_175, %c6_176] : memref<128x16xf32, #tpu.memory_space<vmem>>, vector<8x2xf32>
    tpu.vector_store %arg10[%c48_175, %c6_176], %108 {strides = array<i32>} : memref<128x16xf32, #tpu.memory_space<vmem>>, vector<8x2xf32>,
    %c126 = arith.constant 126 : index
    %c0_177 = arith.constant 0 : index
    %110 = vector.load %arg0[%c126, %c0_177] : memref<324x2xf32, #tpu.memory_space<vmem>>, vector<8x2xf32>
    %c48_178 = arith.constant 48 : index
    %c8_179 = arith.constant 8 : index
    %111 = vector.load %arg10[%c48_178, %c8_179] : memref<128x16xf32, #tpu.memory_space<vmem>>, vector<8x2xf32>
    tpu.vector_store %arg10[%c48_178, %c8_179], %110 {strides = array<i32>} : memref<128x16xf32, #tpu.memory_space<vmem>>, vector<8x2xf32>,
    %c127 = arith.constant 127 : index
    %c0_180 = arith.constant 0 : index
    %112 = vector.load %arg0[%c127, %c0_180] : memref<324x2xf32, #tpu.memory_space<vmem>>, vector<8x2xf32>
    %c48_181 = arith.constant 48 : index
    %c10_182 = arith.constant 10 : index
    %113 = vector.load %arg10[%c48_181, %c10_182] : memref<128x16xf32, #tpu.memory_space<vmem>>, vector<8x2xf32>
    tpu.vector_store %arg10[%c48_181, %c10_182], %112 {strides = array<i32>} : memref<128x16xf32, #tpu.memory_space<vmem>>, vector<8x2xf32>,
    %c135 = arith.constant 135 : index
    %c0_183 = arith.constant 0 : index
    %114 = vector.load %arg0[%c135, %c0_183] : memref<324x2xf32, #tpu.memory_space<vmem>>, vector<8x2xf32>
    %c48_184 = arith.constant 48 : index
    %c12_185 = arith.constant 12 : index
    %115 = vector.load %arg10[%c48_184, %c12_185] : memref<128x16xf32, #tpu.memory_space<vmem>>, vector<8x2xf32>
    tpu.vector_store %arg10[%c48_184, %c12_185], %114 {strides = array<i32>} : memref<128x16xf32, #tpu.memory_space<vmem>>, vector<8x2xf32>,
    %c136 = arith.constant 136 : index
    %c0_186 = arith.constant 0 : index
    %116 = vector.load %arg0[%c136, %c0_186] : memref<324x2xf32, #tpu.memory_space<vmem>>, vector<8x2xf32>
    %c48_187 = arith.constant 48 : index
    %c14_188 = arith.constant 14 : index
    %117 = vector.load %arg10[%c48_187, %c14_188] : memref<128x16xf32, #tpu.memory_space<vmem>>, vector<8x2xf32>
    tpu.vector_store %arg10[%c48_187, %c14_188], %116 {strides = array<i32>} : memref<128x16xf32, #tpu.memory_space<vmem>>, vector<8x2xf32>,
    %c126_189 = arith.constant 126 : index
    %c0_190 = arith.constant 0 : index
    %118 = vector.load %arg0[%c126_189, %c0_190] : memref<324x2xf32, #tpu.memory_space<vmem>>, vector<8x2xf32>
    %c56 = arith.constant 56 : index
    %c0_191 = arith.constant 0 : index
    %119 = vector.load %arg10[%c56, %c0_191] : memref<128x16xf32, #tpu.memory_space<vmem>>, vector<8x2xf32>
    tpu.vector_store %arg10[%c56, %c0_191], %118 {strides = array<i32>} : memref<128x16xf32, #tpu.memory_space<vmem>>, vector<8x2xf32>,
    %c127_192 = arith.constant 127 : index
    %c0_193 = arith.constant 0 : index
    %120 = vector.load %arg0[%c127_192, %c0_193] : memref<324x2xf32, #tpu.memory_space<vmem>>, vector<8x2xf32>
    %c56_194 = arith.constant 56 : index
    %c2_195 = arith.constant 2 : index
    %121 = vector.load %arg10[%c56_194, %c2_195] : memref<128x16xf32, #tpu.memory_space<vmem>>, vector<8x2xf32>
    tpu.vector_store %arg10[%c56_194, %c2_195], %120 {strides = array<i32>} : memref<128x16xf32, #tpu.memory_space<vmem>>, vector<8x2xf32>,
    %c135_196 = arith.constant 135 : index
    %c0_197 = arith.constant 0 : index
    %122 = vector.load %arg0[%c135_196, %c0_197] : memref<324x2xf32, #tpu.memory_space<vmem>>, vector<8x2xf32>
    %c56_198 = arith.constant 56 : index
    %c4_199 = arith.constant 4 : index
    %123 = vector.load %arg10[%c56_198, %c4_199] : memref<128x16xf32, #tpu.memory_space<vmem>>, vector<8x2xf32>
    tpu.vector_store %arg10[%c56_198, %c4_199], %122 {strides = array<i32>} : memref<128x16xf32, #tpu.memory_space<vmem>>, vector<8x2xf32>,
    %c136_200 = arith.constant 136 : index
    %c0_201 = arith.constant 0 : index
    %124 = vector.load %arg0[%c136_200, %c0_201] : memref<324x2xf32, #tpu.memory_space<vmem>>, vector<8x2xf32>
    %c56_202 = arith.constant 56 : index
    %c6_203 = arith.constant 6 : index
    %125 = vector.load %arg10[%c56_202, %c6_203] : memref<128x16xf32, #tpu.memory_space<vmem>>, vector<8x2xf32>
    tpu.vector_store %arg10[%c56_202, %c6_203], %124 {strides = array<i32>} : memref<128x16xf32, #tpu.memory_space<vmem>>, vector<8x2xf32>,
    %c144 = arith.constant 144 : index
    %c0_204 = arith.constant 0 : index
    %126 = vector.load %arg0[%c144, %c0_204] : memref<324x2xf32, #tpu.memory_space<vmem>>, vector<8x2xf32>
    %c56_205 = arith.constant 56 : index
    %c8_206 = arith.constant 8 : index
    %127 = vector.load %arg10[%c56_205, %c8_206] : memref<128x16xf32, #tpu.memory_space<vmem>>, vector<8x2xf32>
    tpu.vector_store %arg10[%c56_205, %c8_206], %126 {strides = array<i32>} : memref<128x16xf32, #tpu.memory_space<vmem>>, vector<8x2xf32>,
    %c145 = arith.constant 145 : index
    %c0_207 = arith.constant 0 : index
    %128 = vector.load %arg0[%c145, %c0_207] : memref<324x2xf32, #tpu.memory_space<vmem>>, vector<8x2xf32>
    %c56_208 = arith.constant 56 : index
    %c10_209 = arith.constant 10 : index
    %129 = vector.load %arg10[%c56_208, %c10_209] : memref<128x16xf32, #tpu.memory_space<vmem>>, vector<8x2xf32>
    tpu.vector_store %arg10[%c56_208, %c10_209], %128 {strides = array<i32>} : memref<128x16xf32, #tpu.memory_space<vmem>>, vector<8x2xf32>,
    %c153 = arith.constant 153 : index
    %c0_210 = arith.constant 0 : index
    %130 = vector.load %arg0[%c153, %c0_210] : memref<324x2xf32, #tpu.memory_space<vmem>>, vector<8x2xf32>
    %c56_211 = arith.constant 56 : index
    %c12_212 = arith.constant 12 : index
    %131 = vector.load %arg10[%c56_211, %c12_212] : memref<128x16xf32, #tpu.memory_space<vmem>>, vector<8x2xf32>
    tpu.vector_store %arg10[%c56_211, %c12_212], %130 {strides = array<i32>} : memref<128x16xf32, #tpu.memory_space<vmem>>, vector<8x2xf32>,
    %c154 = arith.constant 154 : index
    %c0_213 = arith.constant 0 : index
    %132 = vector.load %arg0[%c154, %c0_213] : memref<324x2xf32, #tpu.memory_space<vmem>>, vector<8x2xf32>
    %c56_214 = arith.constant 56 : index
    %c14_215 = arith.constant 14 : index
    %133 = vector.load %arg10[%c56_214, %c14_215] : memref<128x16xf32, #tpu.memory_space<vmem>>, vector<8x2xf32>
    tpu.vector_store %arg10[%c56_214, %c14_215], %132 {strides = array<i32>} : memref<128x16xf32, #tpu.memory_space<vmem>>, vector<8x2xf32>,
    %c162 = arith.constant 162 : index
    %c0_216 = arith.constant 0 : index
    %134 = vector.load %arg0[%c162, %c0_216] : memref<324x2xf32, #tpu.memory_space<vmem>>, vector<8x2xf32>
    %c64_217 = arith.constant 64 : index
    %c0_218 = arith.constant 0 : index
    %135 = vector.load %arg10[%c64_217, %c0_218] : memref<128x16xf32, #tpu.memory_space<vmem>>, vector<8x2xf32>
    tpu.vector_store %arg10[%c64_217, %c0_218], %134 {strides = array<i32>} : memref<128x16xf32, #tpu.memory_space<vmem>>, vector<8x2xf32>,
    %c163 = arith.constant 163 : index
    %c0_219 = arith.constant 0 : index
    %136 = vector.load %arg0[%c163, %c0_219] : memref<324x2xf32, #tpu.memory_space<vmem>>, vector<8x2xf32>
    %c64_220 = arith.constant 64 : index
    %c2_221 = arith.constant 2 : index
    %137 = vector.load %arg10[%c64_220, %c2_221] : memref<128x16xf32, #tpu.memory_space<vmem>>, vector<8x2xf32>
    tpu.vector_store %arg10[%c64_220, %c2_221], %136 {strides = array<i32>} : memref<128x16xf32, #tpu.memory_space<vmem>>, vector<8x2xf32>,
    %c171 = arith.constant 171 : index
    %c0_222 = arith.constant 0 : index
    %138 = vector.load %arg0[%c171, %c0_222] : memref<324x2xf32, #tpu.memory_space<vmem>>, vector<8x2xf32>
    %c64_223 = arith.constant 64 : index
    %c4_224 = arith.constant 4 : index
    %139 = vector.load %arg10[%c64_223, %c4_224] : memref<128x16xf32, #tpu.memory_space<vmem>>, vector<8x2xf32>
    tpu.vector_store %arg10[%c64_223, %c4_224], %138 {strides = array<i32>} : memref<128x16xf32, #tpu.memory_space<vmem>>, vector<8x2xf32>,
    %c172 = arith.constant 172 : index
    %c0_225 = arith.constant 0 : index
    %140 = vector.load %arg0[%c172, %c0_225] : memref<324x2xf32, #tpu.memory_space<vmem>>, vector<8x2xf32>
    %c64_226 = arith.constant 64 : index
    %c6_227 = arith.constant 6 : index
    %141 = vector.load %arg10[%c64_226, %c6_227] : memref<128x16xf32, #tpu.memory_space<vmem>>, vector<8x2xf32>
    tpu.vector_store %arg10[%c64_226, %c6_227], %140 {strides = array<i32>} : memref<128x16xf32, #tpu.memory_space<vmem>>, vector<8x2xf32>,
    %c180 = arith.constant 180 : index
    %c0_228 = arith.constant 0 : index
    %142 = vector.load %arg0[%c180, %c0_228] : memref<324x2xf32, #tpu.memory_space<vmem>>, vector<8x2xf32>
    %c64_229 = arith.constant 64 : index
    %c8_230 = arith.constant 8 : index
    %143 = vector.load %arg10[%c64_229, %c8_230] : memref<128x16xf32, #tpu.memory_space<vmem>>, vector<8x2xf32>
    tpu.vector_store %arg10[%c64_229, %c8_230], %142 {strides = array<i32>} : memref<128x16xf32, #tpu.memory_space<vmem>>, vector<8x2xf32>,
    %c181 = arith.constant 181 : index
    %c0_231 = arith.constant 0 : index
    %144 = vector.load %arg0[%c181, %c0_231] : memref<324x2xf32, #tpu.memory_space<vmem>>, vector<8x2xf32>
    %c64_232 = arith.constant 64 : index
    %c10_233 = arith.constant 10 : index
    %145 = vector.load %arg10[%c64_232, %c10_233] : memref<128x16xf32, #tpu.memory_space<vmem>>, vector<8x2xf32>
    tpu.vector_store %arg10[%c64_232, %c10_233], %144 {strides = array<i32>} : memref<128x16xf32, #tpu.memory_space<vmem>>, vector<8x2xf32>,
    %c189 = arith.constant 189 : index
    %c0_234 = arith.constant 0 : index
    %146 = vector.load %arg0[%c189, %c0_234] : memref<324x2xf32, #tpu.memory_space<vmem>>, vector<8x2xf32>
    %c64_235 = arith.constant 64 : index
    %c12_236 = arith.constant 12 : index
    %147 = vector.load %arg10[%c64_235, %c12_236] : memref<128x16xf32, #tpu.memory_space<vmem>>, vector<8x2xf32>
    tpu.vector_store %arg10[%c64_235, %c12_236], %146 {strides = array<i32>} : memref<128x16xf32, #tpu.memory_space<vmem>>, vector<8x2xf32>,
    %c190 = arith.constant 190 : index
    %c0_237 = arith.constant 0 : index
    %148 = vector.load %arg0[%c190, %c0_237] : memref<324x2xf32, #tpu.memory_space<vmem>>, vector<8x2xf32>
    %c64_238 = arith.constant 64 : index
    %c14_239 = arith.constant 14 : index
    %149 = vector.load %arg10[%c64_238, %c14_239] : memref<128x16xf32, #tpu.memory_space<vmem>>, vector<8x2xf32>
    tpu.vector_store %arg10[%c64_238, %c14_239], %148 {strides = array<i32>} : memref<128x16xf32, #tpu.memory_space<vmem>>, vector<8x2xf32>,
    %c180_240 = arith.constant 180 : index
    %c0_241 = arith.constant 0 : index
    %150 = vector.load %arg0[%c180_240, %c0_241] : memref<324x2xf32, #tpu.memory_space<vmem>>, vector<8x2xf32>
    %c72_242 = arith.constant 72 : index
    %c0_243 = arith.constant 0 : index
    %151 = vector.load %arg10[%c72_242, %c0_243] : memref<128x16xf32, #tpu.memory_space<vmem>>, vector<8x2xf32>
    tpu.vector_store %arg10[%c72_242, %c0_243], %150 {strides = array<i32>} : memref<128x16xf32, #tpu.memory_space<vmem>>, vector<8x2xf32>,
    %c181_244 = arith.constant 181 : index
    %c0_245 = arith.constant 0 : index
    %152 = vector.load %arg0[%c181_244, %c0_245] : memref<324x2xf32, #tpu.memory_space<vmem>>, vector<8x2xf32>
    %c72_246 = arith.constant 72 : index
    %c2_247 = arith.constant 2 : index
    %153 = vector.load %arg10[%c72_246, %c2_247] : memref<128x16xf32, #tpu.memory_space<vmem>>, vector<8x2xf32>
    tpu.vector_store %arg10[%c72_246, %c2_247], %152 {strides = array<i32>} : memref<128x16xf32, #tpu.memory_space<vmem>>, vector<8x2xf32>,
    %c189_248 = arith.constant 189 : index
    %c0_249 = arith.constant 0 : index
    %154 = vector.load %arg0[%c189_248, %c0_249] : memref<324x2xf32, #tpu.memory_space<vmem>>, vector<8x2xf32>
    %c72_250 = arith.constant 72 : index
    %c4_251 = arith.constant 4 : index
    %155 = vector.load %arg10[%c72_250, %c4_251] : memref<128x16xf32, #tpu.memory_space<vmem>>, vector<8x2xf32>
    tpu.vector_store %arg10[%c72_250, %c4_251], %154 {strides = array<i32>} : memref<128x16xf32, #tpu.memory_space<vmem>>, vector<8x2xf32>,
    %c190_252 = arith.constant 190 : index
    %c0_253 = arith.constant 0 : index
    %156 = vector.load %arg0[%c190_252, %c0_253] : memref<324x2xf32, #tpu.memory_space<vmem>>, vector<8x2xf32>
    %c72_254 = arith.constant 72 : index
    %c6_255 = arith.constant 6 : index
    %157 = vector.load %arg10[%c72_254, %c6_255] : memref<128x16xf32, #tpu.memory_space<vmem>>, vector<8x2xf32>
    tpu.vector_store %arg10[%c72_254, %c6_255], %156 {strides = array<i32>} : memref<128x16xf32, #tpu.memory_space<vmem>>, vector<8x2xf32>,
    %c198 = arith.constant 198 : index
    %c0_256 = arith.constant 0 : index
    %158 = vector.load %arg0[%c198, %c0_256] : memref<324x2xf32, #tpu.memory_space<vmem>>, vector<8x2xf32>
    %c72_257 = arith.constant 72 : index
    %c8_258 = arith.constant 8 : index
    %159 = vector.load %arg10[%c72_257, %c8_258] : memref<128x16xf32, #tpu.memory_space<vmem>>, vector<8x2xf32>
    tpu.vector_store %arg10[%c72_257, %c8_258], %158 {strides = array<i32>} : memref<128x16xf32, #tpu.memory_space<vmem>>, vector<8x2xf32>,
    %c199 = arith.constant 199 : index
    %c0_259 = arith.constant 0 : index
    %160 = vector.load %arg0[%c199, %c0_259] : memref<324x2xf32, #tpu.memory_space<vmem>>, vector<8x2xf32>
    %c72_260 = arith.constant 72 : index
    %c10_261 = arith.constant 10 : index
    %161 = vector.load %arg10[%c72_260, %c10_261] : memref<128x16xf32, #tpu.memory_space<vmem>>, vector<8x2xf32>
    tpu.vector_store %arg10[%c72_260, %c10_261], %160 {strides = array<i32>} : memref<128x16xf32, #tpu.memory_space<vmem>>, vector<8x2xf32>,
    %c207 = arith.constant 207 : index
    %c0_262 = arith.constant 0 : index
    %162 = vector.load %arg0[%c207, %c0_262] : memref<324x2xf32, #tpu.memory_space<vmem>>, vector<8x2xf32>
    %c72_263 = arith.constant 72 : index
    %c12_264 = arith.constant 12 : index
    %163 = vector.load %arg10[%c72_263, %c12_264] : memref<128x16xf32, #tpu.memory_space<vmem>>, vector<8x2xf32>
    tpu.vector_store %arg10[%c72_263, %c12_264], %162 {strides = array<i32>} : memref<128x16xf32, #tpu.memory_space<vmem>>, vector<8x2xf32>,
    %c208 = arith.constant 208 : index
    %c0_265 = arith.constant 0 : index
    %164 = vector.load %arg0[%c208, %c0_265] : memref<324x2xf32, #tpu.memory_space<vmem>>, vector<8x2xf32>
    %c72_266 = arith.constant 72 : index
    %c14_267 = arith.constant 14 : index
    %165 = vector.load %arg10[%c72_266, %c14_267] : memref<128x16xf32, #tpu.memory_space<vmem>>, vector<8x2xf32>
    tpu.vector_store %arg10[%c72_266, %c14_267], %164 {strides = array<i32>} : memref<128x16xf32, #tpu.memory_space<vmem>>, vector<8x2xf32>,
    %c198_268 = arith.constant 198 : index
    %c0_269 = arith.constant 0 : index
    %166 = vector.load %arg0[%c198_268, %c0_269] : memref<324x2xf32, #tpu.memory_space<vmem>>, vector<8x2xf32>
    %c80 = arith.constant 80 : index
    %c0_270 = arith.constant 0 : index
    %167 = vector.load %arg10[%c80, %c0_270] : memref<128x16xf32, #tpu.memory_space<vmem>>, vector<8x2xf32>
    tpu.vector_store %arg10[%c80, %c0_270], %166 {strides = array<i32>} : memref<128x16xf32, #tpu.memory_space<vmem>>, vector<8x2xf32>,
    %c199_271 = arith.constant 199 : index
    %c0_272 = arith.constant 0 : index
    %168 = vector.load %arg0[%c199_271, %c0_272] : memref<324x2xf32, #tpu.memory_space<vmem>>, vector<8x2xf32>
    %c80_273 = arith.constant 80 : index
    %c2_274 = arith.constant 2 : index
    %169 = vector.load %arg10[%c80_273, %c2_274] : memref<128x16xf32, #tpu.memory_space<vmem>>, vector<8x2xf32>
    tpu.vector_store %arg10[%c80_273, %c2_274], %168 {strides = array<i32>} : memref<128x16xf32, #tpu.memory_space<vmem>>, vector<8x2xf32>,
    %c207_275 = arith.constant 207 : index
    %c0_276 = arith.constant 0 : index
    %170 = vector.load %arg0[%c207_275, %c0_276] : memref<324x2xf32, #tpu.memory_space<vmem>>, vector<8x2xf32>
    %c80_277 = arith.constant 80 : index
    %c4_278 = arith.constant 4 : index
    %171 = vector.load %arg10[%c80_277, %c4_278] : memref<128x16xf32, #tpu.memory_space<vmem>>, vector<8x2xf32>
    tpu.vector_store %arg10[%c80_277, %c4_278], %170 {strides = array<i32>} : memref<128x16xf32, #tpu.memory_space<vmem>>, vector<8x2xf32>,
    %c208_279 = arith.constant 208 : index
    %c0_280 = arith.constant 0 : index
    %172 = vector.load %arg0[%c208_279, %c0_280] : memref<324x2xf32, #tpu.memory_space<vmem>>, vector<8x2xf32>
    %c80_281 = arith.constant 80 : index
    %c6_282 = arith.constant 6 : index
    %173 = vector.load %arg10[%c80_281, %c6_282] : memref<128x16xf32, #tpu.memory_space<vmem>>, vector<8x2xf32>
    tpu.vector_store %arg10[%c80_281, %c6_282], %172 {strides = array<i32>} : memref<128x16xf32, #tpu.memory_space<vmem>>, vector<8x2xf32>,
    %c216 = arith.constant 216 : index
    %c0_283 = arith.constant 0 : index
    %174 = vector.load %arg0[%c216, %c0_283] : memref<324x2xf32, #tpu.memory_space<vmem>>, vector<8x2xf32>
    %c80_284 = arith.constant 80 : index
    %c8_285 = arith.constant 8 : index
    %175 = vector.load %arg10[%c80_284, %c8_285] : memref<128x16xf32, #tpu.memory_space<vmem>>, vector<8x2xf32>
    tpu.vector_store %arg10[%c80_284, %c8_285], %174 {strides = array<i32>} : memref<128x16xf32, #tpu.memory_space<vmem>>, vector<8x2xf32>,
    %c217 = arith.constant 217 : index
    %c0_286 = arith.constant 0 : index
    %176 = vector.load %arg0[%c217, %c0_286] : memref<324x2xf32, #tpu.memory_space<vmem>>, vector<8x2xf32>
    %c80_287 = arith.constant 80 : index
    %c10_288 = arith.constant 10 : index
    %177 = vector.load %arg10[%c80_287, %c10_288] : memref<128x16xf32, #tpu.memory_space<vmem>>, vector<8x2xf32>
    tpu.vector_store %arg10[%c80_287, %c10_288], %176 {strides = array<i32>} : memref<128x16xf32, #tpu.memory_space<vmem>>, vector<8x2xf32>,
    %c225 = arith.constant 225 : index
    %c0_289 = arith.constant 0 : index
    %178 = vector.load %arg0[%c225, %c0_289] : memref<324x2xf32, #tpu.memory_space<vmem>>, vector<8x2xf32>
    %c80_290 = arith.constant 80 : index
    %c12_291 = arith.constant 12 : index
    %179 = vector.load %arg10[%c80_290, %c12_291] : memref<128x16xf32, #tpu.memory_space<vmem>>, vector<8x2xf32>
    tpu.vector_store %arg10[%c80_290, %c12_291], %178 {strides = array<i32>} : memref<128x16xf32, #tpu.memory_space<vmem>>, vector<8x2xf32>,
    %c226 = arith.constant 226 : index
    %c0_292 = arith.constant 0 : index
    %180 = vector.load %arg0[%c226, %c0_292] : memref<324x2xf32, #tpu.memory_space<vmem>>, vector<8x2xf32>
    %c80_293 = arith.constant 80 : index
    %c14_294 = arith.constant 14 : index
    %181 = vector.load %arg10[%c80_293, %c14_294] : memref<128x16xf32, #tpu.memory_space<vmem>>, vector<8x2xf32>
    tpu.vector_store %arg10[%c80_293, %c14_294], %180 {strides = array<i32>} : memref<128x16xf32, #tpu.memory_space<vmem>>, vector<8x2xf32>,
    %c216_295 = arith.constant 216 : index
    %c0_296 = arith.constant 0 : index
    %182 = vector.load %arg0[%c216_295, %c0_296] : memref<324x2xf32, #tpu.memory_space<vmem>>, vector<8x2xf32>
    %c88 = arith.constant 88 : index
    %c0_297 = arith.constant 0 : index
    %183 = vector.load %arg10[%c88, %c0_297] : memref<128x16xf32, #tpu.memory_space<vmem>>, vector<8x2xf32>
    tpu.vector_store %arg10[%c88, %c0_297], %182 {strides = array<i32>} : memref<128x16xf32, #tpu.memory_space<vmem>>, vector<8x2xf32>,
    %c217_298 = arith.constant 217 : index
    %c0_299 = arith.constant 0 : index
    %184 = vector.load %arg0[%c217_298, %c0_299] : memref<324x2xf32, #tpu.memory_space<vmem>>, vector<8x2xf32>
    %c88_300 = arith.constant 88 : index
    %c2_301 = arith.constant 2 : index
    %185 = vector.load %arg10[%c88_300, %c2_301] : memref<128x16xf32, #tpu.memory_space<vmem>>, vector<8x2xf32>
    tpu.vector_store %arg10[%c88_300, %c2_301], %184 {strides = array<i32>} : memref<128x16xf32, #tpu.memory_space<vmem>>, vector<8x2xf32>,
    %c225_302 = arith.constant 225 : index
    %c0_303 = arith.constant 0 : index
    %186 = vector.load %arg0[%c225_302, %c0_303] : memref<324x2xf32, #tpu.memory_space<vmem>>, vector<8x2xf32>
    %c88_304 = arith.constant 88 : index
    %c4_305 = arith.constant 4 : index
    %187 = vector.load %arg10[%c88_304, %c4_305] : memref<128x16xf32, #tpu.memory_space<vmem>>, vector<8x2xf32>
    tpu.vector_store %arg10[%c88_304, %c4_305], %186 {strides = array<i32>} : memref<128x16xf32, #tpu.memory_space<vmem>>, vector<8x2xf32>,
    %c226_306 = arith.constant 226 : index
    %c0_307 = arith.constant 0 : index
    %188 = vector.load %arg0[%c226_306, %c0_307] : memref<324x2xf32, #tpu.memory_space<vmem>>, vector<8x2xf32>
    %c88_308 = arith.constant 88 : index
    %c6_309 = arith.constant 6 : index
    %189 = vector.load %arg10[%c88_308, %c6_309] : memref<128x16xf32, #tpu.memory_space<vmem>>, vector<8x2xf32>
    tpu.vector_store %arg10[%c88_308, %c6_309], %188 {strides = array<i32>} : memref<128x16xf32, #tpu.memory_space<vmem>>, vector<8x2xf32>,
    %c234 = arith.constant 234 : index
    %c0_310 = arith.constant 0 : index
    %190 = vector.load %arg0[%c234, %c0_310] : memref<324x2xf32, #tpu.memory_space<vmem>>, vector<8x2xf32>
    %c88_311 = arith.constant 88 : index
    %c8_312 = arith.constant 8 : index
    %191 = vector.load %arg10[%c88_311, %c8_312] : memref<128x16xf32, #tpu.memory_space<vmem>>, vector<8x2xf32>
    tpu.vector_store %arg10[%c88_311, %c8_312], %190 {strides = array<i32>} : memref<128x16xf32, #tpu.memory_space<vmem>>, vector<8x2xf32>,
    %c235 = arith.constant 235 : index
    %c0_313 = arith.constant 0 : index
    %192 = vector.load %arg0[%c235, %c0_313] : memref<324x2xf32, #tpu.memory_space<vmem>>, vector<8x2xf32>
    %c88_314 = arith.constant 88 : index
    %c10_315 = arith.constant 10 : index
    %193 = vector.load %arg10[%c88_314, %c10_315] : memref<128x16xf32, #tpu.memory_space<vmem>>, vector<8x2xf32>
    tpu.vector_store %arg10[%c88_314, %c10_315], %192 {strides = array<i32>} : memref<128x16xf32, #tpu.memory_space<vmem>>, vector<8x2xf32>,
    %c243 = arith.constant 243 : index
    %c0_316 = arith.constant 0 : index
    %194 = vector.load %arg0[%c243, %c0_316] : memref<324x2xf32, #tpu.memory_space<vmem>>, vector<8x2xf32>
    %c88_317 = arith.constant 88 : index
    %c12_318 = arith.constant 12 : index
    %195 = vector.load %arg10[%c88_317, %c12_318] : memref<128x16xf32, #tpu.memory_space<vmem>>, vector<8x2xf32>
    tpu.vector_store %arg10[%c88_317, %c12_318], %194 {strides = array<i32>} : memref<128x16xf32, #tpu.memory_space<vmem>>, vector<8x2xf32>,
    %c244 = arith.constant 244 : index
    %c0_319 = arith.constant 0 : index
    %196 = vector.load %arg0[%c244, %c0_319] : memref<324x2xf32, #tpu.memory_space<vmem>>, vector<8x2xf32>
    %c88_320 = arith.constant 88 : index
    %c14_321 = arith.constant 14 : index
    %197 = vector.load %arg10[%c88_320, %c14_321] : memref<128x16xf32, #tpu.memory_space<vmem>>, vector<8x2xf32>
    tpu.vector_store %arg10[%c88_320, %c14_321], %196 {strides = array<i32>} : memref<128x16xf32, #tpu.memory_space<vmem>>, vector<8x2xf32>,
    %c234_322 = arith.constant 234 : index
    %c0_323 = arith.constant 0 : index
    %198 = vector.load %arg0[%c234_322, %c0_323] : memref<324x2xf32, #tpu.memory_space<vmem>>, vector<8x2xf32>
    %c96 = arith.constant 96 : index
    %c0_324 = arith.constant 0 : index
    %199 = vector.load %arg10[%c96, %c0_324] : memref<128x16xf32, #tpu.memory_space<vmem>>, vector<8x2xf32>
    tpu.vector_store %arg10[%c96, %c0_324], %198 {strides = array<i32>} : memref<128x16xf32, #tpu.memory_space<vmem>>, vector<8x2xf32>,
    %c235_325 = arith.constant 235 : index
    %c0_326 = arith.constant 0 : index
    %200 = vector.load %arg0[%c235_325, %c0_326] : memref<324x2xf32, #tpu.memory_space<vmem>>, vector<8x2xf32>
    %c96_327 = arith.constant 96 : index
    %c2_328 = arith.constant 2 : index
    %201 = vector.load %arg10[%c96_327, %c2_328] : memref<128x16xf32, #tpu.memory_space<vmem>>, vector<8x2xf32>
    tpu.vector_store %arg10[%c96_327, %c2_328], %200 {strides = array<i32>} : memref<128x16xf32, #tpu.memory_space<vmem>>, vector<8x2xf32>,
    %c243_329 = arith.constant 243 : index
    %c0_330 = arith.constant 0 : index
    %202 = vector.load %arg0[%c243_329, %c0_330] : memref<324x2xf32, #tpu.memory_space<vmem>>, vector<8x2xf32>
    %c96_331 = arith.constant 96 : index
    %c4_332 = arith.constant 4 : index
    %203 = vector.load %arg10[%c96_331, %c4_332] : memref<128x16xf32, #tpu.memory_space<vmem>>, vector<8x2xf32>
    tpu.vector_store %arg10[%c96_331, %c4_332], %202 {strides = array<i32>} : memref<128x16xf32, #tpu.memory_space<vmem>>, vector<8x2xf32>,
    %c244_333 = arith.constant 244 : index
    %c0_334 = arith.constant 0 : index
    %204 = vector.load %arg0[%c244_333, %c0_334] : memref<324x2xf32, #tpu.memory_space<vmem>>, vector<8x2xf32>
    %c96_335 = arith.constant 96 : index
    %c6_336 = arith.constant 6 : index
    %205 = vector.load %arg10[%c96_335, %c6_336] : memref<128x16xf32, #tpu.memory_space<vmem>>, vector<8x2xf32>
    tpu.vector_store %arg10[%c96_335, %c6_336], %204 {strides = array<i32>} : memref<128x16xf32, #tpu.memory_space<vmem>>, vector<8x2xf32>,
    %c252 = arith.constant 252 : index
    %c0_337 = arith.constant 0 : index
    %206 = vector.load %arg0[%c252, %c0_337] : memref<324x2xf32, #tpu.memory_space<vmem>>, vector<8x2xf32>
    %c96_338 = arith.constant 96 : index
    %c8_339 = arith.constant 8 : index
    %207 = vector.load %arg10[%c96_338, %c8_339] : memref<128x16xf32, #tpu.memory_space<vmem>>, vector<8x2xf32>
    tpu.vector_store %arg10[%c96_338, %c8_339], %206 {strides = array<i32>} : memref<128x16xf32, #tpu.memory_space<vmem>>, vector<8x2xf32>,
    %c253 = arith.constant 253 : index
    %c0_340 = arith.constant 0 : index
    %208 = vector.load %arg0[%c253, %c0_340] : memref<324x2xf32, #tpu.memory_space<vmem>>, vector<8x2xf32>
    %c96_341 = arith.constant 96 : index
    %c10_342 = arith.constant 10 : index
    %209 = vector.load %arg10[%c96_341, %c10_342] : memref<128x16xf32, #tpu.memory_space<vmem>>, vector<8x2xf32>
    tpu.vector_store %arg10[%c96_341, %c10_342], %208 {strides = array<i32>} : memref<128x16xf32, #tpu.memory_space<vmem>>, vector<8x2xf32>,
    %c261 = arith.constant 261 : index
    %c0_343 = arith.constant 0 : index
    %210 = vector.load %arg0[%c261, %c0_343] : memref<324x2xf32, #tpu.memory_space<vmem>>, vector<8x2xf32>
    %c96_344 = arith.constant 96 : index
    %c12_345 = arith.constant 12 : index
    %211 = vector.load %arg10[%c96_344, %c12_345] : memref<128x16xf32, #tpu.memory_space<vmem>>, vector<8x2xf32>
    tpu.vector_store %arg10[%c96_344, %c12_345], %210 {strides = array<i32>} : memref<128x16xf32, #tpu.memory_space<vmem>>, vector<8x2xf32>,
    %c262 = arith.constant 262 : index
    %c0_346 = arith.constant 0 : index
    %212 = vector.load %arg0[%c262, %c0_346] : memref<324x2xf32, #tpu.memory_space<vmem>>, vector<8x2xf32>
    %c96_347 = arith.constant 96 : index
    %c14_348 = arith.constant 14 : index
    %213 = vector.load %arg10[%c96_347, %c14_348] : memref<128x16xf32, #tpu.memory_space<vmem>>, vector<8x2xf32>
    tpu.vector_store %arg10[%c96_347, %c14_348], %212 {strides = array<i32>} : memref<128x16xf32, #tpu.memory_space<vmem>>, vector<8x2xf32>,
    %c252_349 = arith.constant 252 : index
    %c0_350 = arith.constant 0 : index
    %214 = vector.load %arg0[%c252_349, %c0_350] : memref<324x2xf32, #tpu.memory_space<vmem>>, vector<8x2xf32>
    %c104 = arith.constant 104 : index
    %c0_351 = arith.constant 0 : index
    %215 = vector.load %arg10[%c104, %c0_351] : memref<128x16xf32, #tpu.memory_space<vmem>>, vector<8x2xf32>
    tpu.vector_store %arg10[%c104, %c0_351], %214 {strides = array<i32>} : memref<128x16xf32, #tpu.memory_space<vmem>>, vector<8x2xf32>,
    %c253_352 = arith.constant 253 : index
    %c0_353 = arith.constant 0 : index
    %216 = vector.load %arg0[%c253_352, %c0_353] : memref<324x2xf32, #tpu.memory_space<vmem>>, vector<8x2xf32>
    %c104_354 = arith.constant 104 : index
    %c2_355 = arith.constant 2 : index
    %217 = vector.load %arg10[%c104_354, %c2_355] : memref<128x16xf32, #tpu.memory_space<vmem>>, vector<8x2xf32>
    tpu.vector_store %arg10[%c104_354, %c2_355], %216 {strides = array<i32>} : memref<128x16xf32, #tpu.memory_space<vmem>>, vector<8x2xf32>,
    %c261_356 = arith.constant 261 : index
    %c0_357 = arith.constant 0 : index
    %218 = vector.load %arg0[%c261_356, %c0_357] : memref<324x2xf32, #tpu.memory_space<vmem>>, vector<8x2xf32>
    %c104_358 = arith.constant 104 : index
    %c4_359 = arith.constant 4 : index
    %219 = vector.load %arg10[%c104_358, %c4_359] : memref<128x16xf32, #tpu.memory_space<vmem>>, vector<8x2xf32>
    tpu.vector_store %arg10[%c104_358, %c4_359], %218 {strides = array<i32>} : memref<128x16xf32, #tpu.memory_space<vmem>>, vector<8x2xf32>,
    %c262_360 = arith.constant 262 : index
    %c0_361 = arith.constant 0 : index
    %220 = vector.load %arg0[%c262_360, %c0_361] : memref<324x2xf32, #tpu.memory_space<vmem>>, vector<8x2xf32>
    %c104_362 = arith.constant 104 : index
    %c6_363 = arith.constant 6 : index
    %221 = vector.load %arg10[%c104_362, %c6_363] : memref<128x16xf32, #tpu.memory_space<vmem>>, vector<8x2xf32>
    tpu.vector_store %arg10[%c104_362, %c6_363], %220 {strides = array<i32>} : memref<128x16xf32, #tpu.memory_space<vmem>>, vector<8x2xf32>,
    %c270 = arith.constant 270 : index
    %c0_364 = arith.constant 0 : index
    %222 = vector.load %arg0[%c270, %c0_364] : memref<324x2xf32, #tpu.memory_space<vmem>>, vector<8x2xf32>
    %c104_365 = arith.constant 104 : index
    %c8_366 = arith.constant 8 : index
    %223 = vector.load %arg10[%c104_365, %c8_366] : memref<128x16xf32, #tpu.memory_space<vmem>>, vector<8x2xf32>
    tpu.vector_store %arg10[%c104_365, %c8_366], %222 {strides = array<i32>} : memref<128x16xf32, #tpu.memory_space<vmem>>, vector<8x2xf32>,
    %c271 = arith.constant 271 : index
    %c0_367 = arith.constant 0 : index
    %224 = vector.load %arg0[%c271, %c0_367] : memref<324x2xf32, #tpu.memory_space<vmem>>, vector<8x2xf32>
    %c104_368 = arith.constant 104 : index
    %c10_369 = arith.constant 10 : index
    %225 = vector.load %arg10[%c104_368, %c10_369] : memref<128x16xf32, #tpu.memory_space<vmem>>, vector<8x2xf32>
    tpu.vector_store %arg10[%c104_368, %c10_369], %224 {strides = array<i32>} : memref<128x16xf32, #tpu.memory_space<vmem>>, vector<8x2xf32>,
    %c279 = arith.constant 279 : index
    %c0_370 = arith.constant 0 : index
    %226 = vector.load %arg0[%c279, %c0_370] : memref<324x2xf32, #tpu.memory_space<vmem>>, vector<8x2xf32>
    %c104_371 = arith.constant 104 : index
    %c12_372 = arith.constant 12 : index
    %227 = vector.load %arg10[%c104_371, %c12_372] : memref<128x16xf32, #tpu.memory_space<vmem>>, vector<8x2xf32>
    tpu.vector_store %arg10[%c104_371, %c12_372], %226 {strides = array<i32>} : memref<128x16xf32, #tpu.memory_space<vmem>>, vector<8x2xf32>,
    %c280 = arith.constant 280 : index
    %c0_373 = arith.constant 0 : index
    %228 = vector.load %arg0[%c280, %c0_373] : memref<324x2xf32, #tpu.memory_space<vmem>>, vector<8x2xf32>
    %c104_374 = arith.constant 104 : index
    %c14_375 = arith.constant 14 : index
    %229 = vector.load %arg10[%c104_374, %c14_375] : memref<128x16xf32, #tpu.memory_space<vmem>>, vector<8x2xf32>
    tpu.vector_store %arg10[%c104_374, %c14_375], %228 {strides = array<i32>} : memref<128x16xf32, #tpu.memory_space<vmem>>, vector<8x2xf32>,
    %c270_376 = arith.constant 270 : index
    %c0_377 = arith.constant 0 : index
    %230 = vector.load %arg0[%c270_376, %c0_377] : memref<324x2xf32, #tpu.memory_space<vmem>>, vector<8x2xf32>
    %c112 = arith.constant 112 : index
    %c0_378 = arith.constant 0 : index
    %231 = vector.load %arg10[%c112, %c0_378] : memref<128x16xf32, #tpu.memory_space<vmem>>, vector<8x2xf32>
    tpu.vector_store %arg10[%c112, %c0_378], %230 {strides = array<i32>} : memref<128x16xf32, #tpu.memory_space<vmem>>, vector<8x2xf32>,
    %c271_379 = arith.constant 271 : index
    %c0_380 = arith.constant 0 : index
    %232 = vector.load %arg0[%c271_379, %c0_380] : memref<324x2xf32, #tpu.memory_space<vmem>>, vector<8x2xf32>
    %c112_381 = arith.constant 112 : index
    %c2_382 = arith.constant 2 : index
    %233 = vector.load %arg10[%c112_381, %c2_382] : memref<128x16xf32, #tpu.memory_space<vmem>>, vector<8x2xf32>
    tpu.vector_store %arg10[%c112_381, %c2_382], %232 {strides = array<i32>} : memref<128x16xf32, #tpu.memory_space<vmem>>, vector<8x2xf32>,
    %c279_383 = arith.constant 279 : index
    %c0_384 = arith.constant 0 : index
    %234 = vector.load %arg0[%c279_383, %c0_384] : memref<324x2xf32, #tpu.memory_space<vmem>>, vector<8x2xf32>
    %c112_385 = arith.constant 112 : index
    %c4_386 = arith.constant 4 : index
    %235 = vector.load %arg10[%c112_385, %c4_386] : memref<128x16xf32, #tpu.memory_space<vmem>>, vector<8x2xf32>
    tpu.vector_store %arg10[%c112_385, %c4_386], %234 {strides = array<i32>} : memref<128x16xf32, #tpu.memory_space<vmem>>, vector<8x2xf32>,
    %c280_387 = arith.constant 280 : index
    %c0_388 = arith.constant 0 : index
    %236 = vector.load %arg0[%c280_387, %c0_388] : memref<324x2xf32, #tpu.memory_space<vmem>>, vector<8x2xf32>
    %c112_389 = arith.constant 112 : index
    %c6_390 = arith.constant 6 : index
    %237 = vector.load %arg10[%c112_389, %c6_390] : memref<128x16xf32, #tpu.memory_space<vmem>>, vector<8x2xf32>
    tpu.vector_store %arg10[%c112_389, %c6_390], %236 {strides = array<i32>} : memref<128x16xf32, #tpu.memory_space<vmem>>, vector<8x2xf32>,
    %c288 = arith.constant 288 : index
    %c0_391 = arith.constant 0 : index
    %238 = vector.load %arg0[%c288, %c0_391] : memref<324x2xf32, #tpu.memory_space<vmem>>, vector<8x2xf32>
    %c112_392 = arith.constant 112 : index
    %c8_393 = arith.constant 8 : index
    %239 = vector.load %arg10[%c112_392, %c8_393] : memref<128x16xf32, #tpu.memory_space<vmem>>, vector<8x2xf32>
    tpu.vector_store %arg10[%c112_392, %c8_393], %238 {strides = array<i32>} : memref<128x16xf32, #tpu.memory_space<vmem>>, vector<8x2xf32>,
    %c289 = arith.constant 289 : index
    %c0_394 = arith.constant 0 : index
    %240 = vector.load %arg0[%c289, %c0_394] : memref<324x2xf32, #tpu.memory_space<vmem>>, vector<8x2xf32>
    %c112_395 = arith.constant 112 : index
    %c10_396 = arith.constant 10 : index
    %241 = vector.load %arg10[%c112_395, %c10_396] : memref<128x16xf32, #tpu.memory_space<vmem>>, vector<8x2xf32>
    tpu.vector_store %arg10[%c112_395, %c10_396], %240 {strides = array<i32>} : memref<128x16xf32, #tpu.memory_space<vmem>>, vector<8x2xf32>,
    %c297 = arith.constant 297 : index
    %c0_397 = arith.constant 0 : index
    %242 = vector.load %arg0[%c297, %c0_397] : memref<324x2xf32, #tpu.memory_space<vmem>>, vector<8x2xf32>
    %c112_398 = arith.constant 112 : index
    %c12_399 = arith.constant 12 : index
    %243 = vector.load %arg10[%c112_398, %c12_399] : memref<128x16xf32, #tpu.memory_space<vmem>>, vector<8x2xf32>
    tpu.vector_store %arg10[%c112_398, %c12_399], %242 {strides = array<i32>} : memref<128x16xf32, #tpu.memory_space<vmem>>, vector<8x2xf32>,
    %c298 = arith.constant 298 : index
    %c0_400 = arith.constant 0 : index
    %244 = vector.load %arg0[%c298, %c0_400] : memref<324x2xf32, #tpu.memory_space<vmem>>, vector<8x2xf32>
    %c112_401 = arith.constant 112 : index
    %c14_402 = arith.constant 14 : index
    %245 = vector.load %arg10[%c112_401, %c14_402] : memref<128x16xf32, #tpu.memory_space<vmem>>, vector<8x2xf32>
    tpu.vector_store %arg10[%c112_401, %c14_402], %244 {strides = array<i32>} : memref<128x16xf32, #tpu.memory_space<vmem>>, vector<8x2xf32>,
    %c288_403 = arith.constant 288 : index
    %c0_404 = arith.constant 0 : index
    %246 = vector.load %arg0[%c288_403, %c0_404] : memref<324x2xf32, #tpu.memory_space<vmem>>, vector<8x2xf32>
    %c120 = arith.constant 120 : index
    %c0_405 = arith.constant 0 : index
    %247 = vector.load %arg10[%c120, %c0_405] : memref<128x16xf32, #tpu.memory_space<vmem>>, vector<8x2xf32>
    tpu.vector_store %arg10[%c120, %c0_405], %246 {strides = array<i32>} : memref<128x16xf32, #tpu.memory_space<vmem>>, vector<8x2xf32>,
    %c289_406 = arith.constant 289 : index
    %c0_407 = arith.constant 0 : index
    %248 = vector.load %arg0[%c289_406, %c0_407] : memref<324x2xf32, #tpu.memory_space<vmem>>, vector<8x2xf32>
    %c120_408 = arith.constant 120 : index
    %c2_409 = arith.constant 2 : index
    %249 = vector.load %arg10[%c120_408, %c2_409] : memref<128x16xf32, #tpu.memory_space<vmem>>, vector<8x2xf32>
    tpu.vector_store %arg10[%c120_408, %c2_409], %248 {strides = array<i32>} : memref<128x16xf32, #tpu.memory_space<vmem>>, vector<8x2xf32>,
    %c297_410 = arith.constant 297 : index
    %c0_411 = arith.constant 0 : index
    %250 = vector.load %arg0[%c297_410, %c0_411] : memref<324x2xf32, #tpu.memory_space<vmem>>, vector<8x2xf32>
    %c120_412 = arith.constant 120 : index
    %c4_413 = arith.constant 4 : index
    %251 = vector.load %arg10[%c120_412, %c4_413] : memref<128x16xf32, #tpu.memory_space<vmem>>, vector<8x2xf32>
    tpu.vector_store %arg10[%c120_412, %c4_413], %250 {strides = array<i32>} : memref<128x16xf32, #tpu.memory_space<vmem>>, vector<8x2xf32>,
    %c298_414 = arith.constant 298 : index
    %c0_415 = arith.constant 0 : index
    %252 = vector.load %arg0[%c298_414, %c0_415] : memref<324x2xf32, #tpu.memory_space<vmem>>, vector<8x2xf32>
    %c120_416 = arith.constant 120 : index
    %c6_417 = arith.constant 6 : index
    %253 = vector.load %arg10[%c120_416, %c6_417] : memref<128x16xf32, #tpu.memory_space<vmem>>, vector<8x2xf32>
    tpu.vector_store %arg10[%c120_416, %c6_417], %252 {strides = array<i32>} : memref<128x16xf32, #tpu.memory_space<vmem>>, vector<8x2xf32>,
    %c306 = arith.constant 306 : index
    %c0_418 = arith.constant 0 : index
    %254 = vector.load %arg0[%c306, %c0_418] : memref<324x2xf32, #tpu.memory_space<vmem>>, vector<8x2xf32>
    %c120_419 = arith.constant 120 : index
    %c8_420 = arith.constant 8 : index
    %255 = vector.load %arg10[%c120_419, %c8_420] : memref<128x16xf32, #tpu.memory_space<vmem>>, vector<8x2xf32>
    tpu.vector_store %arg10[%c120_419, %c8_420], %254 {strides = array<i32>} : memref<128x16xf32, #tpu.memory_space<vmem>>, vector<8x2xf32>,
    %c307 = arith.constant 307 : index
    %c0_421 = arith.constant 0 : index
    %256 = vector.load %arg0[%c307, %c0_421] : memref<324x2xf32, #tpu.memory_space<vmem>>, vector<8x2xf32>
    %c120_422 = arith.constant 120 : index
    %c10_423 = arith.constant 10 : index
    %257 = vector.load %arg10[%c120_422, %c10_423] : memref<128x16xf32, #tpu.memory_space<vmem>>, vector<8x2xf32>
    tpu.vector_store %arg10[%c120_422, %c10_423], %256 {strides = array<i32>} : memref<128x16xf32, #tpu.memory_space<vmem>>, vector<8x2xf32>,
    %c315 = arith.constant 315 : index
    %c0_424 = arith.constant 0 : index
    %258 = vector.load %arg0[%c315, %c0_424] : memref<324x2xf32, #tpu.memory_space<vmem>>, vector<8x2xf32>
    %c120_425 = arith.constant 120 : index
    %c12_426 = arith.constant 12 : index
    %259 = vector.load %arg10[%c120_425, %c12_426] : memref<128x16xf32, #tpu.memory_space<vmem>>, vector<8x2xf32>
    tpu.vector_store %arg10[%c120_425, %c12_426], %258 {strides = array<i32>} : memref<128x16xf32, #tpu.memory_space<vmem>>, vector<8x2xf32>,
    %c316 = arith.constant 316 : index
    %c0_427 = arith.constant 0 : index
    %260 = vector.load %arg0[%c316, %c0_427] : memref<324x2xf32, #tpu.memory_space<vmem>>, vector<8x2xf32>
    %c120_428 = arith.constant 120 : index
    %c14_429 = arith.constant 14 : index
    %261 = vector.load %arg10[%c120_428, %c14_429] : memref<128x16xf32, #tpu.memory_space<vmem>>, vector<8x2xf32>
    tpu.vector_store %arg10[%c120_428, %c14_429], %260 {strides = array<i32>} : memref<128x16xf32, #tpu.memory_space<vmem>>, vector<8x2xf32>,
    %c0_430 = arith.constant 0 : index
    %c0_431 = arith.constant 0 : index
    %262 = vector.load %arg10[%c0_430, %c0_431] : memref<128x16xf32, #tpu.memory_space<vmem>>, vector<128x16xf32>
    %c0_432 = arith.constant 0 : index
    %c0_433 = arith.constant 0 : index
    %263 = vector.load %arg1[%c0_432, %c0_433] : memref<16x8xf32, #tpu.memory_space<vmem>>, vector<16x8xf32>
    %cst_434 = arith.constant dense<0.000000e+00> : vector<128x8xf32>
    %264 = tpu.matmul %262, %263, %cst_434 {dimension_numbers = #tpu.dot_dimension_numbers<[1], [0], [0], [1], [0, 0, 1, 1], [], []>} : vector<128x16xf32>, vector<16x8xf32>, vector<128x8xf32> -> vector<128x8xf32>
    %cst_435 = arith.constant 0.000000e+00 : f32
    %265 = vector.broadcast %cst_435 : f32 to vector<128x8xf32>
    %266 = arith.cmpf ogt, %264, %265 : vector<128x8xf32>
    %cst_436 = arith.constant 2.000000e-01 : f32
    %267 = vector.broadcast %cst_436 : f32 to vector<128x8xf32>
    %268 = arith.mulf %267, %264 : vector<128x8xf32>
    %269 = arith.select %266, %264, %268 : vector<128x8xi1>, vector<128x8xf32>
    %c0_437 = arith.constant 0 : index
    %c0_438 = arith.constant 0 : index
    %270 = vector.load %arg17[%c0_437, %c0_438] : memref<128x8xf32, #tpu.memory_space<vmem>>, vector<128x8xf32>
    tpu.vector_store %arg17[%c0_437, %c0_438], %269 {strides = array<i32>} : memref<128x8xf32, #tpu.memory_space<vmem>>, vector<128x8xf32>,
    %c0_439 = arith.constant 0 : index
    %c0_440 = arith.constant 0 : index
    %271 = tpu.strided_load %arg17[%c0_439, %c0_440] {strides = array<i32: 2, 1>} : memref<128x8xf32, #tpu.memory_space<vmem>>, vector<4x8xf32>
    %c5 = arith.constant 5 : index
    %c8_441 = arith.constant 8 : index
    %272 = vector.load %arg14[%c5, %c8_441] : memref<100x16xf32, #tpu.memory_space<vmem>>, vector<4x8xf32>
    tpu.vector_store %arg14[%c5, %c8_441], %271 {strides = array<i32>} : memref<100x16xf32, #tpu.memory_space<vmem>>, vector<4x8xf32>,
    %c1_442 = arith.constant 1 : index
    %c0_443 = arith.constant 0 : index
    %273 = tpu.strided_load %arg17[%c1_442, %c0_443] {strides = array<i32: 2, 1>} : memref<128x8xf32, #tpu.memory_space<vmem>>, vector<4x8xf32>
    %c6_444 = arith.constant 6 : index
    %c0_445 = arith.constant 0 : index
    %274 = vector.load %arg14[%c6_444, %c0_445] : memref<100x16xf32, #tpu.memory_space<vmem>>, vector<4x8xf32>
    tpu.vector_store %arg14[%c6_444, %c0_445], %273 {strides = array<i32>} : memref<100x16xf32, #tpu.memory_space<vmem>>, vector<4x8xf32>,
    %c8_446 = arith.constant 8 : index
    %c0_447 = arith.constant 0 : index
    %275 = tpu.strided_load %arg17[%c8_446, %c0_447] {strides = array<i32: 2, 1>} : memref<128x8xf32, #tpu.memory_space<vmem>>, vector<4x8xf32>
    %c10_448 = arith.constant 10 : index
    %c8_449 = arith.constant 8 : index
    %276 = vector.load %arg14[%c10_448, %c8_449] : memref<100x16xf32, #tpu.memory_space<vmem>>, vector<4x8xf32>
    tpu.vector_store %arg14[%c10_448, %c8_449], %275 {strides = array<i32>} : memref<100x16xf32, #tpu.memory_space<vmem>>, vector<4x8xf32>,
    %c9_450 = arith.constant 9 : index
    %c0_451 = arith.constant 0 : index
    %277 = tpu.strided_load %arg17[%c9_450, %c0_451] {strides = array<i32: 2, 1>} : memref<128x8xf32, #tpu.memory_space<vmem>>, vector<4x8xf32>
    %c11 = arith.constant 11 : index
    %c0_452 = arith.constant 0 : index
    %278 = vector.load %arg14[%c11, %c0_452] : memref<100x16xf32, #tpu.memory_space<vmem>>, vector<4x8xf32>
    tpu.vector_store %arg14[%c11, %c0_452], %277 {strides = array<i32>} : memref<100x16xf32, #tpu.memory_space<vmem>>, vector<4x8xf32>,
    %c16_453 = arith.constant 16 : index
    %c0_454 = arith.constant 0 : index
    %279 = tpu.strided_load %arg17[%c16_453, %c0_454] {strides = array<i32: 2, 1>} : memref<128x8xf32, #tpu.memory_space<vmem>>, vector<4x8xf32>
    %c15 = arith.constant 15 : index
    %c8_455 = arith.constant 8 : index
    %280 = vector.load %arg14[%c15, %c8_455] : memref<100x16xf32, #tpu.memory_space<vmem>>, vector<4x8xf32>
    tpu.vector_store %arg14[%c15, %c8_455], %279 {strides = array<i32>} : memref<100x16xf32, #tpu.memory_space<vmem>>, vector<4x8xf32>,
    %c17 = arith.constant 17 : index
    %c0_456 = arith.constant 0 : index
    %281 = tpu.strided_load %arg17[%c17, %c0_456] {strides = array<i32: 2, 1>} : memref<128x8xf32, #tpu.memory_space<vmem>>, vector<4x8xf32>
    %c16_457 = arith.constant 16 : index
    %c0_458 = arith.constant 0 : index
    %282 = vector.load %arg14[%c16_457, %c0_458] : memref<100x16xf32, #tpu.memory_space<vmem>>, vector<4x8xf32>
    tpu.vector_store %arg14[%c16_457, %c0_458], %281 {strides = array<i32>} : memref<100x16xf32, #tpu.memory_space<vmem>>, vector<4x8xf32>,
    %c24_459 = arith.constant 24 : index
    %c0_460 = arith.constant 0 : index
    %283 = tpu.strided_load %arg17[%c24_459, %c0_460] {strides = array<i32: 2, 1>} : memref<128x8xf32, #tpu.memory_space<vmem>>, vector<4x8xf32>
    %c20 = arith.constant 20 : index
    %c8_461 = arith.constant 8 : index
    %284 = vector.load %arg14[%c20, %c8_461] : memref<100x16xf32, #tpu.memory_space<vmem>>, vector<4x8xf32>
    tpu.vector_store %arg14[%c20, %c8_461], %283 {strides = array<i32>} : memref<100x16xf32, #tpu.memory_space<vmem>>, vector<4x8xf32>,
    %c25 = arith.constant 25 : index
    %c0_462 = arith.constant 0 : index
    %285 = tpu.strided_load %arg17[%c25, %c0_462] {strides = array<i32: 2, 1>} : memref<128x8xf32, #tpu.memory_space<vmem>>, vector<4x8xf32>
    %c21 = arith.constant 21 : index
    %c0_463 = arith.constant 0 : index
    %286 = vector.load %arg14[%c21, %c0_463] : memref<100x16xf32, #tpu.memory_space<vmem>>, vector<4x8xf32>
    tpu.vector_store %arg14[%c21, %c0_463], %285 {strides = array<i32>} : memref<100x16xf32, #tpu.memory_space<vmem>>, vector<4x8xf32>,
    %c32_464 = arith.constant 32 : index
    %c0_465 = arith.constant 0 : index
    %287 = tpu.strided_load %arg17[%c32_464, %c0_465] {strides = array<i32: 2, 1>} : memref<128x8xf32, #tpu.memory_space<vmem>>, vector<4x8xf32>
    %c25_466 = arith.constant 25 : index
    %c8_467 = arith.constant 8 : index
    %288 = vector.load %arg14[%c25_466, %c8_467] : memref<100x16xf32, #tpu.memory_space<vmem>>, vector<4x8xf32>
    tpu.vector_store %arg14[%c25_466, %c8_467], %287 {strides = array<i32>} : memref<100x16xf32, #tpu.memory_space<vmem>>, vector<4x8xf32>,
    %c33 = arith.constant 33 : index
    %c0_468 = arith.constant 0 : index
    %289 = tpu.strided_load %arg17[%c33, %c0_468] {strides = array<i32: 2, 1>} : memref<128x8xf32, #tpu.memory_space<vmem>>, vector<4x8xf32>
    %c26 = arith.constant 26 : index
    %c0_469 = arith.constant 0 : index
    %290 = vector.load %arg14[%c26, %c0_469] : memref<100x16xf32, #tpu.memory_space<vmem>>, vector<4x8xf32>
    tpu.vector_store %arg14[%c26, %c0_469], %289 {strides = array<i32>} : memref<100x16xf32, #tpu.memory_space<vmem>>, vector<4x8xf32>,
    %c40_470 = arith.constant 40 : index
    %c0_471 = arith.constant 0 : index
    %291 = tpu.strided_load %arg17[%c40_470, %c0_471] {strides = array<i32: 2, 1>} : memref<128x8xf32, #tpu.memory_space<vmem>>, vector<4x8xf32>
    %c30 = arith.constant 30 : index
    %c8_472 = arith.constant 8 : index
    %292 = vector.load %arg14[%c30, %c8_472] : memref<100x16xf32, #tpu.memory_space<vmem>>, vector<4x8xf32>
    tpu.vector_store %arg14[%c30, %c8_472], %291 {strides = array<i32>} : memref<100x16xf32, #tpu.memory_space<vmem>>, vector<4x8xf32>,
    %c41 = arith.constant 41 : index
    %c0_473 = arith.constant 0 : index
    %293 = tpu.strided_load %arg17[%c41, %c0_473] {strides = array<i32: 2, 1>} : memref<128x8xf32, #tpu.memory_space<vmem>>, vector<4x8xf32>
    %c31 = arith.constant 31 : index
    %c0_474 = arith.constant 0 : index
    %294 = vector.load %arg14[%c31, %c0_474] : memref<100x16xf32, #tpu.memory_space<vmem>>, vector<4x8xf32>
    tpu.vector_store %arg14[%c31, %c0_474], %293 {strides = array<i32>} : memref<100x16xf32, #tpu.memory_space<vmem>>, vector<4x8xf32>,
    %c48_475 = arith.constant 48 : index
    %c0_476 = arith.constant 0 : index
    %295 = tpu.strided_load %arg17[%c48_475, %c0_476] {strides = array<i32: 2, 1>} : memref<128x8xf32, #tpu.memory_space<vmem>>, vector<4x8xf32>
    %c35 = arith.constant 35 : index
    %c8_477 = arith.constant 8 : index
    %296 = vector.load %arg14[%c35, %c8_477] : memref<100x16xf32, #tpu.memory_space<vmem>>, vector<4x8xf32>
    tpu.vector_store %arg14[%c35, %c8_477], %295 {strides = array<i32>} : memref<100x16xf32, #tpu.memory_space<vmem>>, vector<4x8xf32>,
    %c49 = arith.constant 49 : index
    %c0_478 = arith.constant 0 : index
    %297 = tpu.strided_load %arg17[%c49, %c0_478] {strides = array<i32: 2, 1>} : memref<128x8xf32, #tpu.memory_space<vmem>>, vector<4x8xf32>
    %c36_479 = arith.constant 36 : index
    %c0_480 = arith.constant 0 : index
    %298 = vector.load %arg14[%c36_479, %c0_480] : memref<100x16xf32, #tpu.memory_space<vmem>>, vector<4x8xf32>
    tpu.vector_store %arg14[%c36_479, %c0_480], %297 {strides = array<i32>} : memref<100x16xf32, #tpu.memory_space<vmem>>, vector<4x8xf32>,
    %c56_481 = arith.constant 56 : index
    %c0_482 = arith.constant 0 : index
    %299 = tpu.strided_load %arg17[%c56_481, %c0_482] {strides = array<i32: 2, 1>} : memref<128x8xf32, #tpu.memory_space<vmem>>, vector<4x8xf32>
    %c40_483 = arith.constant 40 : index
    %c8_484 = arith.constant 8 : index
    %300 = vector.load %arg14[%c40_483, %c8_484] : memref<100x16xf32, #tpu.memory_space<vmem>>, vector<4x8xf32>
    tpu.vector_store %arg14[%c40_483, %c8_484], %299 {strides = array<i32>} : memref<100x16xf32, #tpu.memory_space<vmem>>, vector<4x8xf32>,
    %c57 = arith.constant 57 : index
    %c0_485 = arith.constant 0 : index
    %301 = tpu.strided_load %arg17[%c57, %c0_485] {strides = array<i32: 2, 1>} : memref<128x8xf32, #tpu.memory_space<vmem>>, vector<4x8xf32>
    %c41_486 = arith.constant 41 : index
    %c0_487 = arith.constant 0 : index
    %302 = vector.load %arg14[%c41_486, %c0_487] : memref<100x16xf32, #tpu.memory_space<vmem>>, vector<4x8xf32>
    tpu.vector_store %arg14[%c41_486, %c0_487], %301 {strides = array<i32>} : memref<100x16xf32, #tpu.memory_space<vmem>>, vector<4x8xf32>,
    %c64_488 = arith.constant 64 : index
    %c0_489 = arith.constant 0 : index
    %303 = tpu.strided_load %arg17[%c64_488, %c0_489] {strides = array<i32: 2, 1>} : memref<128x8xf32, #tpu.memory_space<vmem>>, vector<4x8xf32>
    %c55_490 = arith.constant 55 : index
    %c8_491 = arith.constant 8 : index
    %304 = vector.load %arg14[%c55_490, %c8_491] : memref<100x16xf32, #tpu.memory_space<vmem>>, vector<4x8xf32>
    tpu.vector_store %arg14[%c55_490, %c8_491], %303 {strides = array<i32>} : memref<100x16xf32, #tpu.memory_space<vmem>>, vector<4x8xf32>,
    %c65 = arith.constant 65 : index
    %c0_492 = arith.constant 0 : index
    %305 = tpu.strided_load %arg17[%c65, %c0_492] {strides = array<i32: 2, 1>} : memref<128x8xf32, #tpu.memory_space<vmem>>, vector<4x8xf32>
    %c56_493 = arith.constant 56 : index
    %c0_494 = arith.constant 0 : index
    %306 = vector.load %arg14[%c56_493, %c0_494] : memref<100x16xf32, #tpu.memory_space<vmem>>, vector<4x8xf32>
    tpu.vector_store %arg14[%c56_493, %c0_494], %305 {strides = array<i32>} : memref<100x16xf32, #tpu.memory_space<vmem>>, vector<4x8xf32>,
    %c72_495 = arith.constant 72 : index
    %c0_496 = arith.constant 0 : index
    %307 = tpu.strided_load %arg17[%c72_495, %c0_496] {strides = array<i32: 2, 1>} : memref<128x8xf32, #tpu.memory_space<vmem>>, vector<4x8xf32>
    %c60 = arith.constant 60 : index
    %c8_497 = arith.constant 8 : index
    %308 = vector.load %arg14[%c60, %c8_497] : memref<100x16xf32, #tpu.memory_space<vmem>>, vector<4x8xf32>
    tpu.vector_store %arg14[%c60, %c8_497], %307 {strides = array<i32>} : memref<100x16xf32, #tpu.memory_space<vmem>>, vector<4x8xf32>,
    %c73_498 = arith.constant 73 : index
    %c0_499 = arith.constant 0 : index
    %309 = tpu.strided_load %arg17[%c73_498, %c0_499] {strides = array<i32: 2, 1>} : memref<128x8xf32, #tpu.memory_space<vmem>>, vector<4x8xf32>
    %c61 = arith.constant 61 : index
    %c0_500 = arith.constant 0 : index
    %310 = vector.load %arg14[%c61, %c0_500] : memref<100x16xf32, #tpu.memory_space<vmem>>, vector<4x8xf32>
    tpu.vector_store %arg14[%c61, %c0_500], %309 {strides = array<i32>} : memref<100x16xf32, #tpu.memory_space<vmem>>, vector<4x8xf32>,
    %c80_501 = arith.constant 80 : index
    %c0_502 = arith.constant 0 : index
    %311 = tpu.strided_load %arg17[%c80_501, %c0_502] {strides = array<i32: 2, 1>} : memref<128x8xf32, #tpu.memory_space<vmem>>, vector<4x8xf32>
    %c65_503 = arith.constant 65 : index
    %c8_504 = arith.constant 8 : index
    %312 = vector.load %arg14[%c65_503, %c8_504] : memref<100x16xf32, #tpu.memory_space<vmem>>, vector<4x8xf32>
    tpu.vector_store %arg14[%c65_503, %c8_504], %311 {strides = array<i32>} : memref<100x16xf32, #tpu.memory_space<vmem>>, vector<4x8xf32>,
    %c81_505 = arith.constant 81 : index
    %c0_506 = arith.constant 0 : index
    %313 = tpu.strided_load %arg17[%c81_505, %c0_506] {strides = array<i32: 2, 1>} : memref<128x8xf32, #tpu.memory_space<vmem>>, vector<4x8xf32>
    %c66 = arith.constant 66 : index
    %c0_507 = arith.constant 0 : index
    %314 = vector.load %arg14[%c66, %c0_507] : memref<100x16xf32, #tpu.memory_space<vmem>>, vector<4x8xf32>
    tpu.vector_store %arg14[%c66, %c0_507], %313 {strides = array<i32>} : memref<100x16xf32, #tpu.memory_space<vmem>>, vector<4x8xf32>,
    %c88_508 = arith.constant 88 : index
    %c0_509 = arith.constant 0 : index
    %315 = tpu.strided_load %arg17[%c88_508, %c0_509] {strides = array<i32: 2, 1>} : memref<128x8xf32, #tpu.memory_space<vmem>>, vector<4x8xf32>
    %c70 = arith.constant 70 : index
    %c8_510 = arith.constant 8 : index
    %316 = vector.load %arg14[%c70, %c8_510] : memref<100x16xf32, #tpu.memory_space<vmem>>, vector<4x8xf32>
    tpu.vector_store %arg14[%c70, %c8_510], %315 {strides = array<i32>} : memref<100x16xf32, #tpu.memory_space<vmem>>, vector<4x8xf32>,
    %c89 = arith.constant 89 : index
    %c0_511 = arith.constant 0 : index
    %317 = tpu.strided_load %arg17[%c89, %c0_511] {strides = array<i32: 2, 1>} : memref<128x8xf32, #tpu.memory_space<vmem>>, vector<4x8xf32>
    %c71 = arith.constant 71 : index
    %c0_512 = arith.constant 0 : index
    %318 = vector.load %arg14[%c71, %c0_512] : memref<100x16xf32, #tpu.memory_space<vmem>>, vector<4x8xf32>
    tpu.vector_store %arg14[%c71, %c0_512], %317 {strides = array<i32>} : memref<100x16xf32, #tpu.memory_space<vmem>>, vector<4x8xf32>,
    %c96_513 = arith.constant 96 : index
    %c0_514 = arith.constant 0 : index
    %319 = tpu.strided_load %arg17[%c96_513, %c0_514] {strides = array<i32: 2, 1>} : memref<128x8xf32, #tpu.memory_space<vmem>>, vector<4x8xf32>
    %c75 = arith.constant 75 : index
    %c8_515 = arith.constant 8 : index
    %320 = vector.load %arg14[%c75, %c8_515] : memref<100x16xf32, #tpu.memory_space<vmem>>, vector<4x8xf32>
    tpu.vector_store %arg14[%c75, %c8_515], %319 {strides = array<i32>} : memref<100x16xf32, #tpu.memory_space<vmem>>, vector<4x8xf32>,
    %c97 = arith.constant 97 : index
    %c0_516 = arith.constant 0 : index
    %321 = tpu.strided_load %arg17[%c97, %c0_516] {strides = array<i32: 2, 1>} : memref<128x8xf32, #tpu.memory_space<vmem>>, vector<4x8xf32>
    %c76 = arith.constant 76 : index
    %c0_517 = arith.constant 0 : index
    %322 = vector.load %arg14[%c76, %c0_517] : memref<100x16xf32, #tpu.memory_space<vmem>>, vector<4x8xf32>
    tpu.vector_store %arg14[%c76, %c0_517], %321 {strides = array<i32>} : memref<100x16xf32, #tpu.memory_space<vmem>>, vector<4x8xf32>,
    %c104_518 = arith.constant 104 : index
    %c0_519 = arith.constant 0 : index
    %323 = tpu.strided_load %arg17[%c104_518, %c0_519] {strides = array<i32: 2, 1>} : memref<128x8xf32, #tpu.memory_space<vmem>>, vector<4x8xf32>
    %c80_520 = arith.constant 80 : index
    %c8_521 = arith.constant 8 : index
    %324 = vector.load %arg14[%c80_520, %c8_521] : memref<100x16xf32, #tpu.memory_space<vmem>>, vector<4x8xf32>
    tpu.vector_store %arg14[%c80_520, %c8_521], %323 {strides = array<i32>} : memref<100x16xf32, #tpu.memory_space<vmem>>, vector<4x8xf32>,
    %c105 = arith.constant 105 : index
    %c0_522 = arith.constant 0 : index
    %325 = tpu.strided_load %arg17[%c105, %c0_522] {strides = array<i32: 2, 1>} : memref<128x8xf32, #tpu.memory_space<vmem>>, vector<4x8xf32>
    %c81_523 = arith.constant 81 : index
    %c0_524 = arith.constant 0 : index
    %326 = vector.load %arg14[%c81_523, %c0_524] : memref<100x16xf32, #tpu.memory_space<vmem>>, vector<4x8xf32>
    tpu.vector_store %arg14[%c81_523, %c0_524], %325 {strides = array<i32>} : memref<100x16xf32, #tpu.memory_space<vmem>>, vector<4x8xf32>,
    %c112_525 = arith.constant 112 : index
    %c0_526 = arith.constant 0 : index
    %327 = tpu.strided_load %arg17[%c112_525, %c0_526] {strides = array<i32: 2, 1>} : memref<128x8xf32, #tpu.memory_space<vmem>>, vector<4x8xf32>
    %c85 = arith.constant 85 : index
    %c8_527 = arith.constant 8 : index
    %328 = vector.load %arg14[%c85, %c8_527] : memref<100x16xf32, #tpu.memory_space<vmem>>, vector<4x8xf32>
    tpu.vector_store %arg14[%c85, %c8_527], %327 {strides = array<i32>} : memref<100x16xf32, #tpu.memory_space<vmem>>, vector<4x8xf32>,
    %c113 = arith.constant 113 : index
    %c0_528 = arith.constant 0 : index
    %329 = tpu.strided_load %arg17[%c113, %c0_528] {strides = array<i32: 2, 1>} : memref<128x8xf32, #tpu.memory_space<vmem>>, vector<4x8xf32>
    %c86 = arith.constant 86 : index
    %c0_529 = arith.constant 0 : index
    %330 = vector.load %arg14[%c86, %c0_529] : memref<100x16xf32, #tpu.memory_space<vmem>>, vector<4x8xf32>
    tpu.vector_store %arg14[%c86, %c0_529], %329 {strides = array<i32>} : memref<100x16xf32, #tpu.memory_space<vmem>>, vector<4x8xf32>,
    %c120_530 = arith.constant 120 : index
    %c0_531 = arith.constant 0 : index
    %331 = tpu.strided_load %arg17[%c120_530, %c0_531] {strides = array<i32: 2, 1>} : memref<128x8xf32, #tpu.memory_space<vmem>>, vector<4x8xf32>
    %c90_532 = arith.constant 90 : index
    %c8_533 = arith.constant 8 : index
    %332 = vector.load %arg14[%c90_532, %c8_533] : memref<100x16xf32, #tpu.memory_space<vmem>>, vector<4x8xf32>
    tpu.vector_store %arg14[%c90_532, %c8_533], %331 {strides = array<i32>} : memref<100x16xf32, #tpu.memory_space<vmem>>, vector<4x8xf32>,
    %c121 = arith.constant 121 : index
    %c0_534 = arith.constant 0 : index
    %333 = tpu.strided_load %arg17[%c121, %c0_534] {strides = array<i32: 2, 1>} : memref<128x8xf32, #tpu.memory_space<vmem>>, vector<4x8xf32>
    %c91_535 = arith.constant 91 : index
    %c0_536 = arith.constant 0 : index
    %334 = vector.load %arg14[%c91_535, %c0_536] : memref<100x16xf32, #tpu.memory_space<vmem>>, vector<4x8xf32>
    tpu.vector_store %arg14[%c91_535, %c0_536], %333 {strides = array<i32>} : memref<100x16xf32, #tpu.memory_space<vmem>>, vector<4x8xf32>,
    %c0_537 = arith.constant 0 : index
    %c0_538 = arith.constant 0 : index
    %335 = vector.load %arg14[%c0_537, %c0_538] : memref<100x16xf32, #tpu.memory_space<vmem>>, vector<4x16xf32>
    %c0_539 = arith.constant 0 : index
    %c0_540 = arith.constant 0 : index
    %336 = vector.load %arg11[%c0_539, %c0_540] : memref<32x128xf32, #tpu.memory_space<vmem>>, vector<4x16xf32>
    tpu.vector_store %arg11[%c0_539, %c0_540], %335 {strides = array<i32>} : memref<32x128xf32, #tpu.memory_space<vmem>>, vector<4x16xf32>,
    %c1_541 = arith.constant 1 : index
    %c0_542 = arith.constant 0 : index
    %337 = vector.load %arg14[%c1_541, %c0_542] : memref<100x16xf32, #tpu.memory_space<vmem>>, vector<4x16xf32>
    %c0_543 = arith.constant 0 : index
    %c16_544 = arith.constant 16 : index
    %338 = vector.load %arg11[%c0_543, %c16_544] : memref<32x128xf32, #tpu.memory_space<vmem>>, vector<4x16xf32>
    tpu.vector_store %arg11[%c0_543, %c16_544], %337 {strides = array<i32>} : memref<32x128xf32, #tpu.memory_space<vmem>>, vector<4x16xf32>,
    %c5_545 = arith.constant 5 : index
    %c0_546 = arith.constant 0 : index
    %339 = vector.load %arg14[%c5_545, %c0_546] : memref<100x16xf32, #tpu.memory_space<vmem>>, vector<4x16xf32>
    %c0_547 = arith.constant 0 : index
    %c32_548 = arith.constant 32 : index
    %340 = vector.load %arg11[%c0_547, %c32_548] : memref<32x128xf32, #tpu.memory_space<vmem>>, vector<4x16xf32>
    tpu.vector_store %arg11[%c0_547, %c32_548], %339 {strides = array<i32>} : memref<32x128xf32, #tpu.memory_space<vmem>>, vector<4x16xf32>,
    %c6_549 = arith.constant 6 : index
    %c0_550 = arith.constant 0 : index
    %341 = vector.load %arg14[%c6_549, %c0_550] : memref<100x16xf32, #tpu.memory_space<vmem>>, vector<4x16xf32>
    %c0_551 = arith.constant 0 : index
    %c48_552 = arith.constant 48 : index
    %342 = vector.load %arg11[%c0_551, %c48_552] : memref<32x128xf32, #tpu.memory_space<vmem>>, vector<4x16xf32>
    tpu.vector_store %arg11[%c0_551, %c48_552], %341 {strides = array<i32>} : memref<32x128xf32, #tpu.memory_space<vmem>>, vector<4x16xf32>,
    %c10_553 = arith.constant 10 : index
    %c0_554 = arith.constant 0 : index
    %343 = vector.load %arg14[%c10_553, %c0_554] : memref<100x16xf32, #tpu.memory_space<vmem>>, vector<4x16xf32>
    %c0_555 = arith.constant 0 : index
    %c64_556 = arith.constant 64 : index
    %344 = vector.load %arg11[%c0_555, %c64_556] : memref<32x128xf32, #tpu.memory_space<vmem>>, vector<4x16xf32>
    tpu.vector_store %arg11[%c0_555, %c64_556], %343 {strides = array<i32>} : memref<32x128xf32, #tpu.memory_space<vmem>>, vector<4x16xf32>,
    %c11_557 = arith.constant 11 : index
    %c0_558 = arith.constant 0 : index
    %345 = vector.load %arg14[%c11_557, %c0_558] : memref<100x16xf32, #tpu.memory_space<vmem>>, vector<4x16xf32>
    %c0_559 = arith.constant 0 : index
    %c80_560 = arith.constant 80 : index
    %346 = vector.load %arg11[%c0_559, %c80_560] : memref<32x128xf32, #tpu.memory_space<vmem>>, vector<4x16xf32>
    tpu.vector_store %arg11[%c0_559, %c80_560], %345 {strides = array<i32>} : memref<32x128xf32, #tpu.memory_space<vmem>>, vector<4x16xf32>,
    %c15_561 = arith.constant 15 : index
    %c0_562 = arith.constant 0 : index
    %347 = vector.load %arg14[%c15_561, %c0_562] : memref<100x16xf32, #tpu.memory_space<vmem>>, vector<4x16xf32>
    %c0_563 = arith.constant 0 : index
    %c96_564 = arith.constant 96 : index
    %348 = vector.load %arg11[%c0_563, %c96_564] : memref<32x128xf32, #tpu.memory_space<vmem>>, vector<4x16xf32>
    tpu.vector_store %arg11[%c0_563, %c96_564], %347 {strides = array<i32>} : memref<32x128xf32, #tpu.memory_space<vmem>>, vector<4x16xf32>,
    %c16_565 = arith.constant 16 : index
    %c0_566 = arith.constant 0 : index
    %349 = vector.load %arg14[%c16_565, %c0_566] : memref<100x16xf32, #tpu.memory_space<vmem>>, vector<4x16xf32>
    %c0_567 = arith.constant 0 : index
    %c112_568 = arith.constant 112 : index
    %350 = vector.load %arg11[%c0_567, %c112_568] : memref<32x128xf32, #tpu.memory_space<vmem>>, vector<4x16xf32>
    tpu.vector_store %arg11[%c0_567, %c112_568], %349 {strides = array<i32>} : memref<32x128xf32, #tpu.memory_space<vmem>>, vector<4x16xf32>,
    %c10_569 = arith.constant 10 : index
    %c0_570 = arith.constant 0 : index
    %351 = vector.load %arg14[%c10_569, %c0_570] : memref<100x16xf32, #tpu.memory_space<vmem>>, vector<4x16xf32>
    %c4_571 = arith.constant 4 : index
    %c0_572 = arith.constant 0 : index
    %352 = vector.load %arg11[%c4_571, %c0_572] : memref<32x128xf32, #tpu.memory_space<vmem>>, vector<4x16xf32>
    tpu.vector_store %arg11[%c4_571, %c0_572], %351 {strides = array<i32>} : memref<32x128xf32, #tpu.memory_space<vmem>>, vector<4x16xf32>,
    %c11_573 = arith.constant 11 : index
    %c0_574 = arith.constant 0 : index
    %353 = vector.load %arg14[%c11_573, %c0_574] : memref<100x16xf32, #tpu.memory_space<vmem>>, vector<4x16xf32>
    %c4_575 = arith.constant 4 : index
    %c16_576 = arith.constant 16 : index
    %354 = vector.load %arg11[%c4_575, %c16_576] : memref<32x128xf32, #tpu.memory_space<vmem>>, vector<4x16xf32>
    tpu.vector_store %arg11[%c4_575, %c16_576], %353 {strides = array<i32>} : memref<32x128xf32, #tpu.memory_space<vmem>>, vector<4x16xf32>,
    %c15_577 = arith.constant 15 : index
    %c0_578 = arith.constant 0 : index
    %355 = vector.load %arg14[%c15_577, %c0_578] : memref<100x16xf32, #tpu.memory_space<vmem>>, vector<4x16xf32>
    %c4_579 = arith.constant 4 : index
    %c32_580 = arith.constant 32 : index
    %356 = vector.load %arg11[%c4_579, %c32_580] : memref<32x128xf32, #tpu.memory_space<vmem>>, vector<4x16xf32>
    tpu.vector_store %arg11[%c4_579, %c32_580], %355 {strides = array<i32>} : memref<32x128xf32, #tpu.memory_space<vmem>>, vector<4x16xf32>,
    %c16_581 = arith.constant 16 : index
    %c0_582 = arith.constant 0 : index
    %357 = vector.load %arg14[%c16_581, %c0_582] : memref<100x16xf32, #tpu.memory_space<vmem>>, vector<4x16xf32>
    %c4_583 = arith.constant 4 : index
    %c48_584 = arith.constant 48 : index
    %358 = vector.load %arg11[%c4_583, %c48_584] : memref<32x128xf32, #tpu.memory_space<vmem>>, vector<4x16xf32>
    tpu.vector_store %arg11[%c4_583, %c48_584], %357 {strides = array<i32>} : memref<32x128xf32, #tpu.memory_space<vmem>>, vector<4x16xf32>,
    %c20_585 = arith.constant 20 : index
    %c0_586 = arith.constant 0 : index
    %359 = vector.load %arg14[%c20_585, %c0_586] : memref<100x16xf32, #tpu.memory_space<vmem>>, vector<4x16xf32>
    %c4_587 = arith.constant 4 : index
    %c64_588 = arith.constant 64 : index
    %360 = vector.load %arg11[%c4_587, %c64_588] : memref<32x128xf32, #tpu.memory_space<vmem>>, vector<4x16xf32>
    tpu.vector_store %arg11[%c4_587, %c64_588], %359 {strides = array<i32>} : memref<32x128xf32, #tpu.memory_space<vmem>>, vector<4x16xf32>,
    %c21_589 = arith.constant 21 : index
    %c0_590 = arith.constant 0 : index
    %361 = vector.load %arg14[%c21_589, %c0_590] : memref<100x16xf32, #tpu.memory_space<vmem>>, vector<4x16xf32>
    %c4_591 = arith.constant 4 : index
    %c80_592 = arith.constant 80 : index
    %362 = vector.load %arg11[%c4_591, %c80_592] : memref<32x128xf32, #tpu.memory_space<vmem>>, vector<4x16xf32>
    tpu.vector_store %arg11[%c4_591, %c80_592], %361 {strides = array<i32>} : memref<32x128xf32, #tpu.memory_space<vmem>>, vector<4x16xf32>,
    %c25_593 = arith.constant 25 : index
    %c0_594 = arith.constant 0 : index
    %363 = vector.load %arg14[%c25_593, %c0_594] : memref<100x16xf32, #tpu.memory_space<vmem>>, vector<4x16xf32>
    %c4_595 = arith.constant 4 : index
    %c96_596 = arith.constant 96 : index
    %364 = vector.load %arg11[%c4_595, %c96_596] : memref<32x128xf32, #tpu.memory_space<vmem>>, vector<4x16xf32>
    tpu.vector_store %arg11[%c4_595, %c96_596], %363 {strides = array<i32>} : memref<32x128xf32, #tpu.memory_space<vmem>>, vector<4x16xf32>,
    %c26_597 = arith.constant 26 : index
    %c0_598 = arith.constant 0 : index
    %365 = vector.load %arg14[%c26_597, %c0_598] : memref<100x16xf32, #tpu.memory_space<vmem>>, vector<4x16xf32>
    %c4_599 = arith.constant 4 : index
    %c112_600 = arith.constant 112 : index
    %366 = vector.load %arg11[%c4_599, %c112_600] : memref<32x128xf32, #tpu.memory_space<vmem>>, vector<4x16xf32>
    tpu.vector_store %arg11[%c4_599, %c112_600], %365 {strides = array<i32>} : memref<32x128xf32, #tpu.memory_space<vmem>>, vector<4x16xf32>,
    %c20_601 = arith.constant 20 : index
    %c0_602 = arith.constant 0 : index
    %367 = vector.load %arg14[%c20_601, %c0_602] : memref<100x16xf32, #tpu.memory_space<vmem>>, vector<4x16xf32>
    %c8_603 = arith.constant 8 : index
    %c0_604 = arith.constant 0 : index
    %368 = vector.load %arg11[%c8_603, %c0_604] : memref<32x128xf32, #tpu.memory_space<vmem>>, vector<4x16xf32>
    tpu.vector_store %arg11[%c8_603, %c0_604], %367 {strides = array<i32>} : memref<32x128xf32, #tpu.memory_space<vmem>>, vector<4x16xf32>,
    %c21_605 = arith.constant 21 : index
    %c0_606 = arith.constant 0 : index
    %369 = vector.load %arg14[%c21_605, %c0_606] : memref<100x16xf32, #tpu.memory_space<vmem>>, vector<4x16xf32>
    %c8_607 = arith.constant 8 : index
    %c16_608 = arith.constant 16 : index
    %370 = vector.load %arg11[%c8_607, %c16_608] : memref<32x128xf32, #tpu.memory_space<vmem>>, vector<4x16xf32>
    tpu.vector_store %arg11[%c8_607, %c16_608], %369 {strides = array<i32>} : memref<32x128xf32, #tpu.memory_space<vmem>>, vector<4x16xf32>,
    %c25_609 = arith.constant 25 : index
    %c0_610 = arith.constant 0 : index
    %371 = vector.load %arg14[%c25_609, %c0_610] : memref<100x16xf32, #tpu.memory_space<vmem>>, vector<4x16xf32>
    %c8_611 = arith.constant 8 : index
    %c32_612 = arith.constant 32 : index
    %372 = vector.load %arg11[%c8_611, %c32_612] : memref<32x128xf32, #tpu.memory_space<vmem>>, vector<4x16xf32>
    tpu.vector_store %arg11[%c8_611, %c32_612], %371 {strides = array<i32>} : memref<32x128xf32, #tpu.memory_space<vmem>>, vector<4x16xf32>,
    %c26_613 = arith.constant 26 : index
    %c0_614 = arith.constant 0 : index
    %373 = vector.load %arg14[%c26_613, %c0_614] : memref<100x16xf32, #tpu.memory_space<vmem>>, vector<4x16xf32>
    %c8_615 = arith.constant 8 : index
    %c48_616 = arith.constant 48 : index
    %374 = vector.load %arg11[%c8_615, %c48_616] : memref<32x128xf32, #tpu.memory_space<vmem>>, vector<4x16xf32>
    tpu.vector_store %arg11[%c8_615, %c48_616], %373 {strides = array<i32>} : memref<32x128xf32, #tpu.memory_space<vmem>>, vector<4x16xf32>,
    %c30_617 = arith.constant 30 : index
    %c0_618 = arith.constant 0 : index
    %375 = vector.load %arg14[%c30_617, %c0_618] : memref<100x16xf32, #tpu.memory_space<vmem>>, vector<4x16xf32>
    %c8_619 = arith.constant 8 : index
    %c64_620 = arith.constant 64 : index
    %376 = vector.load %arg11[%c8_619, %c64_620] : memref<32x128xf32, #tpu.memory_space<vmem>>, vector<4x16xf32>
    tpu.vector_store %arg11[%c8_619, %c64_620], %375 {strides = array<i32>} : memref<32x128xf32, #tpu.memory_space<vmem>>, vector<4x16xf32>,
    %c31_621 = arith.constant 31 : index
    %c0_622 = arith.constant 0 : index
    %377 = vector.load %arg14[%c31_621, %c0_622] : memref<100x16xf32, #tpu.memory_space<vmem>>, vector<4x16xf32>
    %c8_623 = arith.constant 8 : index
    %c80_624 = arith.constant 80 : index
    %378 = vector.load %arg11[%c8_623, %c80_624] : memref<32x128xf32, #tpu.memory_space<vmem>>, vector<4x16xf32>
    tpu.vector_store %arg11[%c8_623, %c80_624], %377 {strides = array<i32>} : memref<32x128xf32, #tpu.memory_space<vmem>>, vector<4x16xf32>,
    %c35_625 = arith.constant 35 : index
    %c0_626 = arith.constant 0 : index
    %379 = vector.load %arg14[%c35_625, %c0_626] : memref<100x16xf32, #tpu.memory_space<vmem>>, vector<4x16xf32>
    %c8_627 = arith.constant 8 : index
    %c96_628 = arith.constant 96 : index
    %380 = vector.load %arg11[%c8_627, %c96_628] : memref<32x128xf32, #tpu.memory_space<vmem>>, vector<4x16xf32>
    tpu.vector_store %arg11[%c8_627, %c96_628], %379 {strides = array<i32>} : memref<32x128xf32, #tpu.memory_space<vmem>>, vector<4x16xf32>,
    %c36_629 = arith.constant 36 : index
    %c0_630 = arith.constant 0 : index
    %381 = vector.load %arg14[%c36_629, %c0_630] : memref<100x16xf32, #tpu.memory_space<vmem>>, vector<4x16xf32>
    %c8_631 = arith.constant 8 : index
    %c112_632 = arith.constant 112 : index
    %382 = vector.load %arg11[%c8_631, %c112_632] : memref<32x128xf32, #tpu.memory_space<vmem>>, vector<4x16xf32>
    tpu.vector_store %arg11[%c8_631, %c112_632], %381 {strides = array<i32>} : memref<32x128xf32, #tpu.memory_space<vmem>>, vector<4x16xf32>,
    %c30_633 = arith.constant 30 : index
    %c0_634 = arith.constant 0 : index
    %383 = vector.load %arg14[%c30_633, %c0_634] : memref<100x16xf32, #tpu.memory_space<vmem>>, vector<4x16xf32>
    %c12_635 = arith.constant 12 : index
    %c0_636 = arith.constant 0 : index
    %384 = vector.load %arg11[%c12_635, %c0_636] : memref<32x128xf32, #tpu.memory_space<vmem>>, vector<4x16xf32>
    tpu.vector_store %arg11[%c12_635, %c0_636], %383 {strides = array<i32>} : memref<32x128xf32, #tpu.memory_space<vmem>>, vector<4x16xf32>,
    %c31_637 = arith.constant 31 : index
    %c0_638 = arith.constant 0 : index
    %385 = vector.load %arg14[%c31_637, %c0_638] : memref<100x16xf32, #tpu.memory_space<vmem>>, vector<4x16xf32>
    %c12_639 = arith.constant 12 : index
    %c16_640 = arith.constant 16 : index
    %386 = vector.load %arg11[%c12_639, %c16_640] : memref<32x128xf32, #tpu.memory_space<vmem>>, vector<4x16xf32>
    tpu.vector_store %arg11[%c12_639, %c16_640], %385 {strides = array<i32>} : memref<32x128xf32, #tpu.memory_space<vmem>>, vector<4x16xf32>,
    %c35_641 = arith.constant 35 : index
    %c0_642 = arith.constant 0 : index
    %387 = vector.load %arg14[%c35_641, %c0_642] : memref<100x16xf32, #tpu.memory_space<vmem>>, vector<4x16xf32>
    %c12_643 = arith.constant 12 : index
    %c32_644 = arith.constant 32 : index
    %388 = vector.load %arg11[%c12_643, %c32_644] : memref<32x128xf32, #tpu.memory_space<vmem>>, vector<4x16xf32>
    tpu.vector_store %arg11[%c12_643, %c32_644], %387 {strides = array<i32>} : memref<32x128xf32, #tpu.memory_space<vmem>>, vector<4x16xf32>,
    %c36_645 = arith.constant 36 : index
    %c0_646 = arith.constant 0 : index
    %389 = vector.load %arg14[%c36_645, %c0_646] : memref<100x16xf32, #tpu.memory_space<vmem>>, vector<4x16xf32>
    %c12_647 = arith.constant 12 : index
    %c48_648 = arith.constant 48 : index
    %390 = vector.load %arg11[%c12_647, %c48_648] : memref<32x128xf32, #tpu.memory_space<vmem>>, vector<4x16xf32>
    tpu.vector_store %arg11[%c12_647, %c48_648], %389 {strides = array<i32>} : memref<32x128xf32, #tpu.memory_space<vmem>>, vector<4x16xf32>,
    %c40_649 = arith.constant 40 : index
    %c0_650 = arith.constant 0 : index
    %391 = vector.load %arg14[%c40_649, %c0_650] : memref<100x16xf32, #tpu.memory_space<vmem>>, vector<4x16xf32>
    %c12_651 = arith.constant 12 : index
    %c64_652 = arith.constant 64 : index
    %392 = vector.load %arg11[%c12_651, %c64_652] : memref<32x128xf32, #tpu.memory_space<vmem>>, vector<4x16xf32>
    tpu.vector_store %arg11[%c12_651, %c64_652], %391 {strides = array<i32>} : memref<32x128xf32, #tpu.memory_space<vmem>>, vector<4x16xf32>,
    %c41_653 = arith.constant 41 : index
    %c0_654 = arith.constant 0 : index
    %393 = vector.load %arg14[%c41_653, %c0_654] : memref<100x16xf32, #tpu.memory_space<vmem>>, vector<4x16xf32>
    %c12_655 = arith.constant 12 : index
    %c80_656 = arith.constant 80 : index
    %394 = vector.load %arg11[%c12_655, %c80_656] : memref<32x128xf32, #tpu.memory_space<vmem>>, vector<4x16xf32>
    tpu.vector_store %arg11[%c12_655, %c80_656], %393 {strides = array<i32>} : memref<32x128xf32, #tpu.memory_space<vmem>>, vector<4x16xf32>,
    %c45_657 = arith.constant 45 : index
    %c0_658 = arith.constant 0 : index
    %395 = vector.load %arg14[%c45_657, %c0_658] : memref<100x16xf32, #tpu.memory_space<vmem>>, vector<4x16xf32>
    %c12_659 = arith.constant 12 : index
    %c96_660 = arith.constant 96 : index
    %396 = vector.load %arg11[%c12_659, %c96_660] : memref<32x128xf32, #tpu.memory_space<vmem>>, vector<4x16xf32>
    tpu.vector_store %arg11[%c12_659, %c96_660], %395 {strides = array<i32>} : memref<32x128xf32, #tpu.memory_space<vmem>>, vector<4x16xf32>,
    %c46_661 = arith.constant 46 : index
    %c0_662 = arith.constant 0 : index
    %397 = vector.load %arg14[%c46_661, %c0_662] : memref<100x16xf32, #tpu.memory_space<vmem>>, vector<4x16xf32>
    %c12_663 = arith.constant 12 : index
    %c112_664 = arith.constant 112 : index
    %398 = vector.load %arg11[%c12_663, %c112_664] : memref<32x128xf32, #tpu.memory_space<vmem>>, vector<4x16xf32>
    tpu.vector_store %arg11[%c12_663, %c112_664], %397 {strides = array<i32>} : memref<32x128xf32, #tpu.memory_space<vmem>>, vector<4x16xf32>,
    %c50 = arith.constant 50 : index
    %c0_665 = arith.constant 0 : index
    %399 = vector.load %arg14[%c50, %c0_665] : memref<100x16xf32, #tpu.memory_space<vmem>>, vector<4x16xf32>
    %c16_666 = arith.constant 16 : index
    %c0_667 = arith.constant 0 : index
    %400 = vector.load %arg11[%c16_666, %c0_667] : memref<32x128xf32, #tpu.memory_space<vmem>>, vector<4x16xf32>
    tpu.vector_store %arg11[%c16_666, %c0_667], %399 {strides = array<i32>} : memref<32x128xf32, #tpu.memory_space<vmem>>, vector<4x16xf32>,
    %c51 = arith.constant 51 : index
    %c0_668 = arith.constant 0 : index
    %401 = vector.load %arg14[%c51, %c0_668] : memref<100x16xf32, #tpu.memory_space<vmem>>, vector<4x16xf32>
    %c16_669 = arith.constant 16 : index
    %c16_670 = arith.constant 16 : index
    %402 = vector.load %arg11[%c16_669, %c16_670] : memref<32x128xf32, #tpu.memory_space<vmem>>, vector<4x16xf32>
    tpu.vector_store %arg11[%c16_669, %c16_670], %401 {strides = array<i32>} : memref<32x128xf32, #tpu.memory_space<vmem>>, vector<4x16xf32>,
    %c55_671 = arith.constant 55 : index
    %c0_672 = arith.constant 0 : index
    %403 = vector.load %arg14[%c55_671, %c0_672] : memref<100x16xf32, #tpu.memory_space<vmem>>, vector<4x16xf32>
    %c16_673 = arith.constant 16 : index
    %c32_674 = arith.constant 32 : index
    %404 = vector.load %arg11[%c16_673, %c32_674] : memref<32x128xf32, #tpu.memory_space<vmem>>, vector<4x16xf32>
    tpu.vector_store %arg11[%c16_673, %c32_674], %403 {strides = array<i32>} : memref<32x128xf32, #tpu.memory_space<vmem>>, vector<4x16xf32>,
    %c56_675 = arith.constant 56 : index
    %c0_676 = arith.constant 0 : index
    %405 = vector.load %arg14[%c56_675, %c0_676] : memref<100x16xf32, #tpu.memory_space<vmem>>, vector<4x16xf32>
    %c16_677 = arith.constant 16 : index
    %c48_678 = arith.constant 48 : index
    %406 = vector.load %arg11[%c16_677, %c48_678] : memref<32x128xf32, #tpu.memory_space<vmem>>, vector<4x16xf32>
    tpu.vector_store %arg11[%c16_677, %c48_678], %405 {strides = array<i32>} : memref<32x128xf32, #tpu.memory_space<vmem>>, vector<4x16xf32>,
    %c60_679 = arith.constant 60 : index
    %c0_680 = arith.constant 0 : index
    %407 = vector.load %arg14[%c60_679, %c0_680] : memref<100x16xf32, #tpu.memory_space<vmem>>, vector<4x16xf32>
    %c16_681 = arith.constant 16 : index
    %c64_682 = arith.constant 64 : index
    %408 = vector.load %arg11[%c16_681, %c64_682] : memref<32x128xf32, #tpu.memory_space<vmem>>, vector<4x16xf32>
    tpu.vector_store %arg11[%c16_681, %c64_682], %407 {strides = array<i32>} : memref<32x128xf32, #tpu.memory_space<vmem>>, vector<4x16xf32>,
    %c61_683 = arith.constant 61 : index
    %c0_684 = arith.constant 0 : index
    %409 = vector.load %arg14[%c61_683, %c0_684] : memref<100x16xf32, #tpu.memory_space<vmem>>, vector<4x16xf32>
    %c16_685 = arith.constant 16 : index
    %c80_686 = arith.constant 80 : index
    %410 = vector.load %arg11[%c16_685, %c80_686] : memref<32x128xf32, #tpu.memory_space<vmem>>, vector<4x16xf32>
    tpu.vector_store %arg11[%c16_685, %c80_686], %409 {strides = array<i32>} : memref<32x128xf32, #tpu.memory_space<vmem>>, vector<4x16xf32>,
    %c65_687 = arith.constant 65 : index
    %c0_688 = arith.constant 0 : index
    %411 = vector.load %arg14[%c65_687, %c0_688] : memref<100x16xf32, #tpu.memory_space<vmem>>, vector<4x16xf32>
    %c16_689 = arith.constant 16 : index
    %c96_690 = arith.constant 96 : index
    %412 = vector.load %arg11[%c16_689, %c96_690] : memref<32x128xf32, #tpu.memory_space<vmem>>, vector<4x16xf32>
    tpu.vector_store %arg11[%c16_689, %c96_690], %411 {strides = array<i32>} : memref<32x128xf32, #tpu.memory_space<vmem>>, vector<4x16xf32>,
    %c66_691 = arith.constant 66 : index
    %c0_692 = arith.constant 0 : index
    %413 = vector.load %arg14[%c66_691, %c0_692] : memref<100x16xf32, #tpu.memory_space<vmem>>, vector<4x16xf32>
    %c16_693 = arith.constant 16 : index
    %c112_694 = arith.constant 112 : index
    %414 = vector.load %arg11[%c16_693, %c112_694] : memref<32x128xf32, #tpu.memory_space<vmem>>, vector<4x16xf32>
    tpu.vector_store %arg11[%c16_693, %c112_694], %413 {strides = array<i32>} : memref<32x128xf32, #tpu.memory_space<vmem>>, vector<4x16xf32>,
    %c60_695 = arith.constant 60 : index
    %c0_696 = arith.constant 0 : index
    %415 = vector.load %arg14[%c60_695, %c0_696] : memref<100x16xf32, #tpu.memory_space<vmem>>, vector<4x16xf32>
    %c20_697 = arith.constant 20 : index
    %c0_698 = arith.constant 0 : index
    %416 = vector.load %arg11[%c20_697, %c0_698] : memref<32x128xf32, #tpu.memory_space<vmem>>, vector<4x16xf32>
    tpu.vector_store %arg11[%c20_697, %c0_698], %415 {strides = array<i32>} : memref<32x128xf32, #tpu.memory_space<vmem>>, vector<4x16xf32>,
    %c61_699 = arith.constant 61 : index
    %c0_700 = arith.constant 0 : index
    %417 = vector.load %arg14[%c61_699, %c0_700] : memref<100x16xf32, #tpu.memory_space<vmem>>, vector<4x16xf32>
    %c20_701 = arith.constant 20 : index
    %c16_702 = arith.constant 16 : index
    %418 = vector.load %arg11[%c20_701, %c16_702] : memref<32x128xf32, #tpu.memory_space<vmem>>, vector<4x16xf32>
    tpu.vector_store %arg11[%c20_701, %c16_702], %417 {strides = array<i32>} : memref<32x128xf32, #tpu.memory_space<vmem>>, vector<4x16xf32>,
    %c65_703 = arith.constant 65 : index
    %c0_704 = arith.constant 0 : index
    %419 = vector.load %arg14[%c65_703, %c0_704] : memref<100x16xf32, #tpu.memory_space<vmem>>, vector<4x16xf32>
    %c20_705 = arith.constant 20 : index
    %c32_706 = arith.constant 32 : index
    %420 = vector.load %arg11[%c20_705, %c32_706] : memref<32x128xf32, #tpu.memory_space<vmem>>, vector<4x16xf32>
    tpu.vector_store %arg11[%c20_705, %c32_706], %419 {strides = array<i32>} : memref<32x128xf32, #tpu.memory_space<vmem>>, vector<4x16xf32>,
    %c66_707 = arith.constant 66 : index
    %c0_708 = arith.constant 0 : index
    %421 = vector.load %arg14[%c66_707, %c0_708] : memref<100x16xf32, #tpu.memory_space<vmem>>, vector<4x16xf32>
    %c20_709 = arith.constant 20 : index
    %c48_710 = arith.constant 48 : index
    %422 = vector.load %arg11[%c20_709, %c48_710] : memref<32x128xf32, #tpu.memory_space<vmem>>, vector<4x16xf32>
    tpu.vector_store %arg11[%c20_709, %c48_710], %421 {strides = array<i32>} : memref<32x128xf32, #tpu.memory_space<vmem>>, vector<4x16xf32>,
    %c70_711 = arith.constant 70 : index
    %c0_712 = arith.constant 0 : index
    %423 = vector.load %arg14[%c70_711, %c0_712] : memref<100x16xf32, #tpu.memory_space<vmem>>, vector<4x16xf32>
    %c20_713 = arith.constant 20 : index
    %c64_714 = arith.constant 64 : index
    %424 = vector.load %arg11[%c20_713, %c64_714] : memref<32x128xf32, #tpu.memory_space<vmem>>, vector<4x16xf32>
    tpu.vector_store %arg11[%c20_713, %c64_714], %423 {strides = array<i32>} : memref<32x128xf32, #tpu.memory_space<vmem>>, vector<4x16xf32>,
    %c71_715 = arith.constant 71 : index
    %c0_716 = arith.constant 0 : index
    %425 = vector.load %arg14[%c71_715, %c0_716] : memref<100x16xf32, #tpu.memory_space<vmem>>, vector<4x16xf32>
    %c20_717 = arith.constant 20 : index
    %c80_718 = arith.constant 80 : index
    %426 = vector.load %arg11[%c20_717, %c80_718] : memref<32x128xf32, #tpu.memory_space<vmem>>, vector<4x16xf32>
    tpu.vector_store %arg11[%c20_717, %c80_718], %425 {strides = array<i32>} : memref<32x128xf32, #tpu.memory_space<vmem>>, vector<4x16xf32>,
    %c75_719 = arith.constant 75 : index
    %c0_720 = arith.constant 0 : index
    %427 = vector.load %arg14[%c75_719, %c0_720] : memref<100x16xf32, #tpu.memory_space<vmem>>, vector<4x16xf32>
    %c20_721 = arith.constant 20 : index
    %c96_722 = arith.constant 96 : index
    %428 = vector.load %arg11[%c20_721, %c96_722] : memref<32x128xf32, #tpu.memory_space<vmem>>, vector<4x16xf32>
    tpu.vector_store %arg11[%c20_721, %c96_722], %427 {strides = array<i32>} : memref<32x128xf32, #tpu.memory_space<vmem>>, vector<4x16xf32>,
    %c76_723 = arith.constant 76 : index
    %c0_724 = arith.constant 0 : index
    %429 = vector.load %arg14[%c76_723, %c0_724] : memref<100x16xf32, #tpu.memory_space<vmem>>, vector<4x16xf32>
    %c20_725 = arith.constant 20 : index
    %c112_726 = arith.constant 112 : index
    %430 = vector.load %arg11[%c20_725, %c112_726] : memref<32x128xf32, #tpu.memory_space<vmem>>, vector<4x16xf32>
    tpu.vector_store %arg11[%c20_725, %c112_726], %429 {strides = array<i32>} : memref<32x128xf32, #tpu.memory_space<vmem>>, vector<4x16xf32>,
    %c70_727 = arith.constant 70 : index
    %c0_728 = arith.constant 0 : index
    %431 = vector.load %arg14[%c70_727, %c0_728] : memref<100x16xf32, #tpu.memory_space<vmem>>, vector<4x16xf32>
    %c24_729 = arith.constant 24 : index
    %c0_730 = arith.constant 0 : index
    %432 = vector.load %arg11[%c24_729, %c0_730] : memref<32x128xf32, #tpu.memory_space<vmem>>, vector<4x16xf32>
    tpu.vector_store %arg11[%c24_729, %c0_730], %431 {strides = array<i32>} : memref<32x128xf32, #tpu.memory_space<vmem>>, vector<4x16xf32>,
    %c71_731 = arith.constant 71 : index
    %c0_732 = arith.constant 0 : index
    %433 = vector.load %arg14[%c71_731, %c0_732] : memref<100x16xf32, #tpu.memory_space<vmem>>, vector<4x16xf32>
    %c24_733 = arith.constant 24 : index
    %c16_734 = arith.constant 16 : index
    %434 = vector.load %arg11[%c24_733, %c16_734] : memref<32x128xf32, #tpu.memory_space<vmem>>, vector<4x16xf32>
    tpu.vector_store %arg11[%c24_733, %c16_734], %433 {strides = array<i32>} : memref<32x128xf32, #tpu.memory_space<vmem>>, vector<4x16xf32>,
    %c75_735 = arith.constant 75 : index
    %c0_736 = arith.constant 0 : index
    %435 = vector.load %arg14[%c75_735, %c0_736] : memref<100x16xf32, #tpu.memory_space<vmem>>, vector<4x16xf32>
    %c24_737 = arith.constant 24 : index
    %c32_738 = arith.constant 32 : index
    %436 = vector.load %arg11[%c24_737, %c32_738] : memref<32x128xf32, #tpu.memory_space<vmem>>, vector<4x16xf32>
    tpu.vector_store %arg11[%c24_737, %c32_738], %435 {strides = array<i32>} : memref<32x128xf32, #tpu.memory_space<vmem>>, vector<4x16xf32>,
    %c76_739 = arith.constant 76 : index
    %c0_740 = arith.constant 0 : index
    %437 = vector.load %arg14[%c76_739, %c0_740] : memref<100x16xf32, #tpu.memory_space<vmem>>, vector<4x16xf32>
    %c24_741 = arith.constant 24 : index
    %c48_742 = arith.constant 48 : index
    %438 = vector.load %arg11[%c24_741, %c48_742] : memref<32x128xf32, #tpu.memory_space<vmem>>, vector<4x16xf32>
    tpu.vector_store %arg11[%c24_741, %c48_742], %437 {strides = array<i32>} : memref<32x128xf32, #tpu.memory_space<vmem>>, vector<4x16xf32>,
    %c80_743 = arith.constant 80 : index
    %c0_744 = arith.constant 0 : index
    %439 = vector.load %arg14[%c80_743, %c0_744] : memref<100x16xf32, #tpu.memory_space<vmem>>, vector<4x16xf32>
    %c24_745 = arith.constant 24 : index
    %c64_746 = arith.constant 64 : index
    %440 = vector.load %arg11[%c24_745, %c64_746] : memref<32x128xf32, #tpu.memory_space<vmem>>, vector<4x16xf32>
    tpu.vector_store %arg11[%c24_745, %c64_746], %439 {strides = array<i32>} : memref<32x128xf32, #tpu.memory_space<vmem>>, vector<4x16xf32>,
    %c81_747 = arith.constant 81 : index
    %c0_748 = arith.constant 0 : index
    %441 = vector.load %arg14[%c81_747, %c0_748] : memref<100x16xf32, #tpu.memory_space<vmem>>, vector<4x16xf32>
    %c24_749 = arith.constant 24 : index
    %c80_750 = arith.constant 80 : index
    %442 = vector.load %arg11[%c24_749, %c80_750] : memref<32x128xf32, #tpu.memory_space<vmem>>, vector<4x16xf32>
    tpu.vector_store %arg11[%c24_749, %c80_750], %441 {strides = array<i32>} : memref<32x128xf32, #tpu.memory_space<vmem>>, vector<4x16xf32>,
    %c85_751 = arith.constant 85 : index
    %c0_752 = arith.constant 0 : index
    %443 = vector.load %arg14[%c85_751, %c0_752] : memref<100x16xf32, #tpu.memory_space<vmem>>, vector<4x16xf32>
    %c24_753 = arith.constant 24 : index
    %c96_754 = arith.constant 96 : index
    %444 = vector.load %arg11[%c24_753, %c96_754] : memref<32x128xf32, #tpu.memory_space<vmem>>, vector<4x16xf32>
    tpu.vector_store %arg11[%c24_753, %c96_754], %443 {strides = array<i32>} : memref<32x128xf32, #tpu.memory_space<vmem>>, vector<4x16xf32>,
    %c86_755 = arith.constant 86 : index
    %c0_756 = arith.constant 0 : index
    %445 = vector.load %arg14[%c86_755, %c0_756] : memref<100x16xf32, #tpu.memory_space<vmem>>, vector<4x16xf32>
    %c24_757 = arith.constant 24 : index
    %c112_758 = arith.constant 112 : index
    %446 = vector.load %arg11[%c24_757, %c112_758] : memref<32x128xf32, #tpu.memory_space<vmem>>, vector<4x16xf32>
    tpu.vector_store %arg11[%c24_757, %c112_758], %445 {strides = array<i32>} : memref<32x128xf32, #tpu.memory_space<vmem>>, vector<4x16xf32>,
    %c80_759 = arith.constant 80 : index
    %c0_760 = arith.constant 0 : index
    %447 = vector.load %arg14[%c80_759, %c0_760] : memref<100x16xf32, #tpu.memory_space<vmem>>, vector<4x16xf32>
    %c28_761 = arith.constant 28 : index
    %c0_762 = arith.constant 0 : index
    %448 = vector.load %arg11[%c28_761, %c0_762] : memref<32x128xf32, #tpu.memory_space<vmem>>, vector<4x16xf32>
    tpu.vector_store %arg11[%c28_761, %c0_762], %447 {strides = array<i32>} : memref<32x128xf32, #tpu.memory_space<vmem>>, vector<4x16xf32>,
    %c81_763 = arith.constant 81 : index
    %c0_764 = arith.constant 0 : index
    %449 = vector.load %arg14[%c81_763, %c0_764] : memref<100x16xf32, #tpu.memory_space<vmem>>, vector<4x16xf32>
    %c28_765 = arith.constant 28 : index
    %c16_766 = arith.constant 16 : index
    %450 = vector.load %arg11[%c28_765, %c16_766] : memref<32x128xf32, #tpu.memory_space<vmem>>, vector<4x16xf32>
    tpu.vector_store %arg11[%c28_765, %c16_766], %449 {strides = array<i32>} : memref<32x128xf32, #tpu.memory_space<vmem>>, vector<4x16xf32>,
    %c85_767 = arith.constant 85 : index
    %c0_768 = arith.constant 0 : index
    %451 = vector.load %arg14[%c85_767, %c0_768] : memref<100x16xf32, #tpu.memory_space<vmem>>, vector<4x16xf32>
    %c28_769 = arith.constant 28 : index
    %c32_770 = arith.constant 32 : index
    %452 = vector.load %arg11[%c28_769, %c32_770] : memref<32x128xf32, #tpu.memory_space<vmem>>, vector<4x16xf32>
    tpu.vector_store %arg11[%c28_769, %c32_770], %451 {strides = array<i32>} : memref<32x128xf32, #tpu.memory_space<vmem>>, vector<4x16xf32>,
    %c86_771 = arith.constant 86 : index
    %c0_772 = arith.constant 0 : index
    %453 = vector.load %arg14[%c86_771, %c0_772] : memref<100x16xf32, #tpu.memory_space<vmem>>, vector<4x16xf32>
    %c28_773 = arith.constant 28 : index
    %c48_774 = arith.constant 48 : index
    %454 = vector.load %arg11[%c28_773, %c48_774] : memref<32x128xf32, #tpu.memory_space<vmem>>, vector<4x16xf32>
    tpu.vector_store %arg11[%c28_773, %c48_774], %453 {strides = array<i32>} : memref<32x128xf32, #tpu.memory_space<vmem>>, vector<4x16xf32>,
    %c90_775 = arith.constant 90 : index
    %c0_776 = arith.constant 0 : index
    %455 = vector.load %arg14[%c90_775, %c0_776] : memref<100x16xf32, #tpu.memory_space<vmem>>, vector<4x16xf32>
    %c28_777 = arith.constant 28 : index
    %c64_778 = arith.constant 64 : index
    %456 = vector.load %arg11[%c28_777, %c64_778] : memref<32x128xf32, #tpu.memory_space<vmem>>, vector<4x16xf32>
    tpu.vector_store %arg11[%c28_777, %c64_778], %455 {strides = array<i32>} : memref<32x128xf32, #tpu.memory_space<vmem>>, vector<4x16xf32>,
    %c91_779 = arith.constant 91 : index
    %c0_780 = arith.constant 0 : index
    %457 = vector.load %arg14[%c91_779, %c0_780] : memref<100x16xf32, #tpu.memory_space<vmem>>, vector<4x16xf32>
    %c28_781 = arith.constant 28 : index
    %c80_782 = arith.constant 80 : index
    %458 = vector.load %arg11[%c28_781, %c80_782] : memref<32x128xf32, #tpu.memory_space<vmem>>, vector<4x16xf32>
    tpu.vector_store %arg11[%c28_781, %c80_782], %457 {strides = array<i32>} : memref<32x128xf32, #tpu.memory_space<vmem>>, vector<4x16xf32>,
    %c95 = arith.constant 95 : index
    %c0_783 = arith.constant 0 : index
    %459 = vector.load %arg14[%c95, %c0_783] : memref<100x16xf32, #tpu.memory_space<vmem>>, vector<4x16xf32>
    %c28_784 = arith.constant 28 : index
    %c96_785 = arith.constant 96 : index
    %460 = vector.load %arg11[%c28_784, %c96_785] : memref<32x128xf32, #tpu.memory_space<vmem>>, vector<4x16xf32>
    tpu.vector_store %arg11[%c28_784, %c96_785], %459 {strides = array<i32>} : memref<32x128xf32, #tpu.memory_space<vmem>>, vector<4x16xf32>,
    %c96_786 = arith.constant 96 : index
    %c0_787 = arith.constant 0 : index
    %461 = vector.load %arg14[%c96_786, %c0_787] : memref<100x16xf32, #tpu.memory_space<vmem>>, vector<4x16xf32>
    %c28_788 = arith.constant 28 : index
    %c112_789 = arith.constant 112 : index
    %462 = vector.load %arg11[%c28_788, %c112_789] : memref<32x128xf32, #tpu.memory_space<vmem>>, vector<4x16xf32>
    tpu.vector_store %arg11[%c28_788, %c112_789], %461 {strides = array<i32>} : memref<32x128xf32, #tpu.memory_space<vmem>>, vector<4x16xf32>,
    %c0_790 = arith.constant 0 : index
    %c0_791 = arith.constant 0 : index
    %463 = vector.load %arg11[%c0_790, %c0_791] : memref<32x128xf32, #tpu.memory_space<vmem>>, vector<32x128xf32>
    %c0_792 = arith.constant 0 : index
    %c0_793 = arith.constant 0 : index
    %464 = vector.load %arg2[%c0_792, %c0_793] : memref<128x16xf32, #tpu.memory_space<vmem>>, vector<128x16xf32>
    %cst_794 = arith.constant dense<0.000000e+00> : vector<32x16xf32>
    %465 = tpu.matmul %463, %464, %cst_794 {dimension_numbers = #tpu.dot_dimension_numbers<[1], [0], [0], [1], [0, 0, 1, 1], [], []>} : vector<32x128xf32>, vector<128x16xf32>, vector<32x16xf32> -> vector<32x16xf32>
    %c0_795 = arith.constant 0 : index
    %c0_796 = arith.constant 0 : index
    %466 = vector.load %arg3[%c0_795, %c0_796] : memref<1x16xf32, #tpu.memory_space<vmem>>, vector<1x16xf32>
    %c0_797 = arith.constant 0 : index
    %c0_798 = arith.constant 0 : index
    %467 = vector.load %arg4[%c0_797, %c0_798] : memref<1x16xf32, #tpu.memory_space<vmem>>, vector<1x16xf32>
    %cst_799 = arith.constant dense<0.000000e+00> : vector<16xf32>
    %468 = vector.multi_reduction <add>, %465, %cst_799 [0] : vector<32x16xf32> to vector<16xf32>
    %469 = vector.shape_cast %468 : vector<16xf32> to vector<1x16xf32>
    %cst_800 = arith.constant 3.200000e+01 : f32
    %470 = vector.broadcast %cst_800 : f32 to vector<1x16xf32>
    %471 = arith.divf %469, %470 : vector<1x16xf32>
    %472 = vector.broadcast %471 : vector<1x16xf32> to vector<32x16xf32>
    %473 = arith.subf %465, %472 : vector<32x16xf32>
    %474 = arith.mulf %473, %473 : vector<32x16xf32>
    %cst_801 = arith.constant dense<0.000000e+00> : vector<16xf32>
    %475 = vector.multi_reduction <add>, %474, %cst_801 [0] : vector<32x16xf32> to vector<16xf32>
    %476 = vector.shape_cast %475 : vector<16xf32> to vector<1x16xf32>
    %cst_802 = arith.constant 3.200000e+01 : f32
    %477 = vector.broadcast %cst_802 : f32 to vector<1x16xf32>
    %478 = arith.divf %476, %477 : vector<1x16xf32>
    %479 = vector.broadcast %471 : vector<1x16xf32> to vector<32x16xf32>
    %480 = arith.subf %465, %479 : vector<32x16xf32>
    %cst_803 = arith.constant 9.99999974E-6 : f32
    %481 = vector.broadcast %cst_803 : f32 to vector<1x16xf32>
    %482 = arith.addf %478, %481 : vector<1x16xf32>
    %483 = math.rsqrt %482 : vector<1x16xf32>
    %484 = vector.broadcast %483 : vector<1x16xf32> to vector<32x16xf32>
    %485 = arith.mulf %480, %484 : vector<32x16xf32>
    %486 = vector.broadcast %466 : vector<1x16xf32> to vector<32x16xf32>
    %487 = arith.mulf %485, %486 : vector<32x16xf32>
    %488 = vector.broadcast %467 : vector<1x16xf32> to vector<32x16xf32>
    %489 = arith.addf %487, %488 : vector<32x16xf32>
    %cst_804 = arith.constant 0.000000e+00 : f32
    %490 = vector.broadcast %cst_804 : f32 to vector<32x16xf32>
    %491 = arith.cmpf ogt, %489, %490 : vector<32x16xf32>
    %cst_805 = arith.constant 2.000000e-01 : f32
    %492 = vector.broadcast %cst_805 : f32 to vector<32x16xf32>
    %493 = arith.mulf %492, %489 : vector<32x16xf32>
    %494 = arith.select %491, %489, %493 : vector<32x16xi1>, vector<32x16xf32>
    %c0_806 = arith.constant 0 : index
    %c0_807 = arith.constant 0 : index
    %495 = vector.load %arg18[%c0_806, %c0_807] : memref<32x16xf32, #tpu.memory_space<vmem>>, vector<32x16xf32>
    tpu.vector_store %arg18[%c0_806, %c0_807], %494 {strides = array<i32>} : memref<32x16xf32, #tpu.memory_space<vmem>>, vector<32x16xf32>,
    %c0_808 = arith.constant 0 : index
    %c0_809 = arith.constant 0 : index
    %496 = tpu.strided_load %arg18[%c0_808, %c0_809] {strides = array<i32: 2, 1>} : memref<32x16xf32, #tpu.memory_space<vmem>>, vector<2x16xf32>
    %c3 = arith.constant 3 : index
    %c16_810 = arith.constant 16 : index
    %497 = vector.load %arg15[%c3, %c16_810] : memref<36x32xf32, #tpu.memory_space<vmem>>, vector<2x16xf32>
    tpu.vector_store %arg15[%c3, %c16_810], %496 {strides = array<i32>} : memref<36x32xf32, #tpu.memory_space<vmem>>, vector<2x16xf32>,
    %c1_811 = arith.constant 1 : index
    %c0_812 = arith.constant 0 : index
    %498 = tpu.strided_load %arg18[%c1_811, %c0_812] {strides = array<i32: 2, 1>} : memref<32x16xf32, #tpu.memory_space<vmem>>, vector<2x16xf32>
    %c4_813 = arith.constant 4 : index
    %c0_814 = arith.constant 0 : index
    %499 = vector.load %arg15[%c4_813, %c0_814] : memref<36x32xf32, #tpu.memory_space<vmem>>, vector<2x16xf32>
    tpu.vector_store %arg15[%c4_813, %c0_814], %498 {strides = array<i32>} : memref<36x32xf32, #tpu.memory_space<vmem>>, vector<2x16xf32>,
    %c4_815 = arith.constant 4 : index
    %c0_816 = arith.constant 0 : index
    %500 = tpu.strided_load %arg18[%c4_815, %c0_816] {strides = array<i32: 2, 1>} : memref<32x16xf32, #tpu.memory_space<vmem>>, vector<2x16xf32>
    %c6_817 = arith.constant 6 : index
    %c16_818 = arith.constant 16 : index
    %501 = vector.load %arg15[%c6_817, %c16_818] : memref<36x32xf32, #tpu.memory_space<vmem>>, vector<2x16xf32>
    tpu.vector_store %arg15[%c6_817, %c16_818], %500 {strides = array<i32>} : memref<36x32xf32, #tpu.memory_space<vmem>>, vector<2x16xf32>,
    %c5_819 = arith.constant 5 : index
    %c0_820 = arith.constant 0 : index
    %502 = tpu.strided_load %arg18[%c5_819, %c0_820] {strides = array<i32: 2, 1>} : memref<32x16xf32, #tpu.memory_space<vmem>>, vector<2x16xf32>
    %c7 = arith.constant 7 : index
    %c0_821 = arith.constant 0 : index
    %503 = vector.load %arg15[%c7, %c0_821] : memref<36x32xf32, #tpu.memory_space<vmem>>, vector<2x16xf32>
    tpu.vector_store %arg15[%c7, %c0_821], %502 {strides = array<i32>} : memref<36x32xf32, #tpu.memory_space<vmem>>, vector<2x16xf32>,
    %c8_822 = arith.constant 8 : index
    %c0_823 = arith.constant 0 : index
    %504 = tpu.strided_load %arg18[%c8_822, %c0_823] {strides = array<i32: 2, 1>} : memref<32x16xf32, #tpu.memory_space<vmem>>, vector<2x16xf32>
    %c9_824 = arith.constant 9 : index
    %c16_825 = arith.constant 16 : index
    %505 = vector.load %arg15[%c9_824, %c16_825] : memref<36x32xf32, #tpu.memory_space<vmem>>, vector<2x16xf32>
    tpu.vector_store %arg15[%c9_824, %c16_825], %504 {strides = array<i32>} : memref<36x32xf32, #tpu.memory_space<vmem>>, vector<2x16xf32>,
    %c9_826 = arith.constant 9 : index
    %c0_827 = arith.constant 0 : index
    %506 = tpu.strided_load %arg18[%c9_826, %c0_827] {strides = array<i32: 2, 1>} : memref<32x16xf32, #tpu.memory_space<vmem>>, vector<2x16xf32>
    %c10_828 = arith.constant 10 : index
    %c0_829 = arith.constant 0 : index
    %507 = vector.load %arg15[%c10_828, %c0_829] : memref<36x32xf32, #tpu.memory_space<vmem>>, vector<2x16xf32>
    tpu.vector_store %arg15[%c10_828, %c0_829], %506 {strides = array<i32>} : memref<36x32xf32, #tpu.memory_space<vmem>>, vector<2x16xf32>,
    %c12_830 = arith.constant 12 : index
    %c0_831 = arith.constant 0 : index
    %508 = tpu.strided_load %arg18[%c12_830, %c0_831] {strides = array<i32: 2, 1>} : memref<32x16xf32, #tpu.memory_space<vmem>>, vector<2x16xf32>
    %c12_832 = arith.constant 12 : index
    %c16_833 = arith.constant 16 : index
    %509 = vector.load %arg15[%c12_832, %c16_833] : memref<36x32xf32, #tpu.memory_space<vmem>>, vector<2x16xf32>
    tpu.vector_store %arg15[%c12_832, %c16_833], %508 {strides = array<i32>} : memref<36x32xf32, #tpu.memory_space<vmem>>, vector<2x16xf32>,
    %c13 = arith.constant 13 : index
    %c0_834 = arith.constant 0 : index
    %510 = tpu.strided_load %arg18[%c13, %c0_834] {strides = array<i32: 2, 1>} : memref<32x16xf32, #tpu.memory_space<vmem>>, vector<2x16xf32>
    %c13_835 = arith.constant 13 : index
    %c0_836 = arith.constant 0 : index
    %511 = vector.load %arg15[%c13_835, %c0_836] : memref<36x32xf32, #tpu.memory_space<vmem>>, vector<2x16xf32>
    tpu.vector_store %arg15[%c13_835, %c0_836], %510 {strides = array<i32>} : memref<36x32xf32, #tpu.memory_space<vmem>>, vector<2x16xf32>,
    %c16_837 = arith.constant 16 : index
    %c0_838 = arith.constant 0 : index
    %512 = tpu.strided_load %arg18[%c16_837, %c0_838] {strides = array<i32: 2, 1>} : memref<32x16xf32, #tpu.memory_space<vmem>>, vector<2x16xf32>
    %c21_839 = arith.constant 21 : index
    %c16_840 = arith.constant 16 : index
    %513 = vector.load %arg15[%c21_839, %c16_840] : memref<36x32xf32, #tpu.memory_space<vmem>>, vector<2x16xf32>
    tpu.vector_store %arg15[%c21_839, %c16_840], %512 {strides = array<i32>} : memref<36x32xf32, #tpu.memory_space<vmem>>, vector<2x16xf32>,
    %c17_841 = arith.constant 17 : index
    %c0_842 = arith.constant 0 : index
    %514 = tpu.strided_load %arg18[%c17_841, %c0_842] {strides = array<i32: 2, 1>} : memref<32x16xf32, #tpu.memory_space<vmem>>, vector<2x16xf32>
    %c22 = arith.constant 22 : index
    %c0_843 = arith.constant 0 : index
    %515 = vector.load %arg15[%c22, %c0_843] : memref<36x32xf32, #tpu.memory_space<vmem>>, vector<2x16xf32>
    tpu.vector_store %arg15[%c22, %c0_843], %514 {strides = array<i32>} : memref<36x32xf32, #tpu.memory_space<vmem>>, vector<2x16xf32>,
    %c20_844 = arith.constant 20 : index
    %c0_845 = arith.constant 0 : index
    %516 = tpu.strided_load %arg18[%c20_844, %c0_845] {strides = array<i32: 2, 1>} : memref<32x16xf32, #tpu.memory_space<vmem>>, vector<2x16xf32>
    %c24_846 = arith.constant 24 : index
    %c16_847 = arith.constant 16 : index
    %517 = vector.load %arg15[%c24_846, %c16_847] : memref<36x32xf32, #tpu.memory_space<vmem>>, vector<2x16xf32>
    tpu.vector_store %arg15[%c24_846, %c16_847], %516 {strides = array<i32>} : memref<36x32xf32, #tpu.memory_space<vmem>>, vector<2x16xf32>,
    %c21_848 = arith.constant 21 : index
    %c0_849 = arith.constant 0 : index
    %518 = tpu.strided_load %arg18[%c21_848, %c0_849] {strides = array<i32: 2, 1>} : memref<32x16xf32, #tpu.memory_space<vmem>>, vector<2x16xf32>
    %c25_850 = arith.constant 25 : index
    %c0_851 = arith.constant 0 : index
    %519 = vector.load %arg15[%c25_850, %c0_851] : memref<36x32xf32, #tpu.memory_space<vmem>>, vector<2x16xf32>
    tpu.vector_store %arg15[%c25_850, %c0_851], %518 {strides = array<i32>} : memref<36x32xf32, #tpu.memory_space<vmem>>, vector<2x16xf32>,
    %c24_852 = arith.constant 24 : index
    %c0_853 = arith.constant 0 : index
    %520 = tpu.strided_load %arg18[%c24_852, %c0_853] {strides = array<i32: 2, 1>} : memref<32x16xf32, #tpu.memory_space<vmem>>, vector<2x16xf32>
    %c27_854 = arith.constant 27 : index
    %c16_855 = arith.constant 16 : index
    %521 = vector.load %arg15[%c27_854, %c16_855] : memref<36x32xf32, #tpu.memory_space<vmem>>, vector<2x16xf32>
    tpu.vector_store %arg15[%c27_854, %c16_855], %520 {strides = array<i32>} : memref<36x32xf32, #tpu.memory_space<vmem>>, vector<2x16xf32>,
    %c25_856 = arith.constant 25 : index
    %c0_857 = arith.constant 0 : index
    %522 = tpu.strided_load %arg18[%c25_856, %c0_857] {strides = array<i32: 2, 1>} : memref<32x16xf32, #tpu.memory_space<vmem>>, vector<2x16xf32>
    %c28_858 = arith.constant 28 : index
    %c0_859 = arith.constant 0 : index
    %523 = vector.load %arg15[%c28_858, %c0_859] : memref<36x32xf32, #tpu.memory_space<vmem>>, vector<2x16xf32>
    tpu.vector_store %arg15[%c28_858, %c0_859], %522 {strides = array<i32>} : memref<36x32xf32, #tpu.memory_space<vmem>>, vector<2x16xf32>,
    %c28_860 = arith.constant 28 : index
    %c0_861 = arith.constant 0 : index
    %524 = tpu.strided_load %arg18[%c28_860, %c0_861] {strides = array<i32: 2, 1>} : memref<32x16xf32, #tpu.memory_space<vmem>>, vector<2x16xf32>
    %c30_862 = arith.constant 30 : index
    %c16_863 = arith.constant 16 : index
    %525 = vector.load %arg15[%c30_862, %c16_863] : memref<36x32xf32, #tpu.memory_space<vmem>>, vector<2x16xf32>
    tpu.vector_store %arg15[%c30_862, %c16_863], %524 {strides = array<i32>} : memref<36x32xf32, #tpu.memory_space<vmem>>, vector<2x16xf32>,
    %c29 = arith.constant 29 : index
    %c0_864 = arith.constant 0 : index
    %526 = tpu.strided_load %arg18[%c29, %c0_864] {strides = array<i32: 2, 1>} : memref<32x16xf32, #tpu.memory_space<vmem>>, vector<2x16xf32>
    %c31_865 = arith.constant 31 : index
    %c0_866 = arith.constant 0 : index
    %527 = vector.load %arg15[%c31_865, %c0_866] : memref<36x32xf32, #tpu.memory_space<vmem>>, vector<2x16xf32>
    tpu.vector_store %arg15[%c31_865, %c0_866], %526 {strides = array<i32>} : memref<36x32xf32, #tpu.memory_space<vmem>>, vector<2x16xf32>,
    %c0_867 = arith.constant 0 : index
    %c0_868 = arith.constant 0 : index
    %528 = vector.load %arg15[%c0_867, %c0_868] : memref<36x32xf32, #tpu.memory_space<vmem>>, vector<2x32xf32>
    %c0_869 = arith.constant 0 : index
    %c0_870 = arith.constant 0 : index
    %529 = vector.load %arg12[%c0_869, %c0_870] : memref<8x256xf32, #tpu.memory_space<vmem>>, vector<2x32xf32>
    tpu.vector_store %arg12[%c0_869, %c0_870], %528 {strides = array<i32>} : memref<8x256xf32, #tpu.memory_space<vmem>>, vector<2x32xf32>,
    %c1_871 = arith.constant 1 : index
    %c0_872 = arith.constant 0 : index
    %530 = vector.load %arg15[%c1_871, %c0_872] : memref<36x32xf32, #tpu.memory_space<vmem>>, vector<2x32xf32>
    %c0_873 = arith.constant 0 : index
    %c32_874 = arith.constant 32 : index
    %531 = vector.load %arg12[%c0_873, %c32_874] : memref<8x256xf32, #tpu.memory_space<vmem>>, vector<2x32xf32>
    tpu.vector_store %arg12[%c0_873, %c32_874], %530 {strides = array<i32>} : memref<8x256xf32, #tpu.memory_space<vmem>>, vector<2x32xf32>,
    %c3_875 = arith.constant 3 : index
    %c0_876 = arith.constant 0 : index
    %532 = vector.load %arg15[%c3_875, %c0_876] : memref<36x32xf32, #tpu.memory_space<vmem>>, vector<2x32xf32>
    %c0_877 = arith.constant 0 : index
    %c64_878 = arith.constant 64 : index
    %533 = vector.load %arg12[%c0_877, %c64_878] : memref<8x256xf32, #tpu.memory_space<vmem>>, vector<2x32xf32>
    tpu.vector_store %arg12[%c0_877, %c64_878], %532 {strides = array<i32>} : memref<8x256xf32, #tpu.memory_space<vmem>>, vector<2x32xf32>,
    %c4_879 = arith.constant 4 : index
    %c0_880 = arith.constant 0 : index
    %534 = vector.load %arg15[%c4_879, %c0_880] : memref<36x32xf32, #tpu.memory_space<vmem>>, vector<2x32xf32>
    %c0_881 = arith.constant 0 : index
    %c96_882 = arith.constant 96 : index
    %535 = vector.load %arg12[%c0_881, %c96_882] : memref<8x256xf32, #tpu.memory_space<vmem>>, vector<2x32xf32>
    tpu.vector_store %arg12[%c0_881, %c96_882], %534 {strides = array<i32>} : memref<8x256xf32, #tpu.memory_space<vmem>>, vector<2x32xf32>,
    %c6_883 = arith.constant 6 : index
    %c0_884 = arith.constant 0 : index
    %536 = vector.load %arg15[%c6_883, %c0_884] : memref<36x32xf32, #tpu.memory_space<vmem>>, vector<2x32xf32>
    %c0_885 = arith.constant 0 : index
    %c128 = arith.constant 128 : index
    %537 = vector.load %arg12[%c0_885, %c128] : memref<8x256xf32, #tpu.memory_space<vmem>>, vector<2x32xf32>
    tpu.vector_store %arg12[%c0_885, %c128], %536 {strides = array<i32>} : memref<8x256xf32, #tpu.memory_space<vmem>>, vector<2x32xf32>,
    %c7_886 = arith.constant 7 : index
    %c0_887 = arith.constant 0 : index
    %538 = vector.load %arg15[%c7_886, %c0_887] : memref<36x32xf32, #tpu.memory_space<vmem>>, vector<2x32xf32>
    %c0_888 = arith.constant 0 : index
    %c160 = arith.constant 160 : index
    %539 = vector.load %arg12[%c0_888, %c160] : memref<8x256xf32, #tpu.memory_space<vmem>>, vector<2x32xf32>
    tpu.vector_store %arg12[%c0_888, %c160], %538 {strides = array<i32>} : memref<8x256xf32, #tpu.memory_space<vmem>>, vector<2x32xf32>,
    %c9_889 = arith.constant 9 : index
    %c0_890 = arith.constant 0 : index
    %540 = vector.load %arg15[%c9_889, %c0_890] : memref<36x32xf32, #tpu.memory_space<vmem>>, vector<2x32xf32>
    %c0_891 = arith.constant 0 : index
    %c192 = arith.constant 192 : index
    %541 = vector.load %arg12[%c0_891, %c192] : memref<8x256xf32, #tpu.memory_space<vmem>>, vector<2x32xf32>
    tpu.vector_store %arg12[%c0_891, %c192], %540 {strides = array<i32>} : memref<8x256xf32, #tpu.memory_space<vmem>>, vector<2x32xf32>,
    %c10_892 = arith.constant 10 : index
    %c0_893 = arith.constant 0 : index
    %542 = vector.load %arg15[%c10_892, %c0_893] : memref<36x32xf32, #tpu.memory_space<vmem>>, vector<2x32xf32>
    %c0_894 = arith.constant 0 : index
    %c224 = arith.constant 224 : index
    %543 = vector.load %arg12[%c0_894, %c224] : memref<8x256xf32, #tpu.memory_space<vmem>>, vector<2x32xf32>
    tpu.vector_store %arg12[%c0_894, %c224], %542 {strides = array<i32>} : memref<8x256xf32, #tpu.memory_space<vmem>>, vector<2x32xf32>,
    %c6_895 = arith.constant 6 : index
    %c0_896 = arith.constant 0 : index
    %544 = vector.load %arg15[%c6_895, %c0_896] : memref<36x32xf32, #tpu.memory_space<vmem>>, vector<2x32xf32>
    %c2_897 = arith.constant 2 : index
    %c0_898 = arith.constant 0 : index
    %545 = vector.load %arg12[%c2_897, %c0_898] : memref<8x256xf32, #tpu.memory_space<vmem>>, vector<2x32xf32>
    tpu.vector_store %arg12[%c2_897, %c0_898], %544 {strides = array<i32>} : memref<8x256xf32, #tpu.memory_space<vmem>>, vector<2x32xf32>,
    %c7_899 = arith.constant 7 : index
    %c0_900 = arith.constant 0 : index
    %546 = vector.load %arg15[%c7_899, %c0_900] : memref<36x32xf32, #tpu.memory_space<vmem>>, vector<2x32xf32>
    %c2_901 = arith.constant 2 : index
    %c32_902 = arith.constant 32 : index
    %547 = vector.load %arg12[%c2_901, %c32_902] : memref<8x256xf32, #tpu.memory_space<vmem>>, vector<2x32xf32>
    tpu.vector_store %arg12[%c2_901, %c32_902], %546 {strides = array<i32>} : memref<8x256xf32, #tpu.memory_space<vmem>>, vector<2x32xf32>,
    %c9_903 = arith.constant 9 : index
    %c0_904 = arith.constant 0 : index
    %548 = vector.load %arg15[%c9_903, %c0_904] : memref<36x32xf32, #tpu.memory_space<vmem>>, vector<2x32xf32>
    %c2_905 = arith.constant 2 : index
    %c64_906 = arith.constant 64 : index
    %549 = vector.load %arg12[%c2_905, %c64_906] : memref<8x256xf32, #tpu.memory_space<vmem>>, vector<2x32xf32>
    tpu.vector_store %arg12[%c2_905, %c64_906], %548 {strides = array<i32>} : memref<8x256xf32, #tpu.memory_space<vmem>>, vector<2x32xf32>,
    %c10_907 = arith.constant 10 : index
    %c0_908 = arith.constant 0 : index
    %550 = vector.load %arg15[%c10_907, %c0_908] : memref<36x32xf32, #tpu.memory_space<vmem>>, vector<2x32xf32>
    %c2_909 = arith.constant 2 : index
    %c96_910 = arith.constant 96 : index
    %551 = vector.load %arg12[%c2_909, %c96_910] : memref<8x256xf32, #tpu.memory_space<vmem>>, vector<2x32xf32>
    tpu.vector_store %arg12[%c2_909, %c96_910], %550 {strides = array<i32>} : memref<8x256xf32, #tpu.memory_space<vmem>>, vector<2x32xf32>,
    %c12_911 = arith.constant 12 : index
    %c0_912 = arith.constant 0 : index
    %552 = vector.load %arg15[%c12_911, %c0_912] : memref<36x32xf32, #tpu.memory_space<vmem>>, vector<2x32xf32>
    %c2_913 = arith.constant 2 : index
    %c128_914 = arith.constant 128 : index
    %553 = vector.load %arg12[%c2_913, %c128_914] : memref<8x256xf32, #tpu.memory_space<vmem>>, vector<2x32xf32>
    tpu.vector_store %arg12[%c2_913, %c128_914], %552 {strides = array<i32>} : memref<8x256xf32, #tpu.memory_space<vmem>>, vector<2x32xf32>,
    %c13_915 = arith.constant 13 : index
    %c0_916 = arith.constant 0 : index
    %554 = vector.load %arg15[%c13_915, %c0_916] : memref<36x32xf32, #tpu.memory_space<vmem>>, vector<2x32xf32>
    %c2_917 = arith.constant 2 : index
    %c160_918 = arith.constant 160 : index
    %555 = vector.load %arg12[%c2_917, %c160_918] : memref<8x256xf32, #tpu.memory_space<vmem>>, vector<2x32xf32>
    tpu.vector_store %arg12[%c2_917, %c160_918], %554 {strides = array<i32>} : memref<8x256xf32, #tpu.memory_space<vmem>>, vector<2x32xf32>,
    %c15_919 = arith.constant 15 : index
    %c0_920 = arith.constant 0 : index
    %556 = vector.load %arg15[%c15_919, %c0_920] : memref<36x32xf32, #tpu.memory_space<vmem>>, vector<2x32xf32>
    %c2_921 = arith.constant 2 : index
    %c192_922 = arith.constant 192 : index
    %557 = vector.load %arg12[%c2_921, %c192_922] : memref<8x256xf32, #tpu.memory_space<vmem>>, vector<2x32xf32>
    tpu.vector_store %arg12[%c2_921, %c192_922], %556 {strides = array<i32>} : memref<8x256xf32, #tpu.memory_space<vmem>>, vector<2x32xf32>,
    %c16_923 = arith.constant 16 : index
    %c0_924 = arith.constant 0 : index
    %558 = vector.load %arg15[%c16_923, %c0_924] : memref<36x32xf32, #tpu.memory_space<vmem>>, vector<2x32xf32>
    %c2_925 = arith.constant 2 : index
    %c224_926 = arith.constant 224 : index
    %559 = vector.load %arg12[%c2_925, %c224_926] : memref<8x256xf32, #tpu.memory_space<vmem>>, vector<2x32xf32>
    tpu.vector_store %arg12[%c2_925, %c224_926], %558 {strides = array<i32>} : memref<8x256xf32, #tpu.memory_space<vmem>>, vector<2x32xf32>,
    %c18_927 = arith.constant 18 : index
    %c0_928 = arith.constant 0 : index
    %560 = vector.load %arg15[%c18_927, %c0_928] : memref<36x32xf32, #tpu.memory_space<vmem>>, vector<2x32xf32>
    %c4_929 = arith.constant 4 : index
    %c0_930 = arith.constant 0 : index
    %561 = vector.load %arg12[%c4_929, %c0_930] : memref<8x256xf32, #tpu.memory_space<vmem>>, vector<2x32xf32>
    tpu.vector_store %arg12[%c4_929, %c0_930], %560 {strides = array<i32>} : memref<8x256xf32, #tpu.memory_space<vmem>>, vector<2x32xf32>,
    %c19_931 = arith.constant 19 : index
    %c0_932 = arith.constant 0 : index
    %562 = vector.load %arg15[%c19_931, %c0_932] : memref<36x32xf32, #tpu.memory_space<vmem>>, vector<2x32xf32>
    %c4_933 = arith.constant 4 : index
    %c32_934 = arith.constant 32 : index
    %563 = vector.load %arg12[%c4_933, %c32_934] : memref<8x256xf32, #tpu.memory_space<vmem>>, vector<2x32xf32>
    tpu.vector_store %arg12[%c4_933, %c32_934], %562 {strides = array<i32>} : memref<8x256xf32, #tpu.memory_space<vmem>>, vector<2x32xf32>,
    %c21_935 = arith.constant 21 : index
    %c0_936 = arith.constant 0 : index
    %564 = vector.load %arg15[%c21_935, %c0_936] : memref<36x32xf32, #tpu.memory_space<vmem>>, vector<2x32xf32>
    %c4_937 = arith.constant 4 : index
    %c64_938 = arith.constant 64 : index
    %565 = vector.load %arg12[%c4_937, %c64_938] : memref<8x256xf32, #tpu.memory_space<vmem>>, vector<2x32xf32>
    tpu.vector_store %arg12[%c4_937, %c64_938], %564 {strides = array<i32>} : memref<8x256xf32, #tpu.memory_space<vmem>>, vector<2x32xf32>,
    %c22_939 = arith.constant 22 : index
    %c0_940 = arith.constant 0 : index
    %566 = vector.load %arg15[%c22_939, %c0_940] : memref<36x32xf32, #tpu.memory_space<vmem>>, vector<2x32xf32>
    %c4_941 = arith.constant 4 : index
    %c96_942 = arith.constant 96 : index
    %567 = vector.load %arg12[%c4_941, %c96_942] : memref<8x256xf32, #tpu.memory_space<vmem>>, vector<2x32xf32>
    tpu.vector_store %arg12[%c4_941, %c96_942], %566 {strides = array<i32>} : memref<8x256xf32, #tpu.memory_space<vmem>>, vector<2x32xf32>,
    %c24_943 = arith.constant 24 : index
    %c0_944 = arith.constant 0 : index
    %568 = vector.load %arg15[%c24_943, %c0_944] : memref<36x32xf32, #tpu.memory_space<vmem>>, vector<2x32xf32>
    %c4_945 = arith.constant 4 : index
    %c128_946 = arith.constant 128 : index
    %569 = vector.load %arg12[%c4_945, %c128_946] : memref<8x256xf32, #tpu.memory_space<vmem>>, vector<2x32xf32>
    tpu.vector_store %arg12[%c4_945, %c128_946], %568 {strides = array<i32>} : memref<8x256xf32, #tpu.memory_space<vmem>>, vector<2x32xf32>,
    %c25_947 = arith.constant 25 : index
    %c0_948 = arith.constant 0 : index
    %570 = vector.load %arg15[%c25_947, %c0_948] : memref<36x32xf32, #tpu.memory_space<vmem>>, vector<2x32xf32>
    %c4_949 = arith.constant 4 : index
    %c160_950 = arith.constant 160 : index
    %571 = vector.load %arg12[%c4_949, %c160_950] : memref<8x256xf32, #tpu.memory_space<vmem>>, vector<2x32xf32>
    tpu.vector_store %arg12[%c4_949, %c160_950], %570 {strides = array<i32>} : memref<8x256xf32, #tpu.memory_space<vmem>>, vector<2x32xf32>,
    %c27_951 = arith.constant 27 : index
    %c0_952 = arith.constant 0 : index
    %572 = vector.load %arg15[%c27_951, %c0_952] : memref<36x32xf32, #tpu.memory_space<vmem>>, vector<2x32xf32>
    %c4_953 = arith.constant 4 : index
    %c192_954 = arith.constant 192 : index
    %573 = vector.load %arg12[%c4_953, %c192_954] : memref<8x256xf32, #tpu.memory_space<vmem>>, vector<2x32xf32>
    tpu.vector_store %arg12[%c4_953, %c192_954], %572 {strides = array<i32>} : memref<8x256xf32, #tpu.memory_space<vmem>>, vector<2x32xf32>,
    %c28_955 = arith.constant 28 : index
    %c0_956 = arith.constant 0 : index
    %574 = vector.load %arg15[%c28_955, %c0_956] : memref<36x32xf32, #tpu.memory_space<vmem>>, vector<2x32xf32>
    %c4_957 = arith.constant 4 : index
    %c224_958 = arith.constant 224 : index
    %575 = vector.load %arg12[%c4_957, %c224_958] : memref<8x256xf32, #tpu.memory_space<vmem>>, vector<2x32xf32>
    tpu.vector_store %arg12[%c4_957, %c224_958], %574 {strides = array<i32>} : memref<8x256xf32, #tpu.memory_space<vmem>>, vector<2x32xf32>,
    %c24_959 = arith.constant 24 : index
    %c0_960 = arith.constant 0 : index
    %576 = vector.load %arg15[%c24_959, %c0_960] : memref<36x32xf32, #tpu.memory_space<vmem>>, vector<2x32xf32>
    %c6_961 = arith.constant 6 : index
    %c0_962 = arith.constant 0 : index
    %577 = vector.load %arg12[%c6_961, %c0_962] : memref<8x256xf32, #tpu.memory_space<vmem>>, vector<2x32xf32>
    tpu.vector_store %arg12[%c6_961, %c0_962], %576 {strides = array<i32>} : memref<8x256xf32, #tpu.memory_space<vmem>>, vector<2x32xf32>,
    %c25_963 = arith.constant 25 : index
    %c0_964 = arith.constant 0 : index
    %578 = vector.load %arg15[%c25_963, %c0_964] : memref<36x32xf32, #tpu.memory_space<vmem>>, vector<2x32xf32>
    %c6_965 = arith.constant 6 : index
    %c32_966 = arith.constant 32 : index
    %579 = vector.load %arg12[%c6_965, %c32_966] : memref<8x256xf32, #tpu.memory_space<vmem>>, vector<2x32xf32>
    tpu.vector_store %arg12[%c6_965, %c32_966], %578 {strides = array<i32>} : memref<8x256xf32, #tpu.memory_space<vmem>>, vector<2x32xf32>,
    %c27_967 = arith.constant 27 : index
    %c0_968 = arith.constant 0 : index
    %580 = vector.load %arg15[%c27_967, %c0_968] : memref<36x32xf32, #tpu.memory_space<vmem>>, vector<2x32xf32>
    %c6_969 = arith.constant 6 : index
    %c64_970 = arith.constant 64 : index
    %581 = vector.load %arg12[%c6_969, %c64_970] : memref<8x256xf32, #tpu.memory_space<vmem>>, vector<2x32xf32>
    tpu.vector_store %arg12[%c6_969, %c64_970], %580 {strides = array<i32>} : memref<8x256xf32, #tpu.memory_space<vmem>>, vector<2x32xf32>,
    %c28_971 = arith.constant 28 : index
    %c0_972 = arith.constant 0 : index
    %582 = vector.load %arg15[%c28_971, %c0_972] : memref<36x32xf32, #tpu.memory_space<vmem>>, vector<2x32xf32>
    %c6_973 = arith.constant 6 : index
    %c96_974 = arith.constant 96 : index
    %583 = vector.load %arg12[%c6_973, %c96_974] : memref<8x256xf32, #tpu.memory_space<vmem>>, vector<2x32xf32>
    tpu.vector_store %arg12[%c6_973, %c96_974], %582 {strides = array<i32>} : memref<8x256xf32, #tpu.memory_space<vmem>>, vector<2x32xf32>,
    %c30_975 = arith.constant 30 : index
    %c0_976 = arith.constant 0 : index
    %584 = vector.load %arg15[%c30_975, %c0_976] : memref<36x32xf32, #tpu.memory_space<vmem>>, vector<2x32xf32>
    %c6_977 = arith.constant 6 : index
    %c128_978 = arith.constant 128 : index
    %585 = vector.load %arg12[%c6_977, %c128_978] : memref<8x256xf32, #tpu.memory_space<vmem>>, vector<2x32xf32>
    tpu.vector_store %arg12[%c6_977, %c128_978], %584 {strides = array<i32>} : memref<8x256xf32, #tpu.memory_space<vmem>>, vector<2x32xf32>,
    %c31_979 = arith.constant 31 : index
    %c0_980 = arith.constant 0 : index
    %586 = vector.load %arg15[%c31_979, %c0_980] : memref<36x32xf32, #tpu.memory_space<vmem>>, vector<2x32xf32>
    %c6_981 = arith.constant 6 : index
    %c160_982 = arith.constant 160 : index
    %587 = vector.load %arg12[%c6_981, %c160_982] : memref<8x256xf32, #tpu.memory_space<vmem>>, vector<2x32xf32>
    tpu.vector_store %arg12[%c6_981, %c160_982], %586 {strides = array<i32>} : memref<8x256xf32, #tpu.memory_space<vmem>>, vector<2x32xf32>,
    %c33_983 = arith.constant 33 : index
    %c0_984 = arith.constant 0 : index
    %588 = vector.load %arg15[%c33_983, %c0_984] : memref<36x32xf32, #tpu.memory_space<vmem>>, vector<2x32xf32>
    %c6_985 = arith.constant 6 : index
    %c192_986 = arith.constant 192 : index
    %589 = vector.load %arg12[%c6_985, %c192_986] : memref<8x256xf32, #tpu.memory_space<vmem>>, vector<2x32xf32>
    tpu.vector_store %arg12[%c6_985, %c192_986], %588 {strides = array<i32>} : memref<8x256xf32, #tpu.memory_space<vmem>>, vector<2x32xf32>,
    %c34 = arith.constant 34 : index
    %c0_987 = arith.constant 0 : index
    %590 = vector.load %arg15[%c34, %c0_987] : memref<36x32xf32, #tpu.memory_space<vmem>>, vector<2x32xf32>
    %c6_988 = arith.constant 6 : index
    %c224_989 = arith.constant 224 : index
    %591 = vector.load %arg12[%c6_988, %c224_989] : memref<8x256xf32, #tpu.memory_space<vmem>>, vector<2x32xf32>
    tpu.vector_store %arg12[%c6_988, %c224_989], %590 {strides = array<i32>} : memref<8x256xf32, #tpu.memory_space<vmem>>, vector<2x32xf32>,
    %c0_990 = arith.constant 0 : index
    %c0_991 = arith.constant 0 : index
    %592 = vector.load %arg12[%c0_990, %c0_991] : memref<8x256xf32, #tpu.memory_space<vmem>>, vector<8x256xf32>
    %c0_992 = arith.constant 0 : index
    %c0_993 = arith.constant 0 : index
    %593 = vector.load %arg5[%c0_992, %c0_993] : memref<256x32xf32, #tpu.memory_space<vmem>>, vector<256x32xf32>
    %cst_994 = arith.constant dense<0.000000e+00> : vector<8x32xf32>
    %594 = tpu.matmul %592, %593, %cst_994 {dimension_numbers = #tpu.dot_dimension_numbers<[1], [0], [0], [1], [0, 0, 1, 1], [], []>} : vector<8x256xf32>, vector<256x32xf32>, vector<8x32xf32> -> vector<8x32xf32>
    %c0_995 = arith.constant 0 : index
    %c0_996 = arith.constant 0 : index
    %595 = vector.load %arg6[%c0_995, %c0_996] : memref<1x32xf32, #tpu.memory_space<vmem>>, vector<1x32xf32>
    %c0_997 = arith.constant 0 : index
    %c0_998 = arith.constant 0 : index
    %596 = vector.load %arg7[%c0_997, %c0_998] : memref<1x32xf32, #tpu.memory_space<vmem>>, vector<1x32xf32>
    %cst_999 = arith.constant dense<0.000000e+00> : vector<32xf32>
    %597 = vector.multi_reduction <add>, %594, %cst_999 [0] : vector<8x32xf32> to vector<32xf32>
    %598 = vector.shape_cast %597 : vector<32xf32> to vector<1x32xf32>
    %cst_1000 = arith.constant 8.000000e+00 : f32
    %599 = vector.broadcast %cst_1000 : f32 to vector<1x32xf32>
    %600 = arith.divf %598, %599 : vector<1x32xf32>
    %601 = vector.broadcast %600 : vector<1x32xf32> to vector<8x32xf32>
    %602 = arith.subf %594, %601 : vector<8x32xf32>
    %603 = arith.mulf %602, %602 : vector<8x32xf32>
    %cst_1001 = arith.constant dense<0.000000e+00> : vector<32xf32>
    %604 = vector.multi_reduction <add>, %603, %cst_1001 [0] : vector<8x32xf32> to vector<32xf32>
    %605 = vector.shape_cast %604 : vector<32xf32> to vector<1x32xf32>
    %cst_1002 = arith.constant 8.000000e+00 : f32
    %606 = vector.broadcast %cst_1002 : f32 to vector<1x32xf32>
    %607 = arith.divf %605, %606 : vector<1x32xf32>
    %608 = vector.broadcast %600 : vector<1x32xf32> to vector<8x32xf32>
    %609 = arith.subf %594, %608 : vector<8x32xf32>
    %cst_1003 = arith.constant 9.99999974E-6 : f32
    %610 = vector.broadcast %cst_1003 : f32 to vector<1x32xf32>
    %611 = arith.addf %607, %610 : vector<1x32xf32>
    %612 = math.rsqrt %611 : vector<1x32xf32>
    %613 = vector.broadcast %612 : vector<1x32xf32> to vector<8x32xf32>
    %614 = arith.mulf %609, %613 : vector<8x32xf32>
    %615 = vector.broadcast %595 : vector<1x32xf32> to vector<8x32xf32>
    %616 = arith.mulf %614, %615 : vector<8x32xf32>
    %617 = vector.broadcast %596 : vector<1x32xf32> to vector<8x32xf32>
    %618 = arith.addf %616, %617 : vector<8x32xf32>
    %cst_1004 = arith.constant 0.000000e+00 : f32
    %619 = vector.broadcast %cst_1004 : f32 to vector<8x32xf32>
    %620 = arith.cmpf ogt, %618, %619 : vector<8x32xf32>
    %cst_1005 = arith.constant 2.000000e-01 : f32
    %621 = vector.broadcast %cst_1005 : f32 to vector<8x32xf32>
    %622 = arith.mulf %621, %618 : vector<8x32xf32>
    %623 = arith.select %620, %618, %622 : vector<8x32xi1>, vector<8x32xf32>
    %c0_1006 = arith.constant 0 : index
    %c0_1007 = arith.constant 0 : index
    %624 = vector.load %arg19[%c0_1006, %c0_1007] : memref<8x32xf32, #tpu.memory_space<vmem>>, vector<8x32xf32>
    tpu.vector_store %arg19[%c0_1006, %c0_1007], %623 {strides = array<i32>} : memref<8x32xf32, #tpu.memory_space<vmem>>, vector<8x32xf32>,
    %c0_1008 = arith.constant 0 : index
    %c0_1009 = arith.constant 0 : index
    %625 = tpu.strided_load %arg19[%c0_1008, %c0_1009] {strides = array<i32: 2, 1>} : memref<8x32xf32, #tpu.memory_space<vmem>>, vector<1x32xf32>
    %c2_1010 = arith.constant 2 : index
    %c32_1011 = arith.constant 32 : index
    %626 = vector.load %arg16[%c2_1010, %c32_1011] : memref<16x64xf32, #tpu.memory_space<vmem>>, vector<1x32xf32>
    tpu.vector_store %arg16[%c2_1010, %c32_1011], %625 {strides = array<i32>} : memref<16x64xf32, #tpu.memory_space<vmem>>, vector<1x32xf32>,
    %c1_1012 = arith.constant 1 : index
    %c0_1013 = arith.constant 0 : index
    %627 = tpu.strided_load %arg19[%c1_1012, %c0_1013] {strides = array<i32: 2, 1>} : memref<8x32xf32, #tpu.memory_space<vmem>>, vector<1x32xf32>
    %c3_1014 = arith.constant 3 : index
    %c0_1015 = arith.constant 0 : index
    %628 = vector.load %arg16[%c3_1014, %c0_1015] : memref<16x64xf32, #tpu.memory_space<vmem>>, vector<1x32xf32>
    tpu.vector_store %arg16[%c3_1014, %c0_1015], %627 {strides = array<i32>} : memref<16x64xf32, #tpu.memory_space<vmem>>, vector<1x32xf32>,
    %c2_1016 = arith.constant 2 : index
    %c0_1017 = arith.constant 0 : index
    %629 = tpu.strided_load %arg19[%c2_1016, %c0_1017] {strides = array<i32: 2, 1>} : memref<8x32xf32, #tpu.memory_space<vmem>>, vector<1x32xf32>
    %c4_1018 = arith.constant 4 : index
    %c32_1019 = arith.constant 32 : index
    %630 = vector.load %arg16[%c4_1018, %c32_1019] : memref<16x64xf32, #tpu.memory_space<vmem>>, vector<1x32xf32>
    tpu.vector_store %arg16[%c4_1018, %c32_1019], %629 {strides = array<i32>} : memref<16x64xf32, #tpu.memory_space<vmem>>, vector<1x32xf32>,
    %c3_1020 = arith.constant 3 : index
    %c0_1021 = arith.constant 0 : index
    %631 = tpu.strided_load %arg19[%c3_1020, %c0_1021] {strides = array<i32: 2, 1>} : memref<8x32xf32, #tpu.memory_space<vmem>>, vector<1x32xf32>
    %c5_1022 = arith.constant 5 : index
    %c0_1023 = arith.constant 0 : index
    %632 = vector.load %arg16[%c5_1022, %c0_1023] : memref<16x64xf32, #tpu.memory_space<vmem>>, vector<1x32xf32>
    tpu.vector_store %arg16[%c5_1022, %c0_1023], %631 {strides = array<i32>} : memref<16x64xf32, #tpu.memory_space<vmem>>, vector<1x32xf32>,
    %c4_1024 = arith.constant 4 : index
    %c0_1025 = arith.constant 0 : index
    %633 = tpu.strided_load %arg19[%c4_1024, %c0_1025] {strides = array<i32: 2, 1>} : memref<8x32xf32, #tpu.memory_space<vmem>>, vector<1x32xf32>
    %c10_1026 = arith.constant 10 : index
    %c32_1027 = arith.constant 32 : index
    %634 = vector.load %arg16[%c10_1026, %c32_1027] : memref<16x64xf32, #tpu.memory_space<vmem>>, vector<1x32xf32>
    tpu.vector_store %arg16[%c10_1026, %c32_1027], %633 {strides = array<i32>} : memref<16x64xf32, #tpu.memory_space<vmem>>, vector<1x32xf32>,
    %c5_1028 = arith.constant 5 : index
    %c0_1029 = arith.constant 0 : index
    %635 = tpu.strided_load %arg19[%c5_1028, %c0_1029] {strides = array<i32: 2, 1>} : memref<8x32xf32, #tpu.memory_space<vmem>>, vector<1x32xf32>
    %c11_1030 = arith.constant 11 : index
    %c0_1031 = arith.constant 0 : index
    %636 = vector.load %arg16[%c11_1030, %c0_1031] : memref<16x64xf32, #tpu.memory_space<vmem>>, vector<1x32xf32>
    tpu.vector_store %arg16[%c11_1030, %c0_1031], %635 {strides = array<i32>} : memref<16x64xf32, #tpu.memory_space<vmem>>, vector<1x32xf32>,
    %c6_1032 = arith.constant 6 : index
    %c0_1033 = arith.constant 0 : index
    %637 = tpu.strided_load %arg19[%c6_1032, %c0_1033] {strides = array<i32: 2, 1>} : memref<8x32xf32, #tpu.memory_space<vmem>>, vector<1x32xf32>
    %c12_1034 = arith.constant 12 : index
    %c32_1035 = arith.constant 32 : index
    %638 = vector.load %arg16[%c12_1034, %c32_1035] : memref<16x64xf32, #tpu.memory_space<vmem>>, vector<1x32xf32>
    tpu.vector_store %arg16[%c12_1034, %c32_1035], %637 {strides = array<i32>} : memref<16x64xf32, #tpu.memory_space<vmem>>, vector<1x32xf32>,
    %c7_1036 = arith.constant 7 : index
    %c0_1037 = arith.constant 0 : index
    %639 = tpu.strided_load %arg19[%c7_1036, %c0_1037] {strides = array<i32: 2, 1>} : memref<8x32xf32, #tpu.memory_space<vmem>>, vector<1x32xf32>
    %c13_1038 = arith.constant 13 : index
    %c0_1039 = arith.constant 0 : index
    %640 = vector.load %arg16[%c13_1038, %c0_1039] : memref<16x64xf32, #tpu.memory_space<vmem>>, vector<1x32xf32>
    tpu.vector_store %arg16[%c13_1038, %c0_1039], %639 {strides = array<i32>} : memref<16x64xf32, #tpu.memory_space<vmem>>, vector<1x32xf32>,
    %c0_1040 = arith.constant 0 : index
    %c0_1041 = arith.constant 0 : index
    %641 = vector.load %arg16[%c0_1040, %c0_1041] : memref<16x64xf32, #tpu.memory_space<vmem>>, vector<1x64xf32>
    %c0_1042 = arith.constant 0 : index
    %c0_1043 = arith.constant 0 : index
    %642 = vector.load %arg13[%c0_1042, %c0_1043] : memref<2x512xf32, #tpu.memory_space<vmem>>, vector<1x64xf32>
    tpu.vector_store %arg13[%c0_1042, %c0_1043], %641 {strides = array<i32>} : memref<2x512xf32, #tpu.memory_space<vmem>>, vector<1x64xf32>,
    %c1_1044 = arith.constant 1 : index
    %c0_1045 = arith.constant 0 : index
    %643 = vector.load %arg16[%c1_1044, %c0_1045] : memref<16x64xf32, #tpu.memory_space<vmem>>, vector<1x64xf32>
    %c0_1046 = arith.constant 0 : index
    %c64_1047 = arith.constant 64 : index
    %644 = vector.load %arg13[%c0_1046, %c64_1047] : memref<2x512xf32, #tpu.memory_space<vmem>>, vector<1x64xf32>
    tpu.vector_store %arg13[%c0_1046, %c64_1047], %643 {strides = array<i32>} : memref<2x512xf32, #tpu.memory_space<vmem>>, vector<1x64xf32>,
    %c2_1048 = arith.constant 2 : index
    %c0_1049 = arith.constant 0 : index
    %645 = vector.load %arg16[%c2_1048, %c0_1049] : memref<16x64xf32, #tpu.memory_space<vmem>>, vector<1x64xf32>
    %c0_1050 = arith.constant 0 : index
    %c128_1051 = arith.constant 128 : index
    %646 = vector.load %arg13[%c0_1050, %c128_1051] : memref<2x512xf32, #tpu.memory_space<vmem>>, vector<1x64xf32>
    tpu.vector_store %arg13[%c0_1050, %c128_1051], %645 {strides = array<i32>} : memref<2x512xf32, #tpu.memory_space<vmem>>, vector<1x64xf32>,
    %c3_1052 = arith.constant 3 : index
    %c0_1053 = arith.constant 0 : index
    %647 = vector.load %arg16[%c3_1052, %c0_1053] : memref<16x64xf32, #tpu.memory_space<vmem>>, vector<1x64xf32>
    %c0_1054 = arith.constant 0 : index
    %c192_1055 = arith.constant 192 : index
    %648 = vector.load %arg13[%c0_1054, %c192_1055] : memref<2x512xf32, #tpu.memory_space<vmem>>, vector<1x64xf32>
    tpu.vector_store %arg13[%c0_1054, %c192_1055], %647 {strides = array<i32>} : memref<2x512xf32, #tpu.memory_space<vmem>>, vector<1x64xf32>,
    %c4_1056 = arith.constant 4 : index
    %c0_1057 = arith.constant 0 : index
    %649 = vector.load %arg16[%c4_1056, %c0_1057] : memref<16x64xf32, #tpu.memory_space<vmem>>, vector<1x64xf32>
    %c0_1058 = arith.constant 0 : index
    %c256 = arith.constant 256 : index
    %650 = vector.load %arg13[%c0_1058, %c256] : memref<2x512xf32, #tpu.memory_space<vmem>>, vector<1x64xf32>
    tpu.vector_store %arg13[%c0_1058, %c256], %649 {strides = array<i32>} : memref<2x512xf32, #tpu.memory_space<vmem>>, vector<1x64xf32>,
    %c5_1059 = arith.constant 5 : index
    %c0_1060 = arith.constant 0 : index
    %651 = vector.load %arg16[%c5_1059, %c0_1060] : memref<16x64xf32, #tpu.memory_space<vmem>>, vector<1x64xf32>
    %c0_1061 = arith.constant 0 : index
    %c320 = arith.constant 320 : index
    %652 = vector.load %arg13[%c0_1061, %c320] : memref<2x512xf32, #tpu.memory_space<vmem>>, vector<1x64xf32>
    tpu.vector_store %arg13[%c0_1061, %c320], %651 {strides = array<i32>} : memref<2x512xf32, #tpu.memory_space<vmem>>, vector<1x64xf32>,
    %c6_1062 = arith.constant 6 : index
    %c0_1063 = arith.constant 0 : index
    %653 = vector.load %arg16[%c6_1062, %c0_1063] : memref<16x64xf32, #tpu.memory_space<vmem>>, vector<1x64xf32>
    %c0_1064 = arith.constant 0 : index
    %c384 = arith.constant 384 : index
    %654 = vector.load %arg13[%c0_1064, %c384] : memref<2x512xf32, #tpu.memory_space<vmem>>, vector<1x64xf32>
    tpu.vector_store %arg13[%c0_1064, %c384], %653 {strides = array<i32>} : memref<2x512xf32, #tpu.memory_space<vmem>>, vector<1x64xf32>,
    %c7_1065 = arith.constant 7 : index
    %c0_1066 = arith.constant 0 : index
    %655 = vector.load %arg16[%c7_1065, %c0_1066] : memref<16x64xf32, #tpu.memory_space<vmem>>, vector<1x64xf32>
    %c0_1067 = arith.constant 0 : index
    %c448 = arith.constant 448 : index
    %656 = vector.load %arg13[%c0_1067, %c448] : memref<2x512xf32, #tpu.memory_space<vmem>>, vector<1x64xf32>
    tpu.vector_store %arg13[%c0_1067, %c448], %655 {strides = array<i32>} : memref<2x512xf32, #tpu.memory_space<vmem>>, vector<1x64xf32>,
    %c8_1068 = arith.constant 8 : index
    %c0_1069 = arith.constant 0 : index
    %657 = vector.load %arg16[%c8_1068, %c0_1069] : memref<16x64xf32, #tpu.memory_space<vmem>>, vector<1x64xf32>
    %c1_1070 = arith.constant 1 : index
    %c0_1071 = arith.constant 0 : index
    %658 = vector.load %arg13[%c1_1070, %c0_1071] : memref<2x512xf32, #tpu.memory_space<vmem>>, vector<1x64xf32>
    tpu.vector_store %arg13[%c1_1070, %c0_1071], %657 {strides = array<i32>} : memref<2x512xf32, #tpu.memory_space<vmem>>, vector<1x64xf32>,
    %c9_1072 = arith.constant 9 : index
    %c0_1073 = arith.constant 0 : index
    %659 = vector.load %arg16[%c9_1072, %c0_1073] : memref<16x64xf32, #tpu.memory_space<vmem>>, vector<1x64xf32>
    %c1_1074 = arith.constant 1 : index
    %c64_1075 = arith.constant 64 : index
    %660 = vector.load %arg13[%c1_1074, %c64_1075] : memref<2x512xf32, #tpu.memory_space<vmem>>, vector<1x64xf32>
    tpu.vector_store %arg13[%c1_1074, %c64_1075], %659 {strides = array<i32>} : memref<2x512xf32, #tpu.memory_space<vmem>>, vector<1x64xf32>,
    %c10_1076 = arith.constant 10 : index
    %c0_1077 = arith.constant 0 : index
    %661 = vector.load %arg16[%c10_1076, %c0_1077] : memref<16x64xf32, #tpu.memory_space<vmem>>, vector<1x64xf32>
    %c1_1078 = arith.constant 1 : index
    %c128_1079 = arith.constant 128 : index
    %662 = vector.load %arg13[%c1_1078, %c128_1079] : memref<2x512xf32, #tpu.memory_space<vmem>>, vector<1x64xf32>
    tpu.vector_store %arg13[%c1_1078, %c128_1079], %661 {strides = array<i32>} : memref<2x512xf32, #tpu.memory_space<vmem>>, vector<1x64xf32>,
    %c11_1080 = arith.constant 11 : index
    %c0_1081 = arith.constant 0 : index
    %663 = vector.load %arg16[%c11_1080, %c0_1081] : memref<16x64xf32, #tpu.memory_space<vmem>>, vector<1x64xf32>
    %c1_1082 = arith.constant 1 : index
    %c192_1083 = arith.constant 192 : index
    %664 = vector.load %arg13[%c1_1082, %c192_1083] : memref<2x512xf32, #tpu.memory_space<vmem>>, vector<1x64xf32>
    tpu.vector_store %arg13[%c1_1082, %c192_1083], %663 {strides = array<i32>} : memref<2x512xf32, #tpu.memory_space<vmem>>, vector<1x64xf32>,
    %c12_1084 = arith.constant 12 : index
    %c0_1085 = arith.constant 0 : index
    %665 = vector.load %arg16[%c12_1084, %c0_1085] : memref<16x64xf32, #tpu.memory_space<vmem>>, vector<1x64xf32>
    %c1_1086 = arith.constant 1 : index
    %c256_1087 = arith.constant 256 : index
    %666 = vector.load %arg13[%c1_1086, %c256_1087] : memref<2x512xf32, #tpu.memory_space<vmem>>, vector<1x64xf32>
    tpu.vector_store %arg13[%c1_1086, %c256_1087], %665 {strides = array<i32>} : memref<2x512xf32, #tpu.memory_space<vmem>>, vector<1x64xf32>,
    %c13_1088 = arith.constant 13 : index
    %c0_1089 = arith.constant 0 : index
    %667 = vector.load %arg16[%c13_1088, %c0_1089] : memref<16x64xf32, #tpu.memory_space<vmem>>, vector<1x64xf32>
    %c1_1090 = arith.constant 1 : index
    %c320_1091 = arith.constant 320 : index
    %668 = vector.load %arg13[%c1_1090, %c320_1091] : memref<2x512xf32, #tpu.memory_space<vmem>>, vector<1x64xf32>
    tpu.vector_store %arg13[%c1_1090, %c320_1091], %667 {strides = array<i32>} : memref<2x512xf32, #tpu.memory_space<vmem>>, vector<1x64xf32>,
    %c14_1092 = arith.constant 14 : index
    %c0_1093 = arith.constant 0 : index
    %669 = vector.load %arg16[%c14_1092, %c0_1093] : memref<16x64xf32, #tpu.memory_space<vmem>>, vector<1x64xf32>
    %c1_1094 = arith.constant 1 : index
    %c384_1095 = arith.constant 384 : index
    %670 = vector.load %arg13[%c1_1094, %c384_1095] : memref<2x512xf32, #tpu.memory_space<vmem>>, vector<1x64xf32>
    tpu.vector_store %arg13[%c1_1094, %c384_1095], %669 {strides = array<i32>} : memref<2x512xf32, #tpu.memory_space<vmem>>, vector<1x64xf32>,
    %c15_1096 = arith.constant 15 : index
    %c0_1097 = arith.constant 0 : index
    %671 = vector.load %arg16[%c15_1096, %c0_1097] : memref<16x64xf32, #tpu.memory_space<vmem>>, vector<1x64xf32>
    %c1_1098 = arith.constant 1 : index
    %c448_1099 = arith.constant 448 : index
    %672 = vector.load %arg13[%c1_1098, %c448_1099] : memref<2x512xf32, #tpu.memory_space<vmem>>, vector<1x64xf32>
    tpu.vector_store %arg13[%c1_1098, %c448_1099], %671 {strides = array<i32>} : memref<2x512xf32, #tpu.memory_space<vmem>>, vector<1x64xf32>,
    %c0_1100 = arith.constant 0 : index
    %c0_1101 = arith.constant 0 : index
    %673 = vector.load %arg13[%c0_1100, %c0_1101] : memref<2x512xf32, #tpu.memory_space<vmem>>, vector<2x512xf32>
    %c0_1102 = arith.constant 0 : index
    %c0_1103 = arith.constant 0 : index
    %674 = vector.load %arg8[%c0_1102, %c0_1103] : memref<512x1xf32, #tpu.memory_space<vmem>>, vector<512x1xf32>
    %cst_1104 = arith.constant dense<0.000000e+00> : vector<2x1xf32>
    %675 = tpu.matmul %673, %674, %cst_1104 {dimension_numbers = #tpu.dot_dimension_numbers<[1], [0], [0], [1], [0, 0, 1, 1], [], []>} : vector<2x512xf32>, vector<512x1xf32>, vector<2x1xf32> -> vector<2x1xf32>
    %676 = math.absf %675 : vector<2x1xf32>
    %cst_1105 = arith.constant 0.000000e+00 : f32
    %677 = vector.broadcast %cst_1105 : f32 to vector<2x1xf32>
    %678 = arith.subf %677, %676 : vector<2x1xf32>
    %679 = math.exp %678 : vector<2x1xf32>
    %cst_1106 = arith.constant 0.000000e+00 : f32
    %680 = vector.broadcast %cst_1106 : f32 to vector<2x1xf32>
    %681 = arith.cmpf oge, %675, %680 : vector<2x1xf32>
    %cst_1107 = arith.constant 1.000000e+00 : f32
    %682 = vector.broadcast %cst_1107 : f32 to vector<2x1xf32>
    %683 = arith.select %681, %682, %679 : vector<2x1xi1>, vector<2x1xf32>
    %cst_1108 = arith.constant 1.000000e+00 : f32
    %684 = vector.broadcast %cst_1108 : f32 to vector<2x1xf32>
    %685 = arith.addf %684, %679 : vector<2x1xf32>
    %686 = tpu.reciprocal %685 : vector<2x1xf32> -> vector<2x1xf32>
    %687 = arith.mulf %683, %686 : vector<2x1xf32>
    %c0_1109 = arith.constant 0 : index
    %c0_1110 = arith.constant 0 : index
    %688 = vector.load %arg9[%c0_1109, %c0_1110] : memref<2x1xf32, #tpu.memory_space<vmem>>, vector<2x1xf32>
    tpu.vector_store %arg9[%c0_1109, %c0_1110], %687 {strides = array<i32>} : memref<2x1xf32, #tpu.memory_space<vmem>>, vector<2x1xf32>,
    return
  }
}

</mosaic_0001>

<llo_original>
// kernel: _lambda_.1
$region0: #{_lambda_.1}
  #allocation0 [shape = 'u32[]', space=smem, size = 0x4, offset = 0x4, fixed_abs, tag = 'smem constant byte address 0x4 - core index']
  #allocation1 [shape = 'u32[72,128]{1,0:T(1,128)}', space=vmem, size = 0x9000, scoped, tag = 'internal scratch']
  #allocation2 [shape = 'f32[128,16]{1,0:T(8,128)}', space=vmem, size = 0x10000, scoped, tag = 'scratch operand']
  #allocation3 [shape = 'f32[32,128]{1,0:T(8,128)}', space=vmem, size = 0x4000, scoped, tag = 'scratch operand']
  #allocation4 [shape = 'f32[8,256]{1,0:T(8,128)}', space=vmem, size = 0x2000, scoped, tag = 'scratch operand']
  #allocation5 [shape = 'f32[2,512]{1,0:T(2,128)}', space=vmem, size = 0x1000, scoped, tag = 'scratch operand']
  #allocation6 [shape = 'f32[100,16]{1,0:T(8,128)}', space=vmem, size = 0xd000, scoped, tag = 'scratch operand']
  #allocation7 [shape = 'f32[36,32]{1,0:T(8,128)}', space=vmem, size = 0x5000, scoped, tag = 'scratch operand']
  #allocation8 [shape = 'f32[16,64]{1,0:T(8,128)}', space=vmem, size = 0x2000, scoped, tag = 'scratch operand']
  #allocation9 [shape = 'f32[128,8]{1,0:T(8,128)}', space=vmem, size = 0x10000, scoped, tag = 'scratch operand']
  #allocation10 [shape = 'f32[32,16]{1,0:T(8,128)}', space=vmem, size = 0x4000, scoped, tag = 'scratch operand']
  #allocation11 [shape = 'f32[8,32]{1,0:T(8,128)}', space=vmem, size = 0x1000, scoped, tag = 'scratch operand']
  %s0 = inlined_call_operand.vmem [shape: f32[324,2], index: 0, kind: input, shape index: {}]
  %s1 = inlined_call_operand.vmem [shape: f32[16,8], index: 1, kind: input, shape index: {}]
  %s2 = inlined_call_operand.vmem [shape: f32[128,16], index: 2, kind: input, shape index: {}]
  %s3 = inlined_call_operand.vmem [shape: f32[1,16], index: 3, kind: input, shape index: {}]
  %s4 = inlined_call_operand.vmem [shape: f32[1,16], index: 4, kind: input, shape index: {}]
  %s5 = inlined_call_operand.vmem [shape: f32[256,32], index: 5, kind: input, shape index: {}]
  %s6 = inlined_call_operand.vmem [shape: f32[1,32], index: 6, kind: input, shape index: {}]
  %s7 = inlined_call_operand.vmem [shape: f32[1,32], index: 7, kind: input, shape index: {}]
  %s8 = inlined_call_operand.hbm [shape: f32[512,1], index: 8, kind: input, shape index: {}]
  %s9 = inlined_call_operand.vmem [shape: f32[2,1], index: 9, kind: output, shape index: {}]
  %s10 = sld [smem:[#allocation0]]
  $region50: #{_lambda_.1} parent=0
    _
  %s12 = ssub.s32 1, %s10
  %s13 = scalar_select 0, %s12, %s10
  $region1: #{_lambda_.1} parent=0
    #allocation12 [shape = 'u8[262144]{0}', space=vmem, size = 0x40000, scoped, tag = 'input window, operand 8, single buffered']
    #allocation13 [shape = 's32[1]{0}', space=sflag, size = 0x4, scoped, tag = 'scoped memory for _lambda_.1']
    %14 = vsyncpa [#allocation13], 0
    // Predicated region
    $region2: #{_lambda_.1} parent=1 // pred_check
      _
    $region3: #{_lambda_.1} parent=1 // pred_check_branch
      %16 = sbr.rel (0) target = $region5
    $region4: #{_lambda_.1} parent=1 // pred_region
      _
    $region5: #{_lambda_.1} parent=1 // pred_fallthru
      _
    // Predicated region
    $region6: #{_lambda_.1} parent=1 // pred_check
      _
    $region7: #{_lambda_.1} parent=1 // pred_check_branch
      %18 = sbr.rel (0) target = $region9
    $region8: #{_lambda_.1} parent=1 // pred_region
      _
    $region9: #{_lambda_.1} parent=1 // pred_fallthru
      _
    // Predicated region
    $region10: #{_lambda_.1} parent=1 // pred_check
      _
    $region11: #{_lambda_.1} parent=1 // pred_check_branch
      %20 = sbr.rel (0) target = $region13
    $region12: #{_lambda_.1} parent=1 // pred_region
      _
    $region13: #{_lambda_.1} parent=1 // pred_fallthru
      _
    // Predicated region
    $region14: #{_lambda_.1} parent=1 // pred_check
      _
    $region15: #{_lambda_.1} parent=1 // pred_check_branch
      %22 = sbr.rel (0) target = $region17
    $region16: #{_lambda_.1} parent=1 // pred_region
      _
    $region17: #{_lambda_.1} parent=1 // pred_fallthru
      _
    // Predicated region
    $region18: #{_lambda_.1} parent=1 // pred_check
      _
    $region19: #{_lambda_.1} parent=1 // pred_check_branch
      %24 = sbr.rel (0) target = $region21
    $region20: #{_lambda_.1} parent=1 // pred_region
      _
    $region21: #{_lambda_.1} parent=1 // pred_fallthru
      _
    // Predicated region
    $region22: #{_lambda_.1} parent=1 // pred_check
      _
    $region23: #{_lambda_.1} parent=1 // pred_check_branch
      %26 = sbr.rel (0) target = $region25
    $region24: #{_lambda_.1} parent=1 // pred_region
      _
    $region25: #{_lambda_.1} parent=1 // pred_fallthru
      _
    // Predicated region
    $region26: #{_lambda_.1} parent=1 // pred_check
      _
    $region27: #{_lambda_.1} parent=1 // pred_check_branch
      %28 = sbr.rel (0) target = $region29
    $region28: #{_lambda_.1} parent=1 // pred_region
      _
    $region29: #{_lambda_.1} parent=1 // pred_fallthru
      _
    // Predicated region
    $region30: #{_lambda_.1} parent=1 // pred_check
      _
    $region31: #{_lambda_.1} parent=1 // pred_check_branch
      %30 = sbr.rel (0) target = $region33
    $region32: #{_lambda_.1} parent=1 // pred_region
      _
    $region33: #{_lambda_.1} parent=1 // pred_fallthru
      _
    // Predicated region
    $region34: #{_lambda_.1} parent=1 // pred_check
      _
    $region35: #{_lambda_.1} parent=1 // pred_check_branch
      %32 = sbr.rel (0) target = $region37
    $region36: #{_lambda_.1} parent=1 // pred_region
      %34 = vsyncadd [#allocation13], 0
      %s35 = sshll.u32 %s8, 4
      %s36 = int_to_ptr.hbm [resolvable:$true] %s35
      %s37 = sshll.u32 [#allocation12], 4
      %s38 = int_to_ptr.vmem [resolvable:$true] %s37
      %43 = dma.hbm_to_vmem [thread:$0]  %s36, 8192, %s38, [#allocation13], 128, 128, 8
    $region37: #{_lambda_.1} parent=1 // pred_fallthru
      _
    // Predicated region
    $region38: #{_lambda_.1} parent=1 // pred_check
      _
    $region39: #{_lambda_.1} parent=1 // pred_check_branch
      %45 = sbr.rel (0) target = $region41
    $region40: #{_lambda_.1} parent=1 // pred_region
      %47 = dma.done [#allocation13], 8192
    $region41: #{_lambda_.1} parent=1 // pred_fallthru
      _
    %vm48 = vcmask 130048
    %49 = vst.msk [vmem:[#allocation6] sm:$0xff] %vm48, 0.0
    %50 = vst.msk [vmem:[#allocation6 + $0x8] sm:$0xff] %vm48, 0.0
    %51 = vst.msk [vmem:[#allocation6 + $0x10] sm:$0xff] %vm48, 0.0
    %52 = vst.msk [vmem:[#allocation6 + $0x18] sm:$0xff] %vm48, 0.0
    %53 = vst.msk [vmem:[#allocation6 + $0x20] sm:$0xff] %vm48, 0.0
    %54 = vst.msk [vmem:[#allocation6 + $0x28] sm:$0xff] %vm48, 0.0
    %55 = vst.msk [vmem:[#allocation6 + $0x30] sm:$0xff] %vm48, 0.0
    %56 = vst.msk [vmem:[#allocation6 + $0x38] sm:$0xff] %vm48, 0.0
    %57 = vst.msk [vmem:[#allocation6 + $0x40] sm:$0xff] %vm48, 0.0
    %58 = vst.msk [vmem:[#allocation6 + $0x48] sm:$0xff] %vm48, 0.0
    %59 = vst.msk [vmem:[#allocation6 + $0x50] sm:$0xff] %vm48, 0.0
    %60 = vst.msk [vmem:[#allocation6 + $0x58] sm:$0xff] %vm48, 0.0
    %vm61 = vcmask 125952
    %62 = vst.msk [vmem:[#allocation6 + $0x60] sm:$0xf] %vm61, 0.0
    %vm63 = vcmask 261120
    %64 = vst.msk [vmem:[#allocation7] sm:$0xff] %vm63, 0.0
    %65 = vst.msk [vmem:[#allocation7 + $0x8] sm:$0xff] %vm63, 0.0
    %66 = vst.msk [vmem:[#allocation7 + $0x10] sm:$0xff] %vm63, 0.0
    %67 = vst.msk [vmem:[#allocation7 + $0x18] sm:$0xff] %vm63, 0.0
    %vm68 = vcmask 257024
    %69 = vst.msk [vmem:[#allocation7 + $0x20] sm:$0xf] %vm68, 0.0
    %vm70 = vcmask 523264
    %71 = vst.msk [vmem:[#allocation8] sm:$0xff] %vm70, 0.0
    %72 = vst.msk [vmem:[#allocation8 + $0x8] sm:$0xff] %vm70, 0.0
    %v73 = vld [vmem:[%s0] sm:$0xff]
    %vm74 = vcmask 15360
    %75 = vst.msk [vmem:[#allocation2] sm:$0xff] %vm74, %v73
    %v76 = vld [vmem:[%s0 + $0x1] sm:$0xff]
    %78 = vrot.lane.b32.xlu0 %v76, 2
    %v79 = vpop.permute.xlu0 %78
    %vm81 = vcmask 31760
    %82 = vst.msk [vmem:[#allocation2] sm:$0xff] %vm81, %v79
    %v83 = vld [vmem:[%s0 + $0x9] sm:$0xff]
    %85 = vrot.lane.b32.xlu0 %v83, 4
    %v86 = vpop.permute.xlu0 %85
    %vm88 = vcmask 48160
    %89 = vst.msk [vmem:[#allocation2] sm:$0xff] %vm88, %v86
    %v90 = vld [vmem:[%s0 + $0xa] sm:$0xff]
    %92 = vrot.lane.b32.xlu0 %v90, 6
    %v93 = vpop.permute.xlu0 %92
    %vm95 = vcmask 64560
    %96 = vst.msk [vmem:[#allocation2] sm:$0xff] %vm95, %v93
    %v97 = vld [vmem:[%s0 + $0x12] sm:$0xff]
    %99 = vrot.lane.b32.xlu0 %v97, 8
    %v100 = vpop.permute.xlu0 %99
    %vm102 = vcmask 80960
    %103 = vst.msk [vmem:[#allocation2] sm:$0xff] %vm102, %v100
    %v104 = vld [vmem:[%s0 + $0x13] sm:$0xff]
    %106 = vrot.lane.b32.xlu0 %v104, 10
    %v107 = vpop.permute.xlu0 %106
    %vm109 = vcmask 97360
    %110 = vst.msk [vmem:[#allocation2] sm:$0xff] %vm109, %v107
    %v111 = vld [vmem:[%s0 + $0x1b] sm:$0xff]
    %113 = vrot.lane.b32.xlu0 %v111, 12
    %v114 = vpop.permute.xlu0 %113
    %vm116 = vcmask 113760
    %117 = vst.msk [vmem:[#allocation2] sm:$0xff] %vm116, %v114
    %v118 = vld [vmem:[%s0 + $0x1c] sm:$0xff]
    %120 = vrot.lane.b32.xlu0 %v118, 14
    %v121 = vpop.permute.xlu0 %120
    %vm123 = vcmask 130160
    %124 = vst.msk [vmem:[#allocation2] sm:$0xff] %vm123, %v121
    %v125 = vld [vmem:[%s0 + $0x12] sm:$0xff]
    %126 = vst.msk [vmem:[#allocation2 + $0x8] sm:$0xff] %vm74, %v125
    %v127 = vld [vmem:[%s0 + $0x13] sm:$0xff]
    %129 = vrot.lane.b32.xlu0 %v127, 2
    %v130 = vpop.permute.xlu0 %129
    %132 = vst.msk [vmem:[#allocation2 + $0x8] sm:$0xff] %vm81, %v130
    %v133 = vld [vmem:[%s0 + $0x1b] sm:$0xff]
    %135 = vrot.lane.b32.xlu0 %v133, 4
    %v136 = vpop.permute.xlu0 %135
    %138 = vst.msk [vmem:[#allocation2 + $0x8] sm:$0xff] %vm88, %v136
    %v139 = vld [vmem:[%s0 + $0x1c] sm:$0xff]
    %141 = vrot.lane.b32.xlu0 %v139, 6
    %v142 = vpop.permute.xlu0 %141
    %144 = vst.msk [vmem:[#allocation2 + $0x8] sm:$0xff] %vm95, %v142
    %v145 = vld [vmem:[%s0 + $0x24] sm:$0xff]
    %147 = vrot.lane.b32.xlu0 %v145, 8
    %v148 = vpop.permute.xlu0 %147
    %150 = vst.msk [vmem:[#allocation2 + $0x8] sm:$0xff] %vm102, %v148
    %v151 = vld [vmem:[%s0 + $0x25] sm:$0xff]
    %153 = vrot.lane.b32.xlu0 %v151, 10
    %v154 = vpop.permute.xlu0 %153
    %156 = vst.msk [vmem:[#allocation2 + $0x8] sm:$0xff] %vm109, %v154
    %v157 = vld [vmem:[%s0 + $0x2d] sm:$0xff]
    %159 = vrot.lane.b32.xlu0 %v157, 12
    %v160 = vpop.permute.xlu0 %159
    %162 = vst.msk [vmem:[#allocation2 + $0x8] sm:$0xff] %vm116, %v160
    %v163 = vld [vmem:[%s0 + $0x2e] sm:$0xff]
    %165 = vrot.lane.b32.xlu0 %v163, 14
    %v166 = vpop.permute.xlu0 %165
    %168 = vst.msk [vmem:[#allocation2 + $0x8] sm:$0xff] %vm123, %v166
    %v169 = vld [vmem:[%s0 + $0x24] sm:$0xff]
    %170 = vst.msk [vmem:[#allocation2 + $0x10] sm:$0xff] %vm74, %v169
    %v171 = vld [vmem:[%s0 + $0x25] sm:$0xff]
    %173 = vrot.lane.b32.xlu0 %v171, 2
    %v174 = vpop.permute.xlu0 %173
    %176 = vst.msk [vmem:[#allocation2 + $0x10] sm:$0xff] %vm81, %v174
    %v177 = vld [vmem:[%s0 + $0x2d] sm:$0xff]
    %179 = vrot.lane.b32.xlu0 %v177, 4
    %v180 = vpop.permute.xlu0 %179
    %182 = vst.msk [vmem:[#allocation2 + $0x10] sm:$0xff] %vm88, %v180
    %v183 = vld [vmem:[%s0 + $0x2e] sm:$0xff]
    %185 = vrot.lane.b32.xlu0 %v183, 6
    %v186 = vpop.permute.xlu0 %185
    %188 = vst.msk [vmem:[#allocation2 + $0x10] sm:$0xff] %vm95, %v186
    %v189 = vld [vmem:[%s0 + $0x36] sm:$0xff]
    %191 = vrot.lane.b32.xlu0 %v189, 8
    %v192 = vpop.permute.xlu0 %191
    %194 = vst.msk [vmem:[#allocation2 + $0x10] sm:$0xff] %vm102, %v192
    %v195 = vld [vmem:[%s0 + $0x37] sm:$0xff]
    %197 = vrot.lane.b32.xlu0 %v195, 10
    %v198 = vpop.permute.xlu0 %197
    %200 = vst.msk [vmem:[#allocation2 + $0x10] sm:$0xff] %vm109, %v198
    %v201 = vld [vmem:[%s0 + $0x3f] sm:$0xff]
    %203 = vrot.lane.b32.xlu0 %v201, 12
    %v204 = vpop.permute.xlu0 %203
    %206 = vst.msk [vmem:[#allocation2 + $0x10] sm:$0xff] %vm116, %v204
    %v207 = vld [vmem:[%s0 + $0x40] sm:$0xff]
    %209 = vrot.lane.b32.xlu0 %v207, 14
    %v210 = vpop.permute.xlu0 %209
    %212 = vst.msk [vmem:[#allocation2 + $0x10] sm:$0xff] %vm123, %v210
    %v213 = vld [vmem:[%s0 + $0x36] sm:$0xff]
    %214 = vst.msk [vmem:[#allocation2 + $0x18] sm:$0xff] %vm74, %v213
    %v215 = vld [vmem:[%s0 + $0x37] sm:$0xff]
    %217 = vrot.lane.b32.xlu0 %v215, 2
    %v218 = vpop.permute.xlu0 %217
    %220 = vst.msk [vmem:[#allocation2 + $0x18] sm:$0xff] %vm81, %v218
    %v221 = vld [vmem:[%s0 + $0x3f] sm:$0xff]
    %223 = vrot.lane.b32.xlu0 %v221, 4
    %v224 = vpop.permute.xlu0 %223
    %226 = vst.msk [vmem:[#allocation2 + $0x18] sm:$0xff] %vm88, %v224
    %v227 = vld [vmem:[%s0 + $0x40] sm:$0xff]
    %229 = vrot.lane.b32.xlu0 %v227, 6
    %v230 = vpop.permute.xlu0 %229
    %232 = vst.msk [vmem:[#allocation2 + $0x18] sm:$0xff] %vm95, %v230
    %v233 = vld [vmem:[%s0 + $0x48] sm:$0xff]
    %235 = vrot.lane.b32.xlu0 %v233, 8
    %v236 = vpop.permute.xlu0 %235
    %238 = vst.msk [vmem:[#allocation2 + $0x18] sm:$0xff] %vm102, %v236
    %v239 = vld [vmem:[%s0 + $0x49] sm:$0xff]
    %241 = vrot.lane.b32.xlu0 %v239, 10
    %v242 = vpop.permute.xlu0 %241
    %244 = vst.msk [vmem:[#allocation2 + $0x18] sm:$0xff] %vm109, %v242
    %v245 = vld [vmem:[%s0 + $0x51] sm:$0xff]
    %247 = vrot.lane.b32.xlu0 %v245, 12
    %v248 = vpop.permute.xlu0 %247
    %250 = vst.msk [vmem:[#allocation2 + $0x18] sm:$0xff] %vm116, %v248
    %v251 = vld [vmem:[%s0 + $0x52] sm:$0xff]
    %253 = vrot.lane.b32.xlu0 %v251, 14
    %v254 = vpop.permute.xlu0 %253
    %256 = vst.msk [vmem:[#allocation2 + $0x18] sm:$0xff] %vm123, %v254
    %v257 = vld [vmem:[%s0 + $0x48] sm:$0xff]
    %258 = vst.msk [vmem:[#allocation2 + $0x20] sm:$0xff] %vm74, %v257
    %v259 = vld [vmem:[%s0 + $0x49] sm:$0xff]
    %261 = vrot.lane.b32.xlu0 %v259, 2
    %v262 = vpop.permute.xlu0 %261
    %264 = vst.msk [vmem:[#allocation2 + $0x20] sm:$0xff] %vm81, %v262
    %v265 = vld [vmem:[%s0 + $0x51] sm:$0xff]
    %267 = vrot.lane.b32.xlu0 %v265, 4
    %v268 = vpop.permute.xlu0 %267
    %270 = vst.msk [vmem:[#allocation2 + $0x20] sm:$0xff] %vm88, %v268
    %v271 = vld [vmem:[%s0 + $0x52] sm:$0xff]
    %273 = vrot.lane.b32.xlu0 %v271, 6
    %v274 = vpop.permute.xlu0 %273
    %276 = vst.msk [vmem:[#allocation2 + $0x20] sm:$0xff] %vm95, %v274
    %v277 = vld [vmem:[%s0 + $0x5a] sm:$0xff]
    %279 = vrot.lane.b32.xlu0 %v277, 8
    %v280 = vpop.permute.xlu0 %279
    %282 = vst.msk [vmem:[#allocation2 + $0x20] sm:$0xff] %vm102, %v280
    %v283 = vld [vmem:[%s0 + $0x5b] sm:$0xff]
    %285 = vrot.lane.b32.xlu0 %v283, 10
    %v286 = vpop.permute.xlu0 %285
    %288 = vst.msk [vmem:[#allocation2 + $0x20] sm:$0xff] %vm109, %v286
    %v289 = vld [vmem:[%s0 + $0x63] sm:$0xff]
    %291 = vrot.lane.b32.xlu0 %v289, 12
    %v292 = vpop.permute.xlu0 %291
    %294 = vst.msk [vmem:[#allocation2 + $0x20] sm:$0xff] %vm116, %v292
    %v295 = vld [vmem:[%s0 + $0x64] sm:$0xff]
    %297 = vrot.lane.b32.xlu0 %v295, 14
    %v298 = vpop.permute.xlu0 %297
    %300 = vst.msk [vmem:[#allocation2 + $0x20] sm:$0xff] %vm123, %v298
    %v301 = vld [vmem:[%s0 + $0x5a] sm:$0xff]
    %302 = vst.msk [vmem:[#allocation2 + $0x28] sm:$0xff] %vm74, %v301
    %v303 = vld [vmem:[%s0 + $0x5b] sm:$0xff]
    %305 = vrot.lane.b32.xlu0 %v303, 2
    %v306 = vpop.permute.xlu0 %305
    %308 = vst.msk [vmem:[#allocation2 + $0x28] sm:$0xff] %vm81, %v306
    %v309 = vld [vmem:[%s0 + $0x63] sm:$0xff]
    %311 = vrot.lane.b32.xlu0 %v309, 4
    %v312 = vpop.permute.xlu0 %311
    %314 = vst.msk [vmem:[#allocation2 + $0x28] sm:$0xff] %vm88, %v312
    %v315 = vld [vmem:[%s0 + $0x64] sm:$0xff]
    %317 = vrot.lane.b32.xlu0 %v315, 6
    %v318 = vpop.permute.xlu0 %317
    %320 = vst.msk [vmem:[#allocation2 + $0x28] sm:$0xff] %vm95, %v318
    %v321 = vld [vmem:[%s0 + $0x6c] sm:$0xff]
    %323 = vrot.lane.b32.xlu0 %v321, 8
    %v324 = vpop.permute.xlu0 %323
    %326 = vst.msk [vmem:[#allocation2 + $0x28] sm:$0xff] %vm102, %v324
    %v327 = vld [vmem:[%s0 + $0x6d] sm:$0xff]
    %329 = vrot.lane.b32.xlu0 %v327, 10
    %v330 = vpop.permute.xlu0 %329
    %332 = vst.msk [vmem:[#allocation2 + $0x28] sm:$0xff] %vm109, %v330
    %v333 = vld [vmem:[%s0 + $0x75] sm:$0xff]
    %335 = vrot.lane.b32.xlu0 %v333, 12
    %v336 = vpop.permute.xlu0 %335
    %338 = vst.msk [vmem:[#allocation2 + $0x28] sm:$0xff] %vm116, %v336
    %v339 = vld [vmem:[%s0 + $0x76] sm:$0xff]
    %341 = vrot.lane.b32.xlu0 %v339, 14
    %v342 = vpop.permute.xlu0 %341
    %344 = vst.msk [vmem:[#allocation2 + $0x28] sm:$0xff] %vm123, %v342
    %v345 = vld [vmem:[%s0 + $0x6c] sm:$0xff]
    %346 = vst.msk [vmem:[#allocation2 + $0x30] sm:$0xff] %vm74, %v345
    %v347 = vld [vmem:[%s0 + $0x6d] sm:$0xff]
    %349 = vrot.lane.b32.xlu0 %v347, 2
    %v350 = vpop.permute.xlu0 %349
    %352 = vst.msk [vmem:[#allocation2 + $0x30] sm:$0xff] %vm81, %v350
    %v353 = vld [vmem:[%s0 + $0x75] sm:$0xff]
    %355 = vrot.lane.b32.xlu0 %v353, 4
    %v356 = vpop.permute.xlu0 %355
    %358 = vst.msk [vmem:[#allocation2 + $0x30] sm:$0xff] %vm88, %v356
    %v359 = vld [vmem:[%s0 + $0x76] sm:$0xff]
    %361 = vrot.lane.b32.xlu0 %v359, 6
    %v362 = vpop.permute.xlu0 %361
    %364 = vst.msk [vmem:[#allocation2 + $0x30] sm:$0xff] %vm95, %v362
    %v365 = vld [vmem:[%s0 + $0x7e] sm:$0xff]
    %367 = vrot.lane.b32.xlu0 %v365, 8
    %v368 = vpop.permute.xlu0 %367
    %370 = vst.msk [vmem:[#allocation2 + $0x30] sm:$0xff] %vm102, %v368
    %v371 = vld [vmem:[%s0 + $0x7f] sm:$0xff]
    %373 = vrot.lane.b32.xlu0 %v371, 10
    %v374 = vpop.permute.xlu0 %373
    %376 = vst.msk [vmem:[#allocation2 + $0x30] sm:$0xff] %vm109, %v374
    %v377 = vld [vmem:[%s0 + $0x87] sm:$0xff]
    %379 = vrot.lane.b32.xlu0 %v377, 12
    %v380 = vpop.permute.xlu0 %379
    %382 = vst.msk [vmem:[#allocation2 + $0x30] sm:$0xff] %vm116, %v380
    %v383 = vld [vmem:[%s0 + $0x88] sm:$0xff]
    %385 = vrot.lane.b32.xlu0 %v383, 14
    %v386 = vpop.permute.xlu0 %385
    %388 = vst.msk [vmem:[#allocation2 + $0x30] sm:$0xff] %vm123, %v386
    %v389 = vld [vmem:[%s0 + $0x7e] sm:$0xff]
    %390 = vst.msk [vmem:[#allocation2 + $0x38] sm:$0xff] %vm74, %v389
    %v391 = vld [vmem:[%s0 + $0x7f] sm:$0xff]
    %393 = vrot.lane.b32.xlu0 %v391, 2
    %v394 = vpop.permute.xlu0 %393
    %396 = vst.msk [vmem:[#allocation2 + $0x38] sm:$0xff] %vm81, %v394
    %v397 = vld [vmem:[%s0 + $0x87] sm:$0xff]
    %399 = vrot.lane.b32.xlu0 %v397, 4
    %v400 = vpop.permute.xlu0 %399
    %402 = vst.msk [vmem:[#allocation2 + $0x38] sm:$0xff] %vm88, %v400
    %v403 = vld [vmem:[%s0 + $0x88] sm:$0xff]
    %405 = vrot.lane.b32.xlu0 %v403, 6
    %v406 = vpop.permute.xlu0 %405
    %408 = vst.msk [vmem:[#allocation2 + $0x38] sm:$0xff] %vm95, %v406
    %v409 = vld [vmem:[%s0 + $0x90] sm:$0xff]
    %411 = vrot.lane.b32.xlu0 %v409, 8
    %v412 = vpop.permute.xlu0 %411
    %414 = vst.msk [vmem:[#allocation2 + $0x38] sm:$0xff] %vm102, %v412
    %v415 = vld [vmem:[%s0 + $0x91] sm:$0xff]
    %417 = vrot.lane.b32.xlu0 %v415, 10
    %v418 = vpop.permute.xlu0 %417
    %420 = vst.msk [vmem:[#allocation2 + $0x38] sm:$0xff] %vm109, %v418
    %v421 = vld [vmem:[%s0 + $0x99] sm:$0xff]
    %423 = vrot.lane.b32.xlu0 %v421, 12
    %v424 = vpop.permute.xlu0 %423
    %426 = vst.msk [vmem:[#allocation2 + $0x38] sm:$0xff] %vm116, %v424
    %v427 = vld [vmem:[%s0 + $0x9a] sm:$0xff]
    %429 = vrot.lane.b32.xlu0 %v427, 14
    %v430 = vpop.permute.xlu0 %429
    %432 = vst.msk [vmem:[#allocation2 + $0x38] sm:$0xff] %vm123, %v430
    %v433 = vld [vmem:[%s0 + $0xa2] sm:$0xff]
    %434 = vst.msk [vmem:[#allocation2 + $0x40] sm:$0xff] %vm74, %v433
    %v435 = vld [vmem:[%s0 + $0xa3] sm:$0xff]
    %437 = vrot.lane.b32.xlu0 %v435, 2
    %v438 = vpop.permute.xlu0 %437
    %440 = vst.msk [vmem:[#allocation2 + $0x40] sm:$0xff] %vm81, %v438
    %v441 = vld [vmem:[%s0 + $0xab] sm:$0xff]
    %443 = vrot.lane.b32.xlu0 %v441, 4
    %v444 = vpop.permute.xlu0 %443
    %446 = vst.msk [vmem:[#allocation2 + $0x40] sm:$0xff] %vm88, %v444
    %v447 = vld [vmem:[%s0 + $0xac] sm:$0xff]
    %449 = vrot.lane.b32.xlu0 %v447, 6
    %v450 = vpop.permute.xlu0 %449
    %452 = vst.msk [vmem:[#allocation2 + $0x40] sm:$0xff] %vm95, %v450
    %v453 = vld [vmem:[%s0 + $0xb4] sm:$0xff]
    %455 = vrot.lane.b32.xlu0 %v453, 8
    %v456 = vpop.permute.xlu0 %455
    %458 = vst.msk [vmem:[#allocation2 + $0x40] sm:$0xff] %vm102, %v456
    %v459 = vld [vmem:[%s0 + $0xb5] sm:$0xff]
    %461 = vrot.lane.b32.xlu0 %v459, 10
    %v462 = vpop.permute.xlu0 %461
    %464 = vst.msk [vmem:[#allocation2 + $0x40] sm:$0xff] %vm109, %v462
    %v465 = vld [vmem:[%s0 + $0xbd] sm:$0xff]
    %467 = vrot.lane.b32.xlu0 %v465, 12
    %v468 = vpop.permute.xlu0 %467
    %470 = vst.msk [vmem:[#allocation2 + $0x40] sm:$0xff] %vm116, %v468
    %v471 = vld [vmem:[%s0 + $0xbe] sm:$0xff]
    %473 = vrot.lane.b32.xlu0 %v471, 14
    %v474 = vpop.permute.xlu0 %473
    %476 = vst.msk [vmem:[#allocation2 + $0x40] sm:$0xff] %vm123, %v474
    %v477 = vld [vmem:[%s0 + $0xb4] sm:$0xff]
    %478 = vst.msk [vmem:[#allocation2 + $0x48] sm:$0xff] %vm74, %v477
    %v479 = vld [vmem:[%s0 + $0xb5] sm:$0xff]
    %481 = vrot.lane.b32.xlu0 %v479, 2
    %v482 = vpop.permute.xlu0 %481
    %484 = vst.msk [vmem:[#allocation2 + $0x48] sm:$0xff] %vm81, %v482
    %v485 = vld [vmem:[%s0 + $0xbd] sm:$0xff]
    %487 = vrot.lane.b32.xlu0 %v485, 4
    %v488 = vpop.permute.xlu0 %487
    %490 = vst.msk [vmem:[#allocation2 + $0x48] sm:$0xff] %vm88, %v488
    %v491 = vld [vmem:[%s0 + $0xbe] sm:$0xff]
    %493 = vrot.lane.b32.xlu0 %v491, 6
    %v494 = vpop.permute.xlu0 %493
    %496 = vst.msk [vmem:[#allocation2 + $0x48] sm:$0xff] %vm95, %v494
    %v497 = vld [vmem:[%s0 + $0xc6] sm:$0xff]
    %499 = vrot.lane.b32.xlu0 %v497, 8
    %v500 = vpop.permute.xlu0 %499
    %502 = vst.msk [vmem:[#allocation2 + $0x48] sm:$0xff] %vm102, %v500
    %v503 = vld [vmem:[%s0 + $0xc7] sm:$0xff]
    %505 = vrot.lane.b32.xlu0 %v503, 10
    %v506 = vpop.permute.xlu0 %505
    %508 = vst.msk [vmem:[#allocation2 + $0x48] sm:$0xff] %vm109, %v506
    %v509 = vld [vmem:[%s0 + $0xcf] sm:$0xff]
    %511 = vrot.lane.b32.xlu0 %v509, 12
    %v512 = vpop.permute.xlu0 %511
    %514 = vst.msk [vmem:[#allocation2 + $0x48] sm:$0xff] %vm116, %v512
    %v515 = vld [vmem:[%s0 + $0xd0] sm:$0xff]
    %517 = vrot.lane.b32.xlu0 %v515, 14
    %v518 = vpop.permute.xlu0 %517
    %520 = vst.msk [vmem:[#allocation2 + $0x48] sm:$0xff] %vm123, %v518
    %v521 = vld [vmem:[%s0 + $0xc6] sm:$0xff]
    %522 = vst.msk [vmem:[#allocation2 + $0x50] sm:$0xff] %vm74, %v521
    %v523 = vld [vmem:[%s0 + $0xc7] sm:$0xff]
    %525 = vrot.lane.b32.xlu0 %v523, 2
    %v526 = vpop.permute.xlu0 %525
    %528 = vst.msk [vmem:[#allocation2 + $0x50] sm:$0xff] %vm81, %v526
    %v529 = vld [vmem:[%s0 + $0xcf] sm:$0xff]
    %531 = vrot.lane.b32.xlu0 %v529, 4
    %v532 = vpop.permute.xlu0 %531
    %534 = vst.msk [vmem:[#allocation2 + $0x50] sm:$0xff] %vm88, %v532
    %v535 = vld [vmem:[%s0 + $0xd0] sm:$0xff]
    %537 = vrot.lane.b32.xlu0 %v535, 6
    %v538 = vpop.permute.xlu0 %537
    %540 = vst.msk [vmem:[#allocation2 + $0x50] sm:$0xff] %vm95, %v538
    %v541 = vld [vmem:[%s0 + $0xd8] sm:$0xff]
    %543 = vrot.lane.b32.xlu0 %v541, 8
    %v544 = vpop.permute.xlu0 %543
    %546 = vst.msk [vmem:[#allocation2 + $0x50] sm:$0xff] %vm102, %v544
    %v547 = vld [vmem:[%s0 + $0xd9] sm:$0xff]
    %549 = vrot.lane.b32.xlu0 %v547, 10
    %v550 = vpop.permute.xlu0 %549
    %552 = vst.msk [vmem:[#allocation2 + $0x50] sm:$0xff] %vm109, %v550
    %v553 = vld [vmem:[%s0 + $0xe1] sm:$0xff]
    %555 = vrot.lane.b32.xlu0 %v553, 12
    %v556 = vpop.permute.xlu0 %555
    %558 = vst.msk [vmem:[#allocation2 + $0x50] sm:$0xff] %vm116, %v556
    %v559 = vld [vmem:[%s0 + $0xe2] sm:$0xff]
    %561 = vrot.lane.b32.xlu0 %v559, 14
    %v562 = vpop.permute.xlu0 %561
    %564 = vst.msk [vmem:[#allocation2 + $0x50] sm:$0xff] %vm123, %v562
    %v565 = vld [vmem:[%s0 + $0xd8] sm:$0xff]
    %566 = vst.msk [vmem:[#allocation2 + $0x58] sm:$0xff] %vm74, %v565
    %v567 = vld [vmem:[%s0 + $0xd9] sm:$0xff]
    %569 = vrot.lane.b32.xlu0 %v567, 2
    %v570 = vpop.permute.xlu0 %569
    %572 = vst.msk [vmem:[#allocation2 + $0x58] sm:$0xff] %vm81, %v570
    %v573 = vld [vmem:[%s0 + $0xe1] sm:$0xff]
    %575 = vrot.lane.b32.xlu0 %v573, 4
    %v576 = vpop.permute.xlu0 %575
    %578 = vst.msk [vmem:[#allocation2 + $0x58] sm:$0xff] %vm88, %v576
    %v579 = vld [vmem:[%s0 + $0xe2] sm:$0xff]
    %581 = vrot.lane.b32.xlu0 %v579, 6
    %v582 = vpop.permute.xlu0 %581
    %584 = vst.msk [vmem:[#allocation2 + $0x58] sm:$0xff] %vm95, %v582
    %v585 = vld [vmem:[%s0 + $0xea] sm:$0xff]
    %587 = vrot.lane.b32.xlu0 %v585, 8
    %v588 = vpop.permute.xlu0 %587
    %590 = vst.msk [vmem:[#allocation2 + $0x58] sm:$0xff] %vm102, %v588
    %v591 = vld [vmem:[%s0 + $0xeb] sm:$0xff]
    %593 = vrot.lane.b32.xlu0 %v591, 10
    %v594 = vpop.permute.xlu0 %593
    %596 = vst.msk [vmem:[#allocation2 + $0x58] sm:$0xff] %vm109, %v594
    %v597 = vld [vmem:[%s0 + $0xf3] sm:$0xff]
    %599 = vrot.lane.b32.xlu0 %v597, 12
    %v600 = vpop.permute.xlu0 %599
    %602 = vst.msk [vmem:[#allocation2 + $0x58] sm:$0xff] %vm116, %v600
    %v603 = vld [vmem:[%s0 + $0xf4] sm:$0xff]
    %605 = vrot.lane.b32.xlu0 %v603, 14
    %v606 = vpop.permute.xlu0 %605
    %608 = vst.msk [vmem:[#allocation2 + $0x58] sm:$0xff] %vm123, %v606
    %v609 = vld [vmem:[%s0 + $0xea] sm:$0xff]
    %610 = vst.msk [vmem:[#allocation2 + $0x60] sm:$0xff] %vm74, %v609
    %v611 = vld [vmem:[%s0 + $0xeb] sm:$0xff]
    %613 = vrot.lane.b32.xlu0 %v611, 2
    %v614 = vpop.permute.xlu0 %613
    %616 = vst.msk [vmem:[#allocation2 + $0x60] sm:$0xff] %vm81, %v614
    %v617 = vld [vmem:[%s0 + $0xf3] sm:$0xff]
    %619 = vrot.lane.b32.xlu0 %v617, 4
    %v620 = vpop.permute.xlu0 %619
    %622 = vst.msk [vmem:[#allocation2 + $0x60] sm:$0xff] %vm88, %v620
    %v623 = vld [vmem:[%s0 + $0xf4] sm:$0xff]
    %625 = vrot.lane.b32.xlu0 %v623, 6
    %v626 = vpop.permute.xlu0 %625
    %628 = vst.msk [vmem:[#allocation2 + $0x60] sm:$0xff] %vm95, %v626
    %v629 = vld [vmem:[%s0 + $0xfc] sm:$0xff]
    %631 = vrot.lane.b32.xlu0 %v629, 8
    %v632 = vpop.permute.xlu0 %631
    %634 = vst.msk [vmem:[#allocation2 + $0x60] sm:$0xff] %vm102, %v632
    %v635 = vld [vmem:[%s0 + $0xfd] sm:$0xff]
    %637 = vrot.lane.b32.xlu0 %v635, 10
    %v638 = vpop.permute.xlu0 %637
    %640 = vst.msk [vmem:[#allocation2 + $0x60] sm:$0xff] %vm109, %v638
    %v641 = vld [vmem:[%s0 + $0x105] sm:$0xff]
    %643 = vrot.lane.b32.xlu0 %v641, 12
    %v644 = vpop.permute.xlu0 %643
    %646 = vst.msk [vmem:[#allocation2 + $0x60] sm:$0xff] %vm116, %v644
    %v647 = vld [vmem:[%s0 + $0x106] sm:$0xff]
    %649 = vrot.lane.b32.xlu0 %v647, 14
    %v650 = vpop.permute.xlu0 %649
    %652 = vst.msk [vmem:[#allocation2 + $0x60] sm:$0xff] %vm123, %v650
    %v653 = vld [vmem:[%s0 + $0xfc] sm:$0xff]
    %654 = vst.msk [vmem:[#allocation2 + $0x68] sm:$0xff] %vm74, %v653
    %v655 = vld [vmem:[%s0 + $0xfd] sm:$0xff]
    %657 = vrot.lane.b32.xlu0 %v655, 2
    %v658 = vpop.permute.xlu0 %657
    %660 = vst.msk [vmem:[#allocation2 + $0x68] sm:$0xff] %vm81, %v658
    %v661 = vld [vmem:[%s0 + $0x105] sm:$0xff]
    %663 = vrot.lane.b32.xlu0 %v661, 4
    %v664 = vpop.permute.xlu0 %663
    %666 = vst.msk [vmem:[#allocation2 + $0x68] sm:$0xff] %vm88, %v664
    %v667 = vld [vmem:[%s0 + $0x106] sm:$0xff]
    %669 = vrot.lane.b32.xlu0 %v667, 6
    %v670 = vpop.permute.xlu0 %669
    %672 = vst.msk [vmem:[#allocation2 + $0x68] sm:$0xff] %vm95, %v670
    %v673 = vld [vmem:[%s0 + $0x10e] sm:$0xff]
    %675 = vrot.lane.b32.xlu0 %v673, 8
    %v676 = vpop.permute.xlu0 %675
    %678 = vst.msk [vmem:[#allocation2 + $0x68] sm:$0xff] %vm102, %v676
    %v679 = vld [vmem:[%s0 + $0x10f] sm:$0xff]
    %681 = vrot.lane.b32.xlu0 %v679, 10
    %v682 = vpop.permute.xlu0 %681
    %684 = vst.msk [vmem:[#allocation2 + $0x68] sm:$0xff] %vm109, %v682
    %v685 = vld [vmem:[%s0 + $0x117] sm:$0xff]
    %687 = vrot.lane.b32.xlu0 %v685, 12
    %v688 = vpop.permute.xlu0 %687
    %690 = vst.msk [vmem:[#allocation2 + $0x68] sm:$0xff] %vm116, %v688
    %v691 = vld [vmem:[%s0 + $0x118] sm:$0xff]
    %693 = vrot.lane.b32.xlu0 %v691, 14
    %v694 = vpop.permute.xlu0 %693
    %696 = vst.msk [vmem:[#allocation2 + $0x68] sm:$0xff] %vm123, %v694
    %v697 = vld [vmem:[%s0 + $0x10e] sm:$0xff]
    %698 = vst.msk [vmem:[#allocation2 + $0x70] sm:$0xff] %vm74, %v697
    %v699 = vld [vmem:[%s0 + $0x10f] sm:$0xff]
    %701 = vrot.lane.b32.xlu0 %v699, 2
    %v702 = vpop.permute.xlu0 %701
    %704 = vst.msk [vmem:[#allocation2 + $0x70] sm:$0xff] %vm81, %v702
    %v705 = vld [vmem:[%s0 + $0x117] sm:$0xff]
    %707 = vrot.lane.b32.xlu0 %v705, 4
    %v708 = vpop.permute.xlu0 %707
    %710 = vst.msk [vmem:[#allocation2 + $0x70] sm:$0xff] %vm88, %v708
    %v711 = vld [vmem:[%s0 + $0x118] sm:$0xff]
    %713 = vrot.lane.b32.xlu0 %v711, 6
    %v714 = vpop.permute.xlu0 %713
    %716 = vst.msk [vmem:[#allocation2 + $0x70] sm:$0xff] %vm95, %v714
    %v717 = vld [vmem:[%s0 + $0x120] sm:$0xff]
    %719 = vrot.lane.b32.xlu0 %v717, 8
    %v720 = vpop.permute.xlu0 %719
    %722 = vst.msk [vmem:[#allocation2 + $0x70] sm:$0xff] %vm102, %v720
    %v723 = vld [vmem:[%s0 + $0x121] sm:$0xff]
    %725 = vrot.lane.b32.xlu0 %v723, 10
    %v726 = vpop.permute.xlu0 %725
    %728 = vst.msk [vmem:[#allocation2 + $0x70] sm:$0xff] %vm109, %v726
    %v729 = vld [vmem:[%s0 + $0x129] sm:$0xff]
    %731 = vrot.lane.b32.xlu0 %v729, 12
    %v732 = vpop.permute.xlu0 %731
    %734 = vst.msk [vmem:[#allocation2 + $0x70] sm:$0xff] %vm116, %v732
    %v735 = vld [vmem:[%s0 + $0x12a] sm:$0xff]
    %737 = vrot.lane.b32.xlu0 %v735, 14
    %v738 = vpop.permute.xlu0 %737
    %740 = vst.msk [vmem:[#allocation2 + $0x70] sm:$0xff] %vm123, %v738
    %v741 = vld [vmem:[%s0 + $0x120] sm:$0xff]
    %742 = vst.msk [vmem:[#allocation2 + $0x78] sm:$0xff] %vm74, %v741
    %v743 = vld [vmem:[%s0 + $0x121] sm:$0xff]
    %745 = vrot.lane.b32.xlu0 %v743, 2
    %v746 = vpop.permute.xlu0 %745
    %748 = vst.msk [vmem:[#allocation2 + $0x78] sm:$0xff] %vm81, %v746
    %v749 = vld [vmem:[%s0 + $0x129] sm:$0xff]
    %751 = vrot.lane.b32.xlu0 %v749, 4
    %v752 = vpop.permute.xlu0 %751
    %754 = vst.msk [vmem:[#allocation2 + $0x78] sm:$0xff] %vm88, %v752
    %v755 = vld [vmem:[%s0 + $0x12a] sm:$0xff]
    %757 = vrot.lane.b32.xlu0 %v755, 6
    %v758 = vpop.permute.xlu0 %757
    %760 = vst.msk [vmem:[#allocation2 + $0x78] sm:$0xff] %vm95, %v758
    %v761 = vld [vmem:[%s0 + $0x132] sm:$0xff]
    %763 = vrot.lane.b32.xlu0 %v761, 8
    %v764 = vpop.permute.xlu0 %763
    %766 = vst.msk [vmem:[#allocation2 + $0x78] sm:$0xff] %vm102, %v764
    %v767 = vld [vmem:[%s0 + $0x133] sm:$0xff]
    %769 = vrot.lane.b32.xlu0 %v767, 10
    %v770 = vpop.permute.xlu0 %769
    %772 = vst.msk [vmem:[#allocation2 + $0x78] sm:$0xff] %vm109, %v770
    %v773 = vld [vmem:[%s0 + $0x13b] sm:$0xff]
    %775 = vrot.lane.b32.xlu0 %v773, 12
    %v776 = vpop.permute.xlu0 %775
    %778 = vst.msk [vmem:[#allocation2 + $0x78] sm:$0xff] %vm116, %v776
    %v779 = vld [vmem:[%s0 + $0x13c] sm:$0xff]
    %781 = vrot.lane.b32.xlu0 %v779, 14
    %v782 = vpop.permute.xlu0 %781
    %784 = vst.msk [vmem:[#allocation2 + $0x78] sm:$0xff] %vm123, %v782
    %v785 = vld [vmem:[#allocation2] sm:$0xff]
    %v786 = vld [vmem:[#allocation2 + $0x8] sm:$0xff]
    %v787 = vld [vmem:[#allocation2 + $0x10] sm:$0xff]
    %v788 = vld [vmem:[#allocation2 + $0x18] sm:$0xff]
    %v789 = vld [vmem:[#allocation2 + $0x20] sm:$0xff]
    %v790 = vld [vmem:[#allocation2 + $0x28] sm:$0xff]
    %v791 = vld [vmem:[#allocation2 + $0x30] sm:$0xff]
    %v792 = vld [vmem:[#allocation2 + $0x38] sm:$0xff]
    %v793 = vld [vmem:[#allocation2 + $0x40] sm:$0xff]
    %v794 = vld [vmem:[#allocation2 + $0x48] sm:$0xff]
    %v795 = vld [vmem:[#allocation2 + $0x50] sm:$0xff]
    %v796 = vld [vmem:[#allocation2 + $0x58] sm:$0xff]
    %v797 = vld [vmem:[#allocation2 + $0x60] sm:$0xff]
    %v798 = vld [vmem:[#allocation2 + $0x68] sm:$0xff]
    %v799 = vld [vmem:[#allocation2 + $0x70] sm:$0xff]
    %v800 = vld [vmem:[#allocation2 + $0x78] sm:$0xff]
    %v801 = vld [vmem:[%s1] sm:$0xff]
    %v802 = vld [vmem:[%s1 + $0x8] sm:$0xff]
    %v804 = vsel %vm48, %v785, 0
    %v807 = vsel %vm48, %v786, 0
    %v810 = vsel %vm48, %v787, 0
    %v813 = vsel %vm48, %v788, 0
    %v816 = vsel %vm48, %v789, 0
    %v819 = vsel %vm48, %v790, 0
    %v822 = vsel %vm48, %v791, 0
    %v825 = vsel %vm48, %v792, 0
    %v828 = vsel %vm48, %v793, 0
    %v831 = vsel %vm48, %v794, 0
    %v834 = vsel %vm48, %v795, 0
    %v837 = vsel %vm48, %v796, 0
    %v840 = vsel %vm48, %v797, 0
    %v843 = vsel %vm48, %v798, 0
    %v846 = vsel %vm48, %v799, 0
    %v849 = vsel %vm48, %v800, 0
    %851 = vmatpush.msra.mxu0 0.0
    %852 = vmatpush.msra.mxu0 0.0
    %853 = vmatpush.msra.mxu0 0.0
    %854 = vmatpush.msra.mxu0 0.0
    %855 = vmatpush.msra.mxu0 0.0
    %856 = vmatpush.msra.mxu0 0.0
    %857 = vmatpush.msra.mxu0 0.0
    %858 = vmatpush.msra.mxu0 0.0
    %859 = vmatpush.msra.mxu0 0.0
    %860 = vmatpush.msra.mxu0 0.0
    %861 = vmatpush.msra.mxu0 0.0
    %862 = vmatpush.msra.mxu0 0.0
    %863 = vmatpush.msra.mxu0 0.0
    %864 = vmatpush.msra.mxu0 0.0
    %865 = vmatpush.msra.mxu0 %v802
    %866 = vmatpush.msra.mxu0 %v801
    %867 = vmatmul.f32.gmra.mxu0 %v804
    %v868 = vpop.f32.mrf.mxu0
    %v869 = vadd.f32 0.0, %v868
    %870 = vmatmul.f32.gmra.mxu0 %v807
    %v871 = vpop.f32.mrf.mxu0
    %v872 = vadd.f32 0.0, %v871
    %873 = vmatmul.f32.gmra.mxu0 %v810
    %v874 = vpop.f32.mrf.mxu0
    %v875 = vadd.f32 0.0, %v874
    %876 = vmatmul.f32.gmra.mxu0 %v813
    %v877 = vpop.f32.mrf.mxu0
    %v878 = vadd.f32 0.0, %v877
    %879 = vmatmul.f32.gmra.mxu0 %v816
    %v880 = vpop.f32.mrf.mxu0
    %v881 = vadd.f32 0.0, %v880
    %882 = vmatmul.f32.gmra.mxu0 %v819
    %v883 = vpop.f32.mrf.mxu0
    %v884 = vadd.f32 0.0, %v883
    %885 = vmatmul.f32.gmra.mxu0 %v822
    %v886 = vpop.f32.mrf.mxu0
    %v887 = vadd.f32 0.0, %v886
    %888 = vmatmul.f32.gmra.mxu0 %v825
    %v889 = vpop.f32.mrf.mxu0
    %v890 = vadd.f32 0.0, %v889
    %891 = vmatmul.f32.gmra.mxu0 %v828
    %v892 = vpop.f32.mrf.mxu0
    %v893 = vadd.f32 0.0, %v892
    %894 = vmatmul.f32.gmra.mxu0 %v831
    %v895 = vpop.f32.mrf.mxu0
    %v896 = vadd.f32 0.0, %v895
    %897 = vmatmul.f32.gmra.mxu0 %v834
    %v898 = vpop.f32.mrf.mxu0
    %v899 = vadd.f32 0.0, %v898
    %900 = vmatmul.f32.gmra.mxu0 %v837
    %v901 = vpop.f32.mrf.mxu0
    %v902 = vadd.f32 0.0, %v901
    %903 = vmatmul.f32.gmra.mxu0 %v840
    %v904 = vpop.f32.mrf.mxu0
    %v905 = vadd.f32 0.0, %v904
    %906 = vmatmul.f32.gmra.mxu0 %v843
    %v907 = vpop.f32.mrf.mxu0
    %v908 = vadd.f32 0.0, %v907
    %909 = vmatmul.f32.gmra.mxu0 %v846
    %v910 = vpop.f32.mrf.mxu0
    %v911 = vadd.f32 0.0, %v910
    %912 = vmatmul.f32.gmra.mxu0 %v849
    %v913 = vpop.f32.mrf.mxu0
    %v914 = vadd.f32 0.0, %v913
    %915 = vdwg.mxu0
    %vm916 = vcmp.gt.f32.partialorder %v869, 0.0
    %vm917 = vcmp.gt.f32.partialorder %v872, 0.0
    %vm918 = vcmp.gt.f32.partialorder %v875, 0.0
    %vm919 = vcmp.gt.f32.partialorder %v878, 0.0
    %vm920 = vcmp.gt.f32.partialorder %v881, 0.0
    %vm921 = vcmp.gt.f32.partialorder %v884, 0.0
    %vm922 = vcmp.gt.f32.partialorder %v887, 0.0
    %vm923 = vcmp.gt.f32.partialorder %v890, 0.0
    %vm924 = vcmp.gt.f32.partialorder %v893, 0.0
    %vm925 = vcmp.gt.f32.partialorder %v896, 0.0
    %vm926 = vcmp.gt.f32.partialorder %v899, 0.0
    %vm927 = vcmp.gt.f32.partialorder %v902, 0.0
    %vm928 = vcmp.gt.f32.partialorder %v905, 0.0
    %vm929 = vcmp.gt.f32.partialorder %v908, 0.0
    %vm930 = vcmp.gt.f32.partialorder %v911, 0.0
    %vm931 = vcmp.gt.f32.partialorder %v914, 0.0
    %v932 = vmul.f32 %v869, 0.2
    %v933 = vmul.f32 %v872, 0.2
    %v934 = vmul.f32 %v875, 0.2
    %v935 = vmul.f32 %v878, 0.2
    %v936 = vmul.f32 %v881, 0.2
    %v937 = vmul.f32 %v884, 0.2
    %v938 = vmul.f32 %v887, 0.2
    %v939 = vmul.f32 %v890, 0.2
    %v940 = vmul.f32 %v893, 0.2
    %v941 = vmul.f32 %v896, 0.2
    %v942 = vmul.f32 %v899, 0.2
    %v943 = vmul.f32 %v902, 0.2
    %v944 = vmul.f32 %v905, 0.2
    %v945 = vmul.f32 %v908, 0.2
    %v946 = vmul.f32 %v911, 0.2
    %v947 = vmul.f32 %v914, 0.2
    %v948 = vsel %vm916, %v869, %v932
    %v949 = vsel %vm917, %v872, %v933
    %v950 = vsel %vm918, %v875, %v934
    %v951 = vsel %vm919, %v878, %v935
    %v952 = vsel %vm920, %v881, %v936
    %v953 = vsel %vm921, %v884, %v937
    %v954 = vsel %vm922, %v887, %v938
    %v955 = vsel %vm923, %v890, %v939
    %v956 = vsel %vm924, %v893, %v940
    %v957 = vsel %vm925, %v896, %v941
    %v958 = vsel %vm926, %v899, %v942
    %v959 = vsel %vm927, %v902, %v943
    %v960 = vsel %vm928, %v905, %v944
    %v961 = vsel %vm929, %v908, %v945
    %v962 = vsel %vm930, %v911, %v946
    %v963 = vsel %vm931, %v914, %v947
    %vm964 = vcmask 64512
    %965 = vst.msk [vmem:[#allocation9] sm:$0xff] %vm964, %v948
    %966 = vst.msk [vmem:[#allocation9 + $0x8] sm:$0xff] %vm964, %v949
    %967 = vst.msk [vmem:[#allocation9 + $0x10] sm:$0xff] %vm964, %v950
    %968 = vst.msk [vmem:[#allocation9 + $0x18] sm:$0xff] %vm964, %v951
    %969 = vst.msk [vmem:[#allocation9 + $0x20] sm:$0xff] %vm964, %v952
    %970 = vst.msk [vmem:[#allocation9 + $0x28] sm:$0xff] %vm964, %v953
    %971 = vst.msk [vmem:[#allocation9 + $0x30] sm:$0xff] %vm964, %v954
    %972 = vst.msk [vmem:[#allocation9 + $0x38] sm:$0xff] %vm964, %v955
    %973 = vst.msk [vmem:[#allocation9 + $0x40] sm:$0xff] %vm964, %v956
    %974 = vst.msk [vmem:[#allocation9 + $0x48] sm:$0xff] %vm964, %v957
    %975 = vst.msk [vmem:[#allocation9 + $0x50] sm:$0xff] %vm964, %v958
    %976 = vst.msk [vmem:[#allocation9 + $0x58] sm:$0xff] %vm964, %v959
    %977 = vst.msk [vmem:[#allocation9 + $0x60] sm:$0xff] %vm964, %v960
    %978 = vst.msk [vmem:[#allocation9 + $0x68] sm:$0xff] %vm964, %v961
    %979 = vst.msk [vmem:[#allocation9 + $0x70] sm:$0xff] %vm964, %v962
    %980 = vst.msk [vmem:[#allocation9 + $0x78] sm:$0xff] %vm964, %v963
    %v981 = vld [vmem:[#allocation9] ss:$2 sm:$0xf]
    %983 = vrot.lane.b32.xlu0 %v981, 8
    %v984 = vpop.permute.xlu0 %983
    %vm986 = vcmask 126016
    %987 = vst.msk [vmem:[#allocation6 + $0x5] sm:$0xf] %vm986, %v984
    %s988 = scalar_lea.vmem [#allocation9], 1
    %v989 = vld [vmem:[%s988] ss:$2 sm:$0xf]
    %vm990 = vcmask 60416
    %991 = vst.msk [vmem:[#allocation6 + $0x6] sm:$0xf] %vm990, %v989
    %s992 = scalar_lea.vmem [#allocation9], 8
    %v993 = vld [vmem:[%s992] ss:$2 sm:$0xf]
    %995 = vrot.lane.b32.xlu0 %v993, 8
    %v996 = vpop.permute.xlu0 %995
    %998 = vst.msk [vmem:[#allocation6 + $0xa] sm:$0xf] %vm986, %v996
    %s999 = scalar_lea.vmem [#allocation9], 9
    %v1000 = vld [vmem:[%s999] ss:$2 sm:$0xf]
    %1001 = vst.msk [vmem:[#allocation6 + $0xb] sm:$0xf] %vm990, %v1000
    %s1002 = scalar_lea.vmem [#allocation9], 16
    %v1003 = vld [vmem:[%s1002] ss:$2 sm:$0xf]
    %1005 = vrot.lane.b32.xlu0 %v1003, 8
    %v1006 = vpop.permute.xlu0 %1005
    %1008 = vst.msk [vmem:[#allocation6 + $0xf] sm:$0xf] %vm986, %v1006
    %s1009 = scalar_lea.vmem [#allocation9], 17
    %v1010 = vld [vmem:[%s1009] ss:$2 sm:$0xf]
    %1011 = vst.msk [vmem:[#allocation6 + $0x10] sm:$0xf] %vm990, %v1010
    %s1012 = scalar_lea.vmem [#allocation9], 24
    %v1013 = vld [vmem:[%s1012] ss:$2 sm:$0xf]
    %1015 = vrot.lane.b32.xlu0 %v1013, 8
    %v1016 = vpop.permute.xlu0 %1015
    %1018 = vst.msk [vmem:[#allocation6 + $0x14] sm:$0xf] %vm986, %v1016
    %s1019 = scalar_lea.vmem [#allocation9], 25
    %v1020 = vld [vmem:[%s1019] ss:$2 sm:$0xf]
    %1021 = vst.msk [vmem:[#allocation6 + $0x15] sm:$0xf] %vm990, %v1020
    %s1022 = scalar_lea.vmem [#allocation9], 32
    %v1023 = vld [vmem:[%s1022] ss:$2 sm:$0xf]
    %1025 = vrot.lane.b32.xlu0 %v1023, 8
    %v1026 = vpop.permute.xlu0 %1025
    %1028 = vst.msk [vmem:[#allocation6 + $0x19] sm:$0xf] %vm986, %v1026
    %s1029 = scalar_lea.vmem [#allocation9], 33
    %v1030 = vld [vmem:[%s1029] ss:$2 sm:$0xf]
    %1031 = vst.msk [vmem:[#allocation6 + $0x1a] sm:$0xf] %vm990, %v1030
    %s1032 = scalar_lea.vmem [#allocation9], 40
    %v1033 = vld [vmem:[%s1032] ss:$2 sm:$0xf]
    %1035 = vrot.lane.b32.xlu0 %v1033, 8
    %v1036 = vpop.permute.xlu0 %1035
    %1038 = vst.msk [vmem:[#allocation6 + $0x1e] sm:$0xf] %vm986, %v1036
    %s1039 = scalar_lea.vmem [#allocation9], 41
    %v1040 = vld [vmem:[%s1039] ss:$2 sm:$0xf]
    %1041 = vst.msk [vmem:[#allocation6 + $0x1f] sm:$0xf] %vm990, %v1040
    %s1042 = scalar_lea.vmem [#allocation9], 48
    %v1043 = vld [vmem:[%s1042] ss:$2 sm:$0xf]
    %1045 = vrot.lane.b32.xlu0 %v1043, 8
    %v1046 = vpop.permute.xlu0 %1045
    %1048 = vst.msk [vmem:[#allocation6 + $0x23] sm:$0xf] %vm986, %v1046
    %s1049 = scalar_lea.vmem [#allocation9], 49
    %v1050 = vld [vmem:[%s1049] ss:$2 sm:$0xf]
    %1051 = vst.msk [vmem:[#allocation6 + $0x24] sm:$0xf] %vm990, %v1050
    %s1052 = scalar_lea.vmem [#allocation9], 56
    %v1053 = vld [vmem:[%s1052] ss:$2 sm:$0xf]
    %1055 = vrot.lane.b32.xlu0 %v1053, 8
    %v1056 = vpop.permute.xlu0 %1055
    %1058 = vst.msk [vmem:[#allocation6 + $0x28] sm:$0xf] %vm986, %v1056
    %s1059 = scalar_lea.vmem [#allocation9], 57
    %v1060 = vld [vmem:[%s1059] ss:$2 sm:$0xf]
    %1061 = vst.msk [vmem:[#allocation6 + $0x29] sm:$0xf] %vm990, %v1060
    %s1062 = scalar_lea.vmem [#allocation9], 64
    %v1063 = vld [vmem:[%s1062] ss:$2 sm:$0xf]
    %1065 = vrot.lane.b32.xlu0 %v1063, 8
    %v1066 = vpop.permute.xlu0 %1065
    %1068 = vst.msk [vmem:[#allocation6 + $0x37] sm:$0xf] %vm986, %v1066
    %s1069 = scalar_lea.vmem [#allocation9], 65
    %v1070 = vld [vmem:[%s1069] ss:$2 sm:$0xf]
    %1071 = vst.msk [vmem:[#allocation6 + $0x38] sm:$0xf] %vm990, %v1070
    %s1072 = scalar_lea.vmem [#allocation9], 72
    %v1073 = vld [vmem:[%s1072] ss:$2 sm:$0xf]
    %1075 = vrot.lane.b32.xlu0 %v1073, 8
    %v1076 = vpop.permute.xlu0 %1075
    %1078 = vst.msk [vmem:[#allocation6 + $0x3c] sm:$0xf] %vm986, %v1076
    %s1079 = scalar_lea.vmem [#allocation9], 73
    %v1080 = vld [vmem:[%s1079] ss:$2 sm:$0xf]
    %1081 = vst.msk [vmem:[#allocation6 + $0x3d] sm:$0xf] %vm990, %v1080
    %s1082 = scalar_lea.vmem [#allocation9], 80
    %v1083 = vld [vmem:[%s1082] ss:$2 sm:$0xf]
    %1085 = vrot.lane.b32.xlu0 %v1083, 8
    %v1086 = vpop.permute.xlu0 %1085
    %1088 = vst.msk [vmem:[#allocation6 + $0x41] sm:$0xf] %vm986, %v1086
    %s1089 = scalar_lea.vmem [#allocation9], 81
    %v1090 = vld [vmem:[%s1089] ss:$2 sm:$0xf]
    %1091 = vst.msk [vmem:[#allocation6 + $0x42] sm:$0xf] %vm990, %v1090
    %s1092 = scalar_lea.vmem [#allocation9], 88
    %v1093 = vld [vmem:[%s1092] ss:$2 sm:$0xf]
    %1095 = vrot.lane.b32.xlu0 %v1093, 8
    %v1096 = vpop.permute.xlu0 %1095
    %1098 = vst.msk [vmem:[#allocation6 + $0x46] sm:$0xf] %vm986, %v1096
    %s1099 = scalar_lea.vmem [#allocation9], 89
    %v1100 = vld [vmem:[%s1099] ss:$2 sm:$0xf]
    %1101 = vst.msk [vmem:[#allocation6 + $0x47] sm:$0xf] %vm990, %v1100
    %s1102 = scalar_lea.vmem [#allocation9], 96
    %v1103 = vld [vmem:[%s1102] ss:$2 sm:$0xf]
    %1105 = vrot.lane.b32.xlu0 %v1103, 8
    %v1106 = vpop.permute.xlu0 %1105
    %1108 = vst.msk [vmem:[#allocation6 + $0x4b] sm:$0xf] %vm986, %v1106
    %s1109 = scalar_lea.vmem [#allocation9], 97
    %v1110 = vld [vmem:[%s1109] ss:$2 sm:$0xf]
    %1111 = vst.msk [vmem:[#allocation6 + $0x4c] sm:$0xf] %vm990, %v1110
    %s1112 = scalar_lea.vmem [#allocation9], 104
    %v1113 = vld [vmem:[%s1112] ss:$2 sm:$0xf]
    %1115 = vrot.lane.b32.xlu0 %v1113, 8
    %v1116 = vpop.permute.xlu0 %1115
    %1118 = vst.msk [vmem:[#allocation6 + $0x50] sm:$0xf] %vm986, %v1116
    %s1119 = scalar_lea.vmem [#allocation9], 105
    %v1120 = vld [vmem:[%s1119] ss:$2 sm:$0xf]
    %1121 = vst.msk [vmem:[#allocation6 + $0x51] sm:$0xf] %vm990, %v1120
    %s1122 = scalar_lea.vmem [#allocation9], 112
    %v1123 = vld [vmem:[%s1122] ss:$2 sm:$0xf]
    %1125 = vrot.lane.b32.xlu0 %v1123, 8
    %v1126 = vpop.permute.xlu0 %1125
    %1128 = vst.msk [vmem:[#allocation6 + $0x55] sm:$0xf] %vm986, %v1126
    %s1129 = scalar_lea.vmem [#allocation9], 113
    %v1130 = vld [vmem:[%s1129] ss:$2 sm:$0xf]
    %1131 = vst.msk [vmem:[#allocation6 + $0x56] sm:$0xf] %vm990, %v1130
    %s1132 = scalar_lea.vmem [#allocation9], 120
    %v1133 = vld [vmem:[%s1132] ss:$2 sm:$0xf]
    %1135 = vrot.lane.b32.xlu0 %v1133, 8
    %v1136 = vpop.permute.xlu0 %1135
    %1138 = vst.msk [vmem:[#allocation6 + $0x5a] sm:$0xf] %vm986, %v1136
    %s1139 = scalar_lea.vmem [#allocation9], 121
    %v1140 = vld [vmem:[%s1139] ss:$2 sm:$0xf]
    %1141 = vst.msk [vmem:[#allocation6 + $0x5b] sm:$0xf] %vm990, %v1140
    %v1142 = vld [vmem:[#allocation6] sm:$0xf]
    %1143 = vst.msk [vmem:[#allocation3] sm:$0xf] %vm61, %v1142
    %v1144 = vld [vmem:[#allocation6 + $0x1] sm:$0xf]
    %1146 = vrot.lane.b32.xlu0 %v1144, 16
    %v1147 = vpop.permute.xlu0 %1146
    %vm1149 = vcmask 257152
    %1150 = vst.msk [vmem:[#allocation3] sm:$0xf] %vm1149, %v1147
    %v1151 = vld [vmem:[#allocation6 + $0x5] sm:$0xf]
    %1153 = vrot.lane.b32.xlu0 %v1151, 32
    %v1154 = vpop.permute.xlu0 %1153
    %vm1156 = vcmask 388352
    %1157 = vst.msk [vmem:[#allocation3] sm:$0xf] %vm1156, %v1154
    %v1158 = vld [vmem:[#allocation6 + $0x6] sm:$0xf]
    %1160 = vrot.lane.b32.xlu0 %v1158, 48
    %v1161 = vpop.permute.xlu0 %1160
    %vm1163 = vcmask 519552
    %1164 = vst.msk [vmem:[#allocation3] sm:$0xf] %vm1163, %v1161
    %v1165 = vld [vmem:[#allocation6 + $0xa] sm:$0xf]
    %1167 = vrot.lane.b32.xlu0 %v1165, 64
    %v1168 = vpop.permute.xlu0 %1167
    %vm1170 = vcmask 650752
    %1171 = vst.msk [vmem:[#allocation3] sm:$0xf] %vm1170, %v1168
    %v1172 = vld [vmem:[#allocation6 + $0xb] sm:$0xf]
    %1174 = vrot.lane.b32.xlu0 %v1172, 80
    %v1175 = vpop.permute.xlu0 %1174
    %vm1177 = vcmask 781952
    %1178 = vst.msk [vmem:[#allocation3] sm:$0xf] %vm1177, %v1175
    %v1179 = vld [vmem:[#allocation6 + $0xf] sm:$0xf]
    %1181 = vrot.lane.b32.xlu0 %v1179, 96
    %v1182 = vpop.permute.xlu0 %1181
    %vm1184 = vcmask 913152
    %1185 = vst.msk [vmem:[#allocation3] sm:$0xf] %vm1184, %v1182
    %v1186 = vld [vmem:[#allocation6 + $0x10] sm:$0xf]
    %1188 = vrot.lane.b32.xlu0 %v1186, 112
    %v1189 = vpop.permute.xlu0 %1188
    %vm1191 = vcmask 1044352
    %1192 = vst.msk [vmem:[#allocation3] sm:$0xf] %vm1191, %v1189
    %v1193 = vld [vmem:[#allocation6 + $0xa] sm:$0xf]
    %1194 = vst.msk [vmem:[#allocation3 + $0x4] sm:$0xf] %vm61, %v1193
    %v1195 = vld [vmem:[#allocation6 + $0xb] sm:$0xf]
    %1197 = vrot.lane.b32.xlu0 %v1195, 16
    %v1198 = vpop.permute.xlu0 %1197
    %1200 = vst.msk [vmem:[#allocation3 + $0x4] sm:$0xf] %vm1149, %v1198
    %v1201 = vld [vmem:[#allocation6 + $0xf] sm:$0xf]
    %1203 = vrot.lane.b32.xlu0 %v1201, 32
    %v1204 = vpop.permute.xlu0 %1203
    %1206 = vst.msk [vmem:[#allocation3 + $0x4] sm:$0xf] %vm1156, %v1204
    %v1207 = vld [vmem:[#allocation6 + $0x10] sm:$0xf]
    %1209 = vrot.lane.b32.xlu0 %v1207, 48
    %v1210 = vpop.permute.xlu0 %1209
    %1212 = vst.msk [vmem:[#allocation3 + $0x4] sm:$0xf] %vm1163, %v1210
    %v1213 = vld [vmem:[#allocation6 + $0x14] sm:$0xf]
    %1215 = vrot.lane.b32.xlu0 %v1213, 64
    %v1216 = vpop.permute.xlu0 %1215
    %1218 = vst.msk [vmem:[#allocation3 + $0x4] sm:$0xf] %vm1170, %v1216
    %v1219 = vld [vmem:[#allocation6 + $0x15] sm:$0xf]
    %1221 = vrot.lane.b32.xlu0 %v1219, 80
    %v1222 = vpop.permute.xlu0 %1221
    %1224 = vst.msk [vmem:[#allocation3 + $0x4] sm:$0xf] %vm1177, %v1222
    %v1225 = vld [vmem:[#allocation6 + $0x19] sm:$0xf]
    %1227 = vrot.lane.b32.xlu0 %v1225, 96
    %v1228 = vpop.permute.xlu0 %1227
    %1230 = vst.msk [vmem:[#allocation3 + $0x4] sm:$0xf] %vm1184, %v1228
    %v1231 = vld [vmem:[#allocation6 + $0x1a] sm:$0xf]
    %1233 = vrot.lane.b32.xlu0 %v1231, 112
    %v1234 = vpop.permute.xlu0 %1233
    %1236 = vst.msk [vmem:[#allocation3 + $0x4] sm:$0xf] %vm1191, %v1234
    %v1237 = vld [vmem:[#allocation6 + $0x14] sm:$0xf]
    %1238 = vst.msk [vmem:[#allocation3 + $0x8] sm:$0xf] %vm61, %v1237
    %v1239 = vld [vmem:[#allocation6 + $0x15] sm:$0xf]
    %1241 = vrot.lane.b32.xlu0 %v1239, 16
    %v1242 = vpop.permute.xlu0 %1241
    %1244 = vst.msk [vmem:[#allocation3 + $0x8] sm:$0xf] %vm1149, %v1242
    %v1245 = vld [vmem:[#allocation6 + $0x19] sm:$0xf]
    %1247 = vrot.lane.b32.xlu0 %v1245, 32
    %v1248 = vpop.permute.xlu0 %1247
    %1250 = vst.msk [vmem:[#allocation3 + $0x8] sm:$0xf] %vm1156, %v1248
    %v1251 = vld [vmem:[#allocation6 + $0x1a] sm:$0xf]
    %1253 = vrot.lane.b32.xlu0 %v1251, 48
    %v1254 = vpop.permute.xlu0 %1253
    %1256 = vst.msk [vmem:[#allocation3 + $0x8] sm:$0xf] %vm1163, %v1254
    %v1257 = vld [vmem:[#allocation6 + $0x1e] sm:$0xf]
    %1259 = vrot.lane.b32.xlu0 %v1257, 64
    %v1260 = vpop.permute.xlu0 %1259
    %1262 = vst.msk [vmem:[#allocation3 + $0x8] sm:$0xf] %vm1170, %v1260
    %v1263 = vld [vmem:[#allocation6 + $0x1f] sm:$0xf]
    %1265 = vrot.lane.b32.xlu0 %v1263, 80
    %v1266 = vpop.permute.xlu0 %1265
    %1268 = vst.msk [vmem:[#allocation3 + $0x8] sm:$0xf] %vm1177, %v1266
    %v1269 = vld [vmem:[#allocation6 + $0x23] sm:$0xf]
    %1271 = vrot.lane.b32.xlu0 %v1269, 96
    %v1272 = vpop.permute.xlu0 %1271
    %1274 = vst.msk [vmem:[#allocation3 + $0x8] sm:$0xf] %vm1184, %v1272
    %v1275 = vld [vmem:[#allocation6 + $0x24] sm:$0xf]
    %1277 = vrot.lane.b32.xlu0 %v1275, 112
    %v1278 = vpop.permute.xlu0 %1277
    %1280 = vst.msk [vmem:[#allocation3 + $0x8] sm:$0xf] %vm1191, %v1278
    %v1281 = vld [vmem:[#allocation6 + $0x1e] sm:$0xf]
    %1282 = vst.msk [vmem:[#allocation3 + $0xc] sm:$0xf] %vm61, %v1281
    %v1283 = vld [vmem:[#allocation6 + $0x1f] sm:$0xf]
    %1285 = vrot.lane.b32.xlu0 %v1283, 16
    %v1286 = vpop.permute.xlu0 %1285
    %1288 = vst.msk [vmem:[#allocation3 + $0xc] sm:$0xf] %vm1149, %v1286
    %v1289 = vld [vmem:[#allocation6 + $0x23] sm:$0xf]
    %1291 = vrot.lane.b32.xlu0 %v1289, 32
    %v1292 = vpop.permute.xlu0 %1291
    %1294 = vst.msk [vmem:[#allocation3 + $0xc] sm:$0xf] %vm1156, %v1292
    %v1295 = vld [vmem:[#allocation6 + $0x24] sm:$0xf]
    %1297 = vrot.lane.b32.xlu0 %v1295, 48
    %v1298 = vpop.permute.xlu0 %1297
    %1300 = vst.msk [vmem:[#allocation3 + $0xc] sm:$0xf] %vm1163, %v1298
    %v1301 = vld [vmem:[#allocation6 + $0x28] sm:$0xf]
    %1303 = vrot.lane.b32.xlu0 %v1301, 64
    %v1304 = vpop.permute.xlu0 %1303
    %1306 = vst.msk [vmem:[#allocation3 + $0xc] sm:$0xf] %vm1170, %v1304
    %v1307 = vld [vmem:[#allocation6 + $0x29] sm:$0xf]
    %1309 = vrot.lane.b32.xlu0 %v1307, 80
    %v1310 = vpop.permute.xlu0 %1309
    %1312 = vst.msk [vmem:[#allocation3 + $0xc] sm:$0xf] %vm1177, %v1310
    %v1313 = vld [vmem:[#allocation6 + $0x2d] sm:$0xf]
    %1315 = vrot.lane.b32.xlu0 %v1313, 96
    %v1316 = vpop.permute.xlu0 %1315
    %1318 = vst.msk [vmem:[#allocation3 + $0xc] sm:$0xf] %vm1184, %v1316
    %v1319 = vld [vmem:[#allocation6 + $0x2e] sm:$0xf]
    %1321 = vrot.lane.b32.xlu0 %v1319, 112
    %v1322 = vpop.permute.xlu0 %1321
    %1324 = vst.msk [vmem:[#allocation3 + $0xc] sm:$0xf] %vm1191, %v1322
    %v1325 = vld [vmem:[#allocation6 + $0x32] sm:$0xf]
    %1326 = vst.msk [vmem:[#allocation3 + $0x10] sm:$0xf] %vm61, %v1325
    %v1327 = vld [vmem:[#allocation6 + $0x33] sm:$0xf]
    %1329 = vrot.lane.b32.xlu0 %v1327, 16
    %v1330 = vpop.permute.xlu0 %1329
    %1332 = vst.msk [vmem:[#allocation3 + $0x10] sm:$0xf] %vm1149, %v1330
    %v1333 = vld [vmem:[#allocation6 + $0x37] sm:$0xf]
    %1335 = vrot.lane.b32.xlu0 %v1333, 32
    %v1336 = vpop.permute.xlu0 %1335
    %1338 = vst.msk [vmem:[#allocation3 + $0x10] sm:$0xf] %vm1156, %v1336
    %v1339 = vld [vmem:[#allocation6 + $0x38] sm:$0xf]
    %1341 = vrot.lane.b32.xlu0 %v1339, 48
    %v1342 = vpop.permute.xlu0 %1341
    %1344 = vst.msk [vmem:[#allocation3 + $0x10] sm:$0xf] %vm1163, %v1342
    %v1345 = vld [vmem:[#allocation6 + $0x3c] sm:$0xf]
    %1347 = vrot.lane.b32.xlu0 %v1345, 64
    %v1348 = vpop.permute.xlu0 %1347
    %1350 = vst.msk [vmem:[#allocation3 + $0x10] sm:$0xf] %vm1170, %v1348
    %v1351 = vld [vmem:[#allocation6 + $0x3d] sm:$0xf]
    %1353 = vrot.lane.b32.xlu0 %v1351, 80
    %v1354 = vpop.permute.xlu0 %1353
    %1356 = vst.msk [vmem:[#allocation3 + $0x10] sm:$0xf] %vm1177, %v1354
    %v1357 = vld [vmem:[#allocation6 + $0x41] sm:$0xf]
    %1359 = vrot.lane.b32.xlu0 %v1357, 96
    %v1360 = vpop.permute.xlu0 %1359
    %1362 = vst.msk [vmem:[#allocation3 + $0x10] sm:$0xf] %vm1184, %v1360
    %v1363 = vld [vmem:[#allocation6 + $0x42] sm:$0xf]
    %1365 = vrot.lane.b32.xlu0 %v1363, 112
    %v1366 = vpop.permute.xlu0 %1365
    %1368 = vst.msk [vmem:[#allocation3 + $0x10] sm:$0xf] %vm1191, %v1366
    %v1369 = vld [vmem:[#allocation6 + $0x3c] sm:$0xf]
    %1370 = vst.msk [vmem:[#allocation3 + $0x14] sm:$0xf] %vm61, %v1369
    %v1371 = vld [vmem:[#allocation6 + $0x3d] sm:$0xf]
    %1373 = vrot.lane.b32.xlu0 %v1371, 16
    %v1374 = vpop.permute.xlu0 %1373
    %1376 = vst.msk [vmem:[#allocation3 + $0x14] sm:$0xf] %vm1149, %v1374
    %v1377 = vld [vmem:[#allocation6 + $0x41] sm:$0xf]
    %1379 = vrot.lane.b32.xlu0 %v1377, 32
    %v1380 = vpop.permute.xlu0 %1379
    %1382 = vst.msk [vmem:[#allocation3 + $0x14] sm:$0xf] %vm1156, %v1380
    %v1383 = vld [vmem:[#allocation6 + $0x42] sm:$0xf]
    %1385 = vrot.lane.b32.xlu0 %v1383, 48
    %v1386 = vpop.permute.xlu0 %1385
    %1388 = vst.msk [vmem:[#allocation3 + $0x14] sm:$0xf] %vm1163, %v1386
    %v1389 = vld [vmem:[#allocation6 + $0x46] sm:$0xf]
    %1391 = vrot.lane.b32.xlu0 %v1389, 64
    %v1392 = vpop.permute.xlu0 %1391
    %1394 = vst.msk [vmem:[#allocation3 + $0x14] sm:$0xf] %vm1170, %v1392
    %v1395 = vld [vmem:[#allocation6 + $0x47] sm:$0xf]
    %1397 = vrot.lane.b32.xlu0 %v1395, 80
    %v1398 = vpop.permute.xlu0 %1397
    %1400 = vst.msk [vmem:[#allocation3 + $0x14] sm:$0xf] %vm1177, %v1398
    %v1401 = vld [vmem:[#allocation6 + $0x4b] sm:$0xf]
    %1403 = vrot.lane.b32.xlu0 %v1401, 96
    %v1404 = vpop.permute.xlu0 %1403
    %1406 = vst.msk [vmem:[#allocation3 + $0x14] sm:$0xf] %vm1184, %v1404
    %v1407 = vld [vmem:[#allocation6 + $0x4c] sm:$0xf]
    %1409 = vrot.lane.b32.xlu0 %v1407, 112
    %v1410 = vpop.permute.xlu0 %1409
    %1412 = vst.msk [vmem:[#allocation3 + $0x14] sm:$0xf] %vm1191, %v1410
    %v1413 = vld [vmem:[#allocation6 + $0x46] sm:$0xf]
    %1414 = vst.msk [vmem:[#allocation3 + $0x18] sm:$0xf] %vm61, %v1413
    %v1415 = vld [vmem:[#allocation6 + $0x47] sm:$0xf]
    %1417 = vrot.lane.b32.xlu0 %v1415, 16
    %v1418 = vpop.permute.xlu0 %1417
    %1420 = vst.msk [vmem:[#allocation3 + $0x18] sm:$0xf] %vm1149, %v1418
    %v1421 = vld [vmem:[#allocation6 + $0x4b] sm:$0xf]
    %1423 = vrot.lane.b32.xlu0 %v1421, 32
    %v1424 = vpop.permute.xlu0 %1423
    %1426 = vst.msk [vmem:[#allocation3 + $0x18] sm:$0xf] %vm1156, %v1424
    %v1427 = vld [vmem:[#allocation6 + $0x4c] sm:$0xf]
    %1429 = vrot.lane.b32.xlu0 %v1427, 48
    %v1430 = vpop.permute.xlu0 %1429
    %1432 = vst.msk [vmem:[#allocation3 + $0x18] sm:$0xf] %vm1163, %v1430
    %v1433 = vld [vmem:[#allocation6 + $0x50] sm:$0xf]
    %1435 = vrot.lane.b32.xlu0 %v1433, 64
    %v1436 = vpop.permute.xlu0 %1435
    %1438 = vst.msk [vmem:[#allocation3 + $0x18] sm:$0xf] %vm1170, %v1436
    %v1439 = vld [vmem:[#allocation6 + $0x51] sm:$0xf]
    %1441 = vrot.lane.b32.xlu0 %v1439, 80
    %v1442 = vpop.permute.xlu0 %1441
    %1444 = vst.msk [vmem:[#allocation3 + $0x18] sm:$0xf] %vm1177, %v1442
    %v1445 = vld [vmem:[#allocation6 + $0x55] sm:$0xf]
    %1447 = vrot.lane.b32.xlu0 %v1445, 96
    %v1448 = vpop.permute.xlu0 %1447
    %1450 = vst.msk [vmem:[#allocation3 + $0x18] sm:$0xf] %vm1184, %v1448
    %v1451 = vld [vmem:[#allocation6 + $0x56] sm:$0xf]
    %1453 = vrot.lane.b32.xlu0 %v1451, 112
    %v1454 = vpop.permute.xlu0 %1453
    %1456 = vst.msk [vmem:[#allocation3 + $0x18] sm:$0xf] %vm1191, %v1454
    %v1457 = vld [vmem:[#allocation6 + $0x50] sm:$0xf]
    %1458 = vst.msk [vmem:[#allocation3 + $0x1c] sm:$0xf] %vm61, %v1457
    %v1459 = vld [vmem:[#allocation6 + $0x51] sm:$0xf]
    %1461 = vrot.lane.b32.xlu0 %v1459, 16
    %v1462 = vpop.permute.xlu0 %1461
    %1464 = vst.msk [vmem:[#allocation3 + $0x1c] sm:$0xf] %vm1149, %v1462
    %v1465 = vld [vmem:[#allocation6 + $0x55] sm:$0xf]
    %1467 = vrot.lane.b32.xlu0 %v1465, 32
    %v1468 = vpop.permute.xlu0 %1467
    %1470 = vst.msk [vmem:[#allocation3 + $0x1c] sm:$0xf] %vm1156, %v1468
    %v1471 = vld [vmem:[#allocation6 + $0x56] sm:$0xf]
    %1473 = vrot.lane.b32.xlu0 %v1471, 48
    %v1474 = vpop.permute.xlu0 %1473
    %1476 = vst.msk [vmem:[#allocation3 + $0x1c] sm:$0xf] %vm1163, %v1474
    %v1477 = vld [vmem:[#allocation6 + $0x5a] sm:$0xf]
    %1479 = vrot.lane.b32.xlu0 %v1477, 64
    %v1480 = vpop.permute.xlu0 %1479
    %1482 = vst.msk [vmem:[#allocation3 + $0x1c] sm:$0xf] %vm1170, %v1480
    %v1483 = vld [vmem:[#allocation6 + $0x5b] sm:$0xf]
    %1485 = vrot.lane.b32.xlu0 %v1483, 80
    %v1486 = vpop.permute.xlu0 %1485
    %1488 = vst.msk [vmem:[#allocation3 + $0x1c] sm:$0xf] %vm1177, %v1486
    %v1489 = vld [vmem:[#allocation6 + $0x5f] sm:$0xf]
    %1491 = vrot.lane.b32.xlu0 %v1489, 96
    %v1492 = vpop.permute.xlu0 %1491
    %1494 = vst.msk [vmem:[#allocation3 + $0x1c] sm:$0xf] %vm1184, %v1492
    %v1495 = vld [vmem:[#allocation6 + $0x60] sm:$0xf]
    %1497 = vrot.lane.b32.xlu0 %v1495, 112
    %v1498 = vpop.permute.xlu0 %1497
    %1500 = vst.msk [vmem:[#allocation3 + $0x1c] sm:$0xf] %vm1191, %v1498
    %v1501 = vld [vmem:[#allocation3] sm:$0xff]
    %v1502 = vld [vmem:[#allocation3 + $0x8] sm:$0xff]
    %v1503 = vld [vmem:[#allocation3 + $0x10] sm:$0xff]
    %v1504 = vld [vmem:[#allocation3 + $0x18] sm:$0xff]
    %v1505 = vld [vmem:[%s2] sm:$0xff]
    %v1506 = vld [vmem:[%s2 + $0x8] sm:$0xff]
    %v1507 = vld [vmem:[%s2 + $0x10] sm:$0xff]
    %v1508 = vld [vmem:[%s2 + $0x18] sm:$0xff]
    %v1509 = vld [vmem:[%s2 + $0x20] sm:$0xff]
    %v1510 = vld [vmem:[%s2 + $0x28] sm:$0xff]
    %v1511 = vld [vmem:[%s2 + $0x30] sm:$0xff]
    %v1512 = vld [vmem:[%s2 + $0x38] sm:$0xff]
    %v1513 = vld [vmem:[%s2 + $0x40] sm:$0xff]
    %v1514 = vld [vmem:[%s2 + $0x48] sm:$0xff]
    %v1515 = vld [vmem:[%s2 + $0x50] sm:$0xff]
    %v1516 = vld [vmem:[%s2 + $0x58] sm:$0xff]
    %v1517 = vld [vmem:[%s2 + $0x60] sm:$0xff]
    %v1518 = vld [vmem:[%s2 + $0x68] sm:$0xff]
    %v1519 = vld [vmem:[%s2 + $0x70] sm:$0xff]
    %v1520 = vld [vmem:[%s2 + $0x78] sm:$0xff]
    %1521 = vmatpush.msra.mxu0 %v1520
    %1522 = vmatpush.msra.mxu0 %v1519
    %1523 = vmatpush.msra.mxu0 %v1518
    %1524 = vmatpush.msra.mxu0 %v1517
    %1525 = vmatpush.msra.mxu0 %v1516
    %1526 = vmatpush.msra.mxu0 %v1515
    %1527 = vmatpush.msra.mxu0 %v1514
    %1528 = vmatpush.msra.mxu0 %v1513
    %1529 = vmatpush.msra.mxu0 %v1512
    %1530 = vmatpush.msra.mxu0 %v1511
    %1531 = vmatpush.msra.mxu0 %v1510
    %1532 = vmatpush.msra.mxu0 %v1509
    %1533 = vmatpush.msra.mxu0 %v1508
    %1534 = vmatpush.msra.mxu0 %v1507
    %1535 = vmatpush.msra.mxu0 %v1506
    %1536 = vmatpush.msra.mxu0 %v1505
    %1537 = vmatmul.f32.gmra.mxu0 %v1501
    %v1538 = vpop.f32.mrf.mxu0
    %v1539 = vadd.f32 0.0, %v1538
    %1540 = vmatmul.f32.gmra.mxu0 %v1502
    %v1541 = vpop.f32.mrf.mxu0
    %v1542 = vadd.f32 0.0, %v1541
    %1543 = vmatmul.f32.gmra.mxu0 %v1503
    %v1544 = vpop.f32.mrf.mxu0
    %v1545 = vadd.f32 0.0, %v1544
    %1546 = vmatmul.f32.gmra.mxu0 %v1504
    %v1547 = vpop.f32.mrf.mxu0
    %v1548 = vadd.f32 0.0, %v1547
    %1549 = vdwg.mxu0
    %v1550 = vld [vmem:[%s3] sm:$0x1]
    %v1551 = vld [vmem:[%s4] sm:$0x1]
    %v1552 = vsel %vm48, %v1539, 0.0
    %v1553 = vsel %vm48, %v1542, 0.0
    %v1554 = vadd.f32 %v1552, %v1553
    %v1555 = vsel %vm48, %v1545, 0.0
    %v1556 = vadd.f32 %v1554, %v1555
    %v1557 = vsel %vm48, %v1548, 0.0
    %v1558 = vadd.f32 %v1556, %v1557
    %v1559 = vrot.slane %v1558, 4
    %v1560 = vadd.f32 %v1558, %v1559
    %v1561 = vrot.slane %v1560, 2
    %v1562 = vadd.f32 %v1560, %v1561
    %v1563 = vrot.slane %v1562, 1
    %v1564 = vadd.f32 %v1562, %v1563
    %v1565 = vrcp.pop 32.0
    %v1566 = vmul.f32 32.0, %v1565
    %v1567 = vsub.f32 1.0, %v1566
    %v1568 = vmul.f32 %v1565, %v1567
    %v1569 = vadd.f32 %v1565, %v1568
    %vm1570 = vweird.f32 %v1565
    %v1571 = vsel %vm1570, %v1565, %v1569
    %v1572 = vmul.f32 %v1564, %v1571
    %v1573 = vsub.f32 %v1539, %v1572
    %v1574 = vsub.f32 %v1542, %v1572
    %v1575 = vsub.f32 %v1545, %v1572
    %v1576 = vsub.f32 %v1548, %v1572
    %v1577 = vmul.f32 %v1573, %v1573
    %v1578 = vmul.f32 %v1574, %v1574
    %v1579 = vmul.f32 %v1575, %v1575
    %v1580 = vmul.f32 %v1576, %v1576
    %v1581 = vsel %vm48, %v1577, 0.0
    %v1582 = vsel %vm48, %v1578, 0.0
    %v1583 = vadd.f32 %v1581, %v1582
    %v1584 = vsel %vm48, %v1579, 0.0
    %v1585 = vadd.f32 %v1583, %v1584
    %v1586 = vsel %vm48, %v1580, 0.0
    %v1587 = vadd.f32 %v1585, %v1586
    %v1588 = vrot.slane %v1587, 4
    %v1589 = vadd.f32 %v1587, %v1588
    %v1590 = vrot.slane %v1589, 2
    %v1591 = vadd.f32 %v1589, %v1590
    %v1592 = vrot.slane %v1591, 1
    %v1593 = vadd.f32 %v1591, %v1592
    %v1594 = vmul.f32 %v1593, %v1571
    %v1595 = vadd.f32 %v1594, 1e-05
    %v1596 = vrsqrt.pop %v1595
    %v1597 = vmul.f32 %v1596, %v1595
    %v1598 = vmul.f32 %v1597, %v1596
    %v1599 = vmul.f32 0.5, %v1598
    %v1600 = vsub.f32 1.5, %v1599
    %v1601 = vmul.f32 %v1596, %v1600
    %vm1602 = vweird.f32 %v1595
    %vm1603 = vweird.f32 %v1596
    %vm1604 = vmor %vm1602, %vm1603
    %v1605 = vsel %vm1604, %v1596, %v1601
    %v1606 = vmul.f32 %v1573, %v1605
    %v1607 = vmul.f32 %v1574, %v1605
    %v1608 = vmul.f32 %v1575, %v1605
    %v1609 = vmul.f32 %v1576, %v1605
    %v1611 = vperm.slane %v1550, 0
    %v1613 = vmul.f32 %v1606, %v1611
    %v1614 = vmul.f32 %v1607, %v1611
    %v1615 = vmul.f32 %v1608, %v1611
    %v1616 = vmul.f32 %v1609, %v1611
    %v1618 = vperm.slane %v1551, 0
    %v1620 = vadd.f32 %v1613, %v1618
    %v1621 = vadd.f32 %v1614, %v1618
    %v1622 = vadd.f32 %v1615, %v1618
    %v1623 = vadd.f32 %v1616, %v1618
    %vm1624 = vcmp.gt.f32.partialorder %v1620, 0.0
    %vm1625 = vcmp.gt.f32.partialorder %v1621, 0.0
    %vm1626 = vcmp.gt.f32.partialorder %v1622, 0.0
    %vm1627 = vcmp.gt.f32.partialorder %v1623, 0.0
    %v1628 = vmul.f32 %v1620, 0.2
    %v1629 = vmul.f32 %v1621, 0.2
    %v1630 = vmul.f32 %v1622, 0.2
    %v1631 = vmul.f32 %v1623, 0.2
    %v1632 = vsel %vm1624, %v1620, %v1628
    %v1633 = vsel %vm1625, %v1621, %v1629
    %v1634 = vsel %vm1626, %v1622, %v1630
    %v1635 = vsel %vm1627, %v1623, %v1631
    %1636 = vst.msk [vmem:[#allocation10] sm:$0xff] %vm48, %v1632
    %1637 = vst.msk [vmem:[#allocation10 + $0x8] sm:$0xff] %vm48, %v1633
    %1638 = vst.msk [vmem:[#allocation10 + $0x10] sm:$0xff] %vm48, %v1634
    %1639 = vst.msk [vmem:[#allocation10 + $0x18] sm:$0xff] %vm48, %v1635
    %v1640 = vld [vmem:[#allocation10] ss:$2 sm:$0x3]
    %1642 = vrot.lane.b32.xlu0 %v1640, 16
    %v1643 = vpop.permute.xlu0 %1642
    %vm1645 = vcmask 255104
    %1646 = vst.msk [vmem:[#allocation7 + $0x3] sm:$0x3] %vm1645, %v1643
    %s1647 = scalar_lea.vmem [#allocation10], 1
    %v1648 = vld [vmem:[%s1647] ss:$2 sm:$0x3]
    %vm1649 = vcmask 123904
    %1650 = vst.msk [vmem:[#allocation7 + $0x4] sm:$0x3] %vm1649, %v1648
    %s1651 = scalar_lea.vmem [#allocation10], 4
    %v1652 = vld [vmem:[%s1651] ss:$2 sm:$0x3]
    %1654 = vrot.lane.b32.xlu0 %v1652, 16
    %v1655 = vpop.permute.xlu0 %1654
    %1657 = vst.msk [vmem:[#allocation7 + $0x6] sm:$0x3] %vm1645, %v1655
    %s1658 = scalar_lea.vmem [#allocation10], 5
    %v1659 = vld [vmem:[%s1658] ss:$2 sm:$0x3]
    %1660 = vst.msk [vmem:[#allocation7 + $0x7] sm:$0x3] %vm1649, %v1659
    %s1661 = scalar_lea.vmem [#allocation10], 8
    %v1662 = vld [vmem:[%s1661] ss:$2 sm:$0x3]
    %1664 = vrot.lane.b32.xlu0 %v1662, 16
    %v1665 = vpop.permute.xlu0 %1664
    %1667 = vst.msk [vmem:[#allocation7 + $0x9] sm:$0x3] %vm1645, %v1665
    %s1668 = scalar_lea.vmem [#allocation10], 9
    %v1669 = vld [vmem:[%s1668] ss:$2 sm:$0x3]
    %1670 = vst.msk [vmem:[#allocation7 + $0xa] sm:$0x3] %vm1649, %v1669
    %s1671 = scalar_lea.vmem [#allocation10], 12
    %v1672 = vld [vmem:[%s1671] ss:$2 sm:$0x3]
    %1674 = vrot.lane.b32.xlu0 %v1672, 16
    %v1675 = vpop.permute.xlu0 %1674
    %1677 = vst.msk [vmem:[#allocation7 + $0xc] sm:$0x3] %vm1645, %v1675
    %s1678 = scalar_lea.vmem [#allocation10], 13
    %v1679 = vld [vmem:[%s1678] ss:$2 sm:$0x3]
    %1680 = vst.msk [vmem:[#allocation7 + $0xd] sm:$0x3] %vm1649, %v1679
    %s1681 = scalar_lea.vmem [#allocation10], 16
    %v1682 = vld [vmem:[%s1681] ss:$2 sm:$0x3]
    %1684 = vrot.lane.b32.xlu0 %v1682, 16
    %v1685 = vpop.permute.xlu0 %1684
    %1687 = vst.msk [vmem:[#allocation7 + $0x15] sm:$0x3] %vm1645, %v1685
    %s1688 = scalar_lea.vmem [#allocation10], 17
    %v1689 = vld [vmem:[%s1688] ss:$2 sm:$0x3]
    %1690 = vst.msk [vmem:[#allocation7 + $0x16] sm:$0x3] %vm1649, %v1689
    %s1691 = scalar_lea.vmem [#allocation10], 20
    %v1692 = vld [vmem:[%s1691] ss:$2 sm:$0x3]
    %1694 = vrot.lane.b32.xlu0 %v1692, 16
    %v1695 = vpop.permute.xlu0 %1694
    %1697 = vst.msk [vmem:[#allocation7 + $0x18] sm:$0x3] %vm1645, %v1695
    %s1698 = scalar_lea.vmem [#allocation10], 21
    %v1699 = vld [vmem:[%s1698] ss:$2 sm:$0x3]
    %1700 = vst.msk [vmem:[#allocation7 + $0x19] sm:$0x3] %vm1649, %v1699
    %s1701 = scalar_lea.vmem [#allocation10], 24
    %v1702 = vld [vmem:[%s1701] ss:$2 sm:$0x3]
    %1704 = vrot.lane.b32.xlu0 %v1702, 16
    %v1705 = vpop.permute.xlu0 %1704
    %1707 = vst.msk [vmem:[#allocation7 + $0x1b] sm:$0x3] %vm1645, %v1705
    %s1708 = scalar_lea.vmem [#allocation10], 25
    %v1709 = vld [vmem:[%s1708] ss:$2 sm:$0x3]
    %1710 = vst.msk [vmem:[#allocation7 + $0x1c] sm:$0x3] %vm1649, %v1709
    %s1711 = scalar_lea.vmem [#allocation10], 28
    %v1712 = vld [vmem:[%s1711] ss:$2 sm:$0x3]
    %1714 = vrot.lane.b32.xlu0 %v1712, 16
    %v1715 = vpop.permute.xlu0 %1714
    %1717 = vst.msk [vmem:[#allocation7 + $0x1e] sm:$0x3] %vm1645, %v1715
    %s1718 = scalar_lea.vmem [#allocation10], 29
    %v1719 = vld [vmem:[%s1718] ss:$2 sm:$0x3]
    %1720 = vst.msk [vmem:[#allocation7 + $0x1f] sm:$0x3] %vm1649, %v1719
    %v1721 = vld [vmem:[#allocation7] sm:$0x3]
    %vm1722 = vcmask 254976
    %1723 = vst.msk [vmem:[#allocation4] sm:$0x3] %vm1722, %v1721
    %v1724 = vld [vmem:[#allocation7 + $0x1] sm:$0x3]
    %1726 = vrot.lane.b32.xlu0 %v1724, 32
    %v1727 = vpop.permute.xlu0 %1726
    %vm1729 = vcmask 517376
    %1730 = vst.msk [vmem:[#allocation4] sm:$0x3] %vm1729, %v1727
    %v1731 = vld [vmem:[#allocation7 + $0x3] sm:$0x3]
    %1733 = vrot.lane.b32.xlu0 %v1731, 64
    %v1734 = vpop.permute.xlu0 %1733
    %vm1736 = vcmask 779776
    %1737 = vst.msk [vmem:[#allocation4] sm:$0x3] %vm1736, %v1734
    %v1738 = vld [vmem:[#allocation7 + $0x4] sm:$0x3]
    %1740 = vrot.lane.b32.xlu0 %v1738, 96
    %v1741 = vpop.permute.xlu0 %1740
    %vm1743 = vcmask 1042176
    %1744 = vst.msk [vmem:[#allocation4] sm:$0x3] %vm1743, %v1741
    %v1745 = vld [vmem:[#allocation7 + $0x6] sm:$0x3]
    %1746 = vst.msk [vmem:[#allocation4 + $0x8] sm:$0x3] %vm1722, %v1745
    %v1747 = vld [vmem:[#allocation7 + $0x7] sm:$0x3]
    %1749 = vrot.lane.b32.xlu0 %v1747, 32
    %v1750 = vpop.permute.xlu0 %1749
    %1752 = vst.msk [vmem:[#allocation4 + $0x8] sm:$0x3] %vm1729, %v1750
    %v1753 = vld [vmem:[#allocation7 + $0x9] sm:$0x3]
    %1755 = vrot.lane.b32.xlu0 %v1753, 64
    %v1756 = vpop.permute.xlu0 %1755
    %1758 = vst.msk [vmem:[#allocation4 + $0x8] sm:$0x3] %vm1736, %v1756
    %v1759 = vld [vmem:[#allocation7 + $0xa] sm:$0x3]
    %1761 = vrot.lane.b32.xlu0 %v1759, 96
    %v1762 = vpop.permute.xlu0 %1761
    %1764 = vst.msk [vmem:[#allocation4 + $0x8] sm:$0x3] %vm1743, %v1762
    %v1765 = vld [vmem:[#allocation7 + $0x6] sm:$0x3]
    %v1767 = vrot.slane %v1765, 6
    %vm1769 = vcmask 257026
    %1770 = vst.msk [vmem:[#allocation4] sm:$0xc] %vm1769, %v1767
    %v1771 = vld [vmem:[#allocation7 + $0x7] sm:$0x3]
    %v1773 = vrot.slane %v1771, 6
    %1774 = vrot.lane.b32.xlu0 %v1773, 32
    %v1775 = vpop.permute.xlu0 %1774
    %vm1777 = vcmask 519426
    %1778 = vst.msk [vmem:[#allocation4] sm:$0xc] %vm1777, %v1775
    %v1779 = vld [vmem:[#allocation7 + $0x9] sm:$0x3]
    %v1781 = vrot.slane %v1779, 6
    %1782 = vrot.lane.b32.xlu0 %v1781, 64
    %v1783 = vpop.permute.xlu0 %1782
    %vm1785 = vcmask 781826
    %1786 = vst.msk [vmem:[#allocation4] sm:$0xc] %vm1785, %v1783
    %v1787 = vld [vmem:[#allocation7 + $0xa] sm:$0x3]
    %v1789 = vrot.slane %v1787, 6
    %1790 = vrot.lane.b32.xlu0 %v1789, 96
    %v1791 = vpop.permute.xlu0 %1790
    %vm1793 = vcmask 1044226
    %1794 = vst.msk [vmem:[#allocation4] sm:$0xc] %vm1793, %v1791
    %v1795 = vld [vmem:[#allocation7 + $0xc] sm:$0x3]
    %v1797 = vrot.slane %v1795, 6
    %1799 = vst.msk [vmem:[#allocation4 + $0x8] sm:$0xc] %vm1769, %v1797
    %v1800 = vld [vmem:[#allocation7 + $0xd] sm:$0x3]
    %v1802 = vrot.slane %v1800, 6
    %1803 = vrot.lane.b32.xlu0 %v1802, 32
    %v1804 = vpop.permute.xlu0 %1803
    %1806 = vst.msk [vmem:[#allocation4 + $0x8] sm:$0xc] %vm1777, %v1804
    %v1807 = vld [vmem:[#allocation7 + $0xf] sm:$0x3]
    %v1809 = vrot.slane %v1807, 6
    %1810 = vrot.lane.b32.xlu0 %v1809, 64
    %v1811 = vpop.permute.xlu0 %1810
    %1813 = vst.msk [vmem:[#allocation4 + $0x8] sm:$0xc] %vm1785, %v1811
    %v1814 = vld [vmem:[#allocation7 + $0x10] sm:$0x3]
    %v1816 = vrot.slane %v1814, 6
    %1817 = vrot.lane.b32.xlu0 %v1816, 96
    %v1818 = vpop.permute.xlu0 %1817
    %1820 = vst.msk [vmem:[#allocation4 + $0x8] sm:$0xc] %vm1793, %v1818
    %v1821 = vld [vmem:[#allocation7 + $0x12] sm:$0x3]
    %v1823 = vrot.slane %v1821, 4
    %vm1825 = vcmask 259076
    %1826 = vst.msk [vmem:[#allocation4] sm:$0x30] %vm1825, %v1823
    %v1827 = vld [vmem:[#allocation7 + $0x13] sm:$0x3]
    %v1829 = vrot.slane %v1827, 4
    %1830 = vrot.lane.b32.xlu0 %v1829, 32
    %v1831 = vpop.permute.xlu0 %1830
    %vm1833 = vcmask 521476
    %1834 = vst.msk [vmem:[#allocation4] sm:$0x30] %vm1833, %v1831
    %v1835 = vld [vmem:[#allocation7 + $0x15] sm:$0x3]
    %v1837 = vrot.slane %v1835, 4
    %1838 = vrot.lane.b32.xlu0 %v1837, 64
    %v1839 = vpop.permute.xlu0 %1838
    %vm1841 = vcmask 783876
    %1842 = vst.msk [vmem:[#allocation4] sm:$0x30] %vm1841, %v1839
    %v1843 = vld [vmem:[#allocation7 + $0x16] sm:$0x3]
    %v1845 = vrot.slane %v1843, 4
    %1846 = vrot.lane.b32.xlu0 %v1845, 96
    %v1847 = vpop.permute.xlu0 %1846
    %vm1849 = vcmask 1046276
    %1850 = vst.msk [vmem:[#allocation4] sm:$0x30] %vm1849, %v1847
    %v1851 = vld [vmem:[#allocation7 + $0x18] sm:$0x3]
    %v1853 = vrot.slane %v1851, 4
    %1855 = vst.msk [vmem:[#allocation4 + $0x8] sm:$0x30] %vm1825, %v1853
    %v1856 = vld [vmem:[#allocation7 + $0x19] sm:$0x3]
    %v1858 = vrot.slane %v1856, 4
    %1859 = vrot.lane.b32.xlu0 %v1858, 32
    %v1860 = vpop.permute.xlu0 %1859
    %1862 = vst.msk [vmem:[#allocation4 + $0x8] sm:$0x30] %vm1833, %v1860
    %v1863 = vld [vmem:[#allocation7 + $0x1b] sm:$0x3]
    %v1865 = vrot.slane %v1863, 4
    %1866 = vrot.lane.b32.xlu0 %v1865, 64
    %v1867 = vpop.permute.xlu0 %1866
    %1869 = vst.msk [vmem:[#allocation4 + $0x8] sm:$0x30] %vm1841, %v1867
    %v1870 = vld [vmem:[#allocation7 + $0x1c] sm:$0x3]
    %v1872 = vrot.slane %v1870, 4
    %1873 = vrot.lane.b32.xlu0 %v1872, 96
    %v1874 = vpop.permute.xlu0 %1873
    %1876 = vst.msk [vmem:[#allocation4 + $0x8] sm:$0x30] %vm1849, %v1874
    %v1877 = vld [vmem:[#allocation7 + $0x18] sm:$0x3]
    %v1879 = vrot.slane %v1877, 2
    %vm1881 = vcmask 261126
    %1882 = vst.msk [vmem:[#allocation4] sm:$0xc0] %vm1881, %v1879
    %v1883 = vld [vmem:[#allocation7 + $0x19] sm:$0x3]
    %v1885 = vrot.slane %v1883, 2
    %1886 = vrot.lane.b32.xlu0 %v1885, 32
    %v1887 = vpop.permute.xlu0 %1886
    %vm1889 = vcmask 523526
    %1890 = vst.msk [vmem:[#allocation4] sm:$0xc0] %vm1889, %v1887
    %v1891 = vld [vmem:[#allocation7 + $0x1b] sm:$0x3]
    %v1893 = vrot.slane %v1891, 2
    %1894 = vrot.lane.b32.xlu0 %v1893, 64
    %v1895 = vpop.permute.xlu0 %1894
    %vm1897 = vcmask 785926
    %1898 = vst.msk [vmem:[#allocation4] sm:$0xc0] %vm1897, %v1895
    %v1899 = vld [vmem:[#allocation7 + $0x1c] sm:$0x3]
    %v1901 = vrot.slane %v1899, 2
    %1902 = vrot.lane.b32.xlu0 %v1901, 96
    %v1903 = vpop.permute.xlu0 %1902
    %vm1905 = vcmask 1048326
    %1906 = vst.msk [vmem:[#allocation4] sm:$0xc0] %vm1905, %v1903
    %v1907 = vld [vmem:[#allocation7 + $0x1e] sm:$0x3]
    %v1909 = vrot.slane %v1907, 2
    %1911 = vst.msk [vmem:[#allocation4 + $0x8] sm:$0xc0] %vm1881, %v1909
    %v1912 = vld [vmem:[#allocation7 + $0x1f] sm:$0x3]
    %v1914 = vrot.slane %v1912, 2
    %1915 = vrot.lane.b32.xlu0 %v1914, 32
    %v1916 = vpop.permute.xlu0 %1915
    %1918 = vst.msk [vmem:[#allocation4 + $0x8] sm:$0xc0] %vm1889, %v1916
    %v1919 = vld [vmem:[#allocation7 + $0x21] sm:$0x3]
    %v1921 = vrot.slane %v1919, 2
    %1922 = vrot.lane.b32.xlu0 %v1921, 64
    %v1923 = vpop.permute.xlu0 %1922
    %1925 = vst.msk [vmem:[#allocation4 + $0x8] sm:$0xc0] %vm1897, %v1923
    %v1926 = vld [vmem:[#allocation7 + $0x22] sm:$0x3]
    %v1928 = vrot.slane %v1926, 2
    %1929 = vrot.lane.b32.xlu0 %v1928, 96
    %v1930 = vpop.permute.xlu0 %1929
    %1932 = vst.msk [vmem:[#allocation4 + $0x8] sm:$0xc0] %vm1905, %v1930
    %v1933 = vld [vmem:[#allocation4] sm:$0xff]
    %v1934 = vld [vmem:[#allocation4 + $0x8] sm:$0xff]
    %v1935 = vld [vmem:[%s5] sm:$0xff]
    %v1936 = vld [vmem:[%s5 + $0x8] sm:$0xff]
    %v1937 = vld [vmem:[%s5 + $0x10] sm:$0xff]
    %v1938 = vld [vmem:[%s5 + $0x18] sm:$0xff]
    %v1939 = vld [vmem:[%s5 + $0x20] sm:$0xff]
    %v1940 = vld [vmem:[%s5 + $0x28] sm:$0xff]
    %v1941 = vld [vmem:[%s5 + $0x30] sm:$0xff]
    %v1942 = vld [vmem:[%s5 + $0x38] sm:$0xff]
    %v1943 = vld [vmem:[%s5 + $0x40] sm:$0xff]
    %v1944 = vld [vmem:[%s5 + $0x48] sm:$0xff]
    %v1945 = vld [vmem:[%s5 + $0x50] sm:$0xff]
    %v1946 = vld [vmem:[%s5 + $0x58] sm:$0xff]
    %v1947 = vld [vmem:[%s5 + $0x60] sm:$0xff]
    %v1948 = vld [vmem:[%s5 + $0x68] sm:$0xff]
    %v1949 = vld [vmem:[%s5 + $0x70] sm:$0xff]
    %v1950 = vld [vmem:[%s5 + $0x78] sm:$0xff]
    %v1951 = vld [vmem:[%s5 + $0x80] sm:$0xff]
    %v1952 = vld [vmem:[%s5 + $0x88] sm:$0xff]
    %v1953 = vld [vmem:[%s5 + $0x90] sm:$0xff]
    %v1954 = vld [vmem:[%s5 + $0x98] sm:$0xff]
    %v1955 = vld [vmem:[%s5 + $0xa0] sm:$0xff]
    %v1956 = vld [vmem:[%s5 + $0xa8] sm:$0xff]
    %v1957 = vld [vmem:[%s5 + $0xb0] sm:$0xff]
    %v1958 = vld [vmem:[%s5 + $0xb8] sm:$0xff]
    %v1959 = vld [vmem:[%s5 + $0xc0] sm:$0xff]
    %v1960 = vld [vmem:[%s5 + $0xc8] sm:$0xff]
    %v1961 = vld [vmem:[%s5 + $0xd0] sm:$0xff]
    %v1962 = vld [vmem:[%s5 + $0xd8] sm:$0xff]
    %v1963 = vld [vmem:[%s5 + $0xe0] sm:$0xff]
    %v1964 = vld [vmem:[%s5 + $0xe8] sm:$0xff]
    %v1965 = vld [vmem:[%s5 + $0xf0] sm:$0xff]
    %v1966 = vld [vmem:[%s5 + $0xf8] sm:$0xff]
    %1967 = vmatpush.msra.mxu0 %v1950
    %1968 = vmatpush.msra.mxu0 %v1949
    %1969 = vmatpush.msra.mxu0 %v1948
    %1970 = vmatpush.msra.mxu0 %v1947
    %1971 = vmatpush.msra.mxu0 %v1946
    %1972 = vmatpush.msra.mxu0 %v1945
    %1973 = vmatpush.msra.mxu0 %v1944
    %1974 = vmatpush.msra.mxu0 %v1943
    %1975 = vmatpush.msra.mxu0 %v1942
    %1976 = vmatpush.msra.mxu0 %v1941
    %1977 = vmatpush.msra.mxu0 %v1940
    %1978 = vmatpush.msra.mxu0 %v1939
    %1979 = vmatpush.msra.mxu0 %v1938
    %1980 = vmatpush.msra.mxu0 %v1937
    %1981 = vmatpush.msra.mxu0 %v1936
    %1982 = vmatpush.msra.mxu0 %v1935
    %1983 = vmatmul.f32.gmra.mxu0 %v1933
    %v1984 = vpop.f32.mrf.mxu0
    %v1985 = vadd.f32 0.0, %v1984
    %1986 = vdwg.mxu0
    %1987 = vmatpush.msra.mxu0 %v1966
    %1988 = vmatpush.msra.mxu0 %v1965
    %1989 = vmatpush.msra.mxu0 %v1964
    %1990 = vmatpush.msra.mxu0 %v1963
    %1991 = vmatpush.msra.mxu0 %v1962
    %1992 = vmatpush.msra.mxu0 %v1961
    %1993 = vmatpush.msra.mxu0 %v1960
    %1994 = vmatpush.msra.mxu0 %v1959
    %1995 = vmatpush.msra.mxu0 %v1958
    %1996 = vmatpush.msra.mxu0 %v1957
    %1997 = vmatpush.msra.mxu0 %v1956
    %1998 = vmatpush.msra.mxu0 %v1955
    %1999 = vmatpush.msra.mxu0 %v1954
    %2000 = vmatpush.msra.mxu0 %v1953
    %2001 = vmatpush.msra.mxu0 %v1952
    %2002 = vmatpush.msra.mxu0 %v1951
    %2003 = vmatmul.f32.gmra.mxu0 %v1934
    %v2004 = vpop.f32.mrf.mxu0
    %v2005 = vadd.f32 %v1985, %v2004
    %2006 = vdwg.mxu0
    %v2007 = vld [vmem:[%s6] sm:$0x1]
    %v2008 = vld [vmem:[%s7] sm:$0x1]
    %v2009 = vsel %vm63, %v2005, 0.0
    %v2010 = vrot.slane %v2009, 4
    %v2011 = vadd.f32 %v2009, %v2010
    %v2012 = vrot.slane %v2011, 2
    %v2013 = vadd.f32 %v2011, %v2012
    %v2014 = vrot.slane %v2013, 1
    %v2015 = vadd.f32 %v2013, %v2014
    %v2016 = vrcp.pop 8.0
    %v2017 = vmul.f32 8.0, %v2016
    %v2018 = vsub.f32 1.0, %v2017
    %v2019 = vmul.f32 %v2016, %v2018
    %v2020 = vadd.f32 %v2016, %v2019
    %vm2021 = vweird.f32 %v2016
    %v2022 = vsel %vm2021, %v2016, %v2020
    %v2023 = vmul.f32 %v2015, %v2022
    %v2024 = vsub.f32 %v2005, %v2023
    %v2025 = vmul.f32 %v2024, %v2024
    %v2026 = vsel %vm63, %v2025, 0.0
    %v2027 = vrot.slane %v2026, 4
    %v2028 = vadd.f32 %v2026, %v2027
    %v2029 = vrot.slane %v2028, 2
    %v2030 = vadd.f32 %v2028, %v2029
    %v2031 = vrot.slane %v2030, 1
    %v2032 = vadd.f32 %v2030, %v2031
    %v2033 = vmul.f32 %v2032, %v2022
    %v2034 = vadd.f32 %v2033, 1e-05
    %v2035 = vrsqrt.pop %v2034
    %v2036 = vmul.f32 %v2035, %v2034
    %v2037 = vmul.f32 %v2036, %v2035
    %v2038 = vmul.f32 0.5, %v2037
    %v2039 = vsub.f32 1.5, %v2038
    %v2040 = vmul.f32 %v2035, %v2039
    %vm2041 = vweird.f32 %v2034
    %vm2042 = vweird.f32 %v2035
    %vm2043 = vmor %vm2041, %vm2042
    %v2044 = vsel %vm2043, %v2035, %v2040
    %v2045 = vmul.f32 %v2024, %v2044
    %v2047 = vperm.slane %v2007, 0
    %v2049 = vmul.f32 %v2045, %v2047
    %v2051 = vperm.slane %v2008, 0
    %v2053 = vadd.f32 %v2049, %v2051
    %vm2054 = vcmp.gt.f32.partialorder %v2053, 0.0
    %v2055 = vmul.f32 %v2053, 0.2
    %v2056 = vsel %vm2054, %v2053, %v2055
    %2057 = vst.msk [vmem:[#allocation11] sm:$0xff] %vm63, %v2056
    %v2058 = vld [vmem:[#allocation11] ss:$2 sm:$0x1]
    %2060 = vrot.lane.b32.xlu0 %v2058, 32
    %v2061 = vpop.permute.xlu0 %2060
    %vm2063 = vcmask 516352
    %2064 = vst.msk [vmem:[#allocation8 + $0x2] sm:$0x1] %vm2063, %v2061
    %s2065 = scalar_lea.vmem [#allocation11], 1
    %v2066 = vld [vmem:[%s2065] ss:$2 sm:$0x1]
    %vm2067 = vcmask 253952
    %2068 = vst.msk [vmem:[#allocation8 + $0x3] sm:$0x1] %vm2067, %v2066
    %s2069 = scalar_lea.vmem [#allocation11], 2
    %v2070 = vld [vmem:[%s2069] ss:$2 sm:$0x1]
    %2072 = vrot.lane.b32.xlu0 %v2070, 32
    %v2073 = vpop.permute.xlu0 %2072
    %2075 = vst.msk [vmem:[#allocation8 + $0x4] sm:$0x1] %vm2063, %v2073
    %s2076 = scalar_lea.vmem [#allocation11], 3
    %v2077 = vld [vmem:[%s2076] ss:$2 sm:$0x1]
    %2078 = vst.msk [vmem:[#allocation8 + $0x5] sm:$0x1] %vm2067, %v2077
    %s2079 = scalar_lea.vmem [#allocation11], 4
    %v2080 = vld [vmem:[%s2079] ss:$2 sm:$0x1]
    %2082 = vrot.lane.b32.xlu0 %v2080, 32
    %v2083 = vpop.permute.xlu0 %2082
    %2085 = vst.msk [vmem:[#allocation8 + $0xa] sm:$0x1] %vm2063, %v2083
    %s2086 = scalar_lea.vmem [#allocation11], 5
    %v2087 = vld [vmem:[%s2086] ss:$2 sm:$0x1]
    %2088 = vst.msk [vmem:[#allocation8 + $0xb] sm:$0x1] %vm2067, %v2087
    %s2089 = scalar_lea.vmem [#allocation11], 6
    %v2090 = vld [vmem:[%s2089] ss:$2 sm:$0x1]
    %2092 = vrot.lane.b32.xlu0 %v2090, 32
    %v2093 = vpop.permute.xlu0 %2092
    %2095 = vst.msk [vmem:[#allocation8 + $0xc] sm:$0x1] %vm2063, %v2093
    %s2096 = scalar_lea.vmem [#allocation11], 7
    %v2097 = vld [vmem:[%s2096] ss:$2 sm:$0x1]
    %2098 = vst.msk [vmem:[#allocation8 + $0xd] sm:$0x1] %vm2067, %v2097
    %v2099 = vld [vmem:[#allocation8] sm:$0x1]
    %vm2100 = vcmask 516096
    %2101 = vst.msk [vmem:[#allocation5] sm:$0x1] %vm2100, %v2099
    %v2102 = vld [vmem:[#allocation8 + $0x1] sm:$0x1]
    %2104 = vrot.lane.b32.xlu0 %v2102, 64
    %v2105 = vpop.permute.xlu0 %2104
    %vm2107 = vcmask 1040896
    %2108 = vst.msk [vmem:[#allocation5] sm:$0x1] %vm2107, %v2105
    %v2109 = vld [vmem:[#allocation8 + $0x2] sm:$0x1]
    %2110 = vst.msk [vmem:[#allocation5 + $0x2] sm:$0x1] %vm2100, %v2109
    %v2111 = vld [vmem:[#allocation8 + $0x3] sm:$0x1]
    %2113 = vrot.lane.b32.xlu0 %v2111, 64
    %v2114 = vpop.permute.xlu0 %2113
    %2116 = vst.msk [vmem:[#allocation5 + $0x2] sm:$0x1] %vm2107, %v2114
    %v2117 = vld [vmem:[#allocation8 + $0x4] sm:$0x1]
    %2118 = vst.msk [vmem:[#allocation5 + $0x4] sm:$0x1] %vm2100, %v2117
    %v2119 = vld [vmem:[#allocation8 + $0x5] sm:$0x1]
    %2121 = vrot.lane.b32.xlu0 %v2119, 64
    %v2122 = vpop.permute.xlu0 %2121
    %2124 = vst.msk [vmem:[#allocation5 + $0x4] sm:$0x1] %vm2107, %v2122
    %v2125 = vld [vmem:[#allocation8 + $0x6] sm:$0x1]
    %2126 = vst.msk [vmem:[#allocation5 + $0x6] sm:$0x1] %vm2100, %v2125
    %v2127 = vld [vmem:[#allocation8 + $0x7] sm:$0x1]
    %2129 = vrot.lane.b32.xlu0 %v2127, 64
    %v2130 = vpop.permute.xlu0 %2129
    %2132 = vst.msk [vmem:[#allocation5 + $0x6] sm:$0x1] %vm2107, %v2130
    %v2133 = vld [vmem:[#allocation8 + $0x8] sm:$0x1]
    %2134 = vst.msk [vmem:[#allocation5 + $0x1] sm:$0x1] %vm2100, %v2133
    %v2135 = vld [vmem:[#allocation8 + $0x9] sm:$0x1]
    %2137 = vrot.lane.b32.xlu0 %v2135, 64
    %v2138 = vpop.permute.xlu0 %2137
    %2140 = vst.msk [vmem:[#allocation5 + $0x1] sm:$0x1] %vm2107, %v2138
    %v2141 = vld [vmem:[#allocation8 + $0xa] sm:$0x1]
    %2142 = vst.msk [vmem:[#allocation5 + $0x3] sm:$0x1] %vm2100, %v2141
    %v2143 = vld [vmem:[#allocation8 + $0xb] sm:$0x1]
    %2145 = vrot.lane.b32.xlu0 %v2143, 64
    %v2146 = vpop.permute.xlu0 %2145
    %2148 = vst.msk [vmem:[#allocation5 + $0x3] sm:$0x1] %vm2107, %v2146
    %v2149 = vld [vmem:[#allocation8 + $0xc] sm:$0x1]
    %2150 = vst.msk [vmem:[#allocation5 + $0x5] sm:$0x1] %vm2100, %v2149
    %v2151 = vld [vmem:[#allocation8 + $0xd] sm:$0x1]
    %2153 = vrot.lane.b32.xlu0 %v2151, 64
    %v2154 = vpop.permute.xlu0 %2153
    %2156 = vst.msk [vmem:[#allocation5 + $0x5] sm:$0x1] %vm2107, %v2154
    %v2157 = vld [vmem:[#allocation8 + $0xe] sm:$0x1]
    %2158 = vst.msk [vmem:[#allocation5 + $0x7] sm:$0x1] %vm2100, %v2157
    %v2159 = vld [vmem:[#allocation8 + $0xf] sm:$0x1]
    %2161 = vrot.lane.b32.xlu0 %v2159, 64
    %v2162 = vpop.permute.xlu0 %2161
    %2164 = vst.msk [vmem:[#allocation5 + $0x7] sm:$0x1] %vm2107, %v2162
    %v2165 = vld [vmem:[#allocation5] sm:$0xff]
    %v2166 = vld [vmem:[#allocation12] sm:$0xff]
    %v2167 = vld [vmem:[#allocation12 + $0x8] sm:$0xff]
    %v2168 = vld [vmem:[#allocation12 + $0x10] sm:$0xff]
    %v2169 = vld [vmem:[#allocation12 + $0x18] sm:$0xff]
    %v2170 = vld [vmem:[#allocation12 + $0x20] sm:$0xff]
    %v2171 = vld [vmem:[#allocation12 + $0x28] sm:$0xff]
    %v2172 = vld [vmem:[#allocation12 + $0x30] sm:$0xff]
    %v2173 = vld [vmem:[#allocation12 + $0x38] sm:$0xff]
    %v2174 = vld [vmem:[#allocation12 + $0x40] sm:$0xff]
    %v2175 = vld [vmem:[#allocation12 + $0x48] sm:$0xff]
    %v2176 = vld [vmem:[#allocation12 + $0x50] sm:$0xff]
    %v2177 = vld [vmem:[#allocation12 + $0x58] sm:$0xff]
    %v2178 = vld [vmem:[#allocation12 + $0x60] sm:$0xff]
    %v2179 = vld [vmem:[#allocation12 + $0x68] sm:$0xff]
    %v2180 = vld [vmem:[#allocation12 + $0x70] sm:$0xff]
    %v2181 = vld [vmem:[#allocation12 + $0x78] sm:$0xff]
    %v2182 = vld [vmem:[#allocation12 + $0x80] sm:$0xff]
    %v2183 = vld [vmem:[#allocation12 + $0x88] sm:$0xff]
    %v2184 = vld [vmem:[#allocation12 + $0x90] sm:$0xff]
    %v2185 = vld [vmem:[#allocation12 + $0x98] sm:$0xff]
    %v2186 = vld [vmem:[#allocation12 + $0xa0] sm:$0xff]
    %v2187 = vld [vmem:[#allocation12 + $0xa8] sm:$0xff]
    %v2188 = vld [vmem:[#allocation12 + $0xb0] sm:$0xff]
    %v2189 = vld [vmem:[#allocation12 + $0xb8] sm:$0xff]
    %v2190 = vld [vmem:[#allocation12 + $0xc0] sm:$0xff]
    %v2191 = vld [vmem:[#allocation12 + $0xc8] sm:$0xff]
    %v2192 = vld [vmem:[#allocation12 + $0xd0] sm:$0xff]
    %v2193 = vld [vmem:[#allocation12 + $0xd8] sm:$0xff]
    %v2194 = vld [vmem:[#allocation12 + $0xe0] sm:$0xff]
    %v2195 = vld [vmem:[#allocation12 + $0xe8] sm:$0xff]
    %v2196 = vld [vmem:[#allocation12 + $0xf0] sm:$0xff]
    %v2197 = vld [vmem:[#allocation12 + $0xf8] sm:$0xff]
    %v2198 = vld [vmem:[#allocation12 + $0x100] sm:$0xff]
    %v2199 = vld [vmem:[#allocation12 + $0x108] sm:$0xff]
    %v2200 = vld [vmem:[#allocation12 + $0x110] sm:$0xff]
    %v2201 = vld [vmem:[#allocation12 + $0x118] sm:$0xff]
    %v2202 = vld [vmem:[#allocation12 + $0x120] sm:$0xff]
    %v2203 = vld [vmem:[#allocation12 + $0x128] sm:$0xff]
    %v2204 = vld [vmem:[#allocation12 + $0x130] sm:$0xff]
    %v2205 = vld [vmem:[#allocation12 + $0x138] sm:$0xff]
    %v2206 = vld [vmem:[#allocation12 + $0x140] sm:$0xff]
    %v2207 = vld [vmem:[#allocation12 + $0x148] sm:$0xff]
    %v2208 = vld [vmem:[#allocation12 + $0x150] sm:$0xff]
    %v2209 = vld [vmem:[#allocation12 + $0x158] sm:$0xff]
    %v2210 = vld [vmem:[#allocation12 + $0x160] sm:$0xff]
    %v2211 = vld [vmem:[#allocation12 + $0x168] sm:$0xff]
    %v2212 = vld [vmem:[#allocation12 + $0x170] sm:$0xff]
    %v2213 = vld [vmem:[#allocation12 + $0x178] sm:$0xff]
    %v2214 = vld [vmem:[#allocation12 + $0x180] sm:$0xff]
    %v2215 = vld [vmem:[#allocation12 + $0x188] sm:$0xff]
    %v2216 = vld [vmem:[#allocation12 + $0x190] sm:$0xff]
    %v2217 = vld [vmem:[#allocation12 + $0x198] sm:$0xff]
    %v2218 = vld [vmem:[#allocation12 + $0x1a0] sm:$0xff]
    %v2219 = vld [vmem:[#allocation12 + $0x1a8] sm:$0xff]
    %v2220 = vld [vmem:[#allocation12 + $0x1b0] sm:$0xff]
    %v2221 = vld [vmem:[#allocation12 + $0x1b8] sm:$0xff]
    %v2222 = vld [vmem:[#allocation12 + $0x1c0] sm:$0xff]
    %v2223 = vld [vmem:[#allocation12 + $0x1c8] sm:$0xff]
    %v2224 = vld [vmem:[#allocation12 + $0x1d0] sm:$0xff]
    %v2225 = vld [vmem:[#allocation12 + $0x1d8] sm:$0xff]
    %v2226 = vld [vmem:[#allocation12 + $0x1e0] sm:$0xff]
    %v2227 = vld [vmem:[#allocation12 + $0x1e8] sm:$0xff]
    %v2228 = vld [vmem:[#allocation12 + $0x1f0] sm:$0xff]
    %v2229 = vld [vmem:[#allocation12 + $0x1f8] sm:$0xff]
    %2231 = vst [vmem:[#allocation1] ss:$4 sm:$0xff] %v2165
    %v2232 = vld.sshfl [vmem:[#allocation1] sm:$0xff pattern:$0x73625140]
    %v2233 = vld.sshfl [vmem:[#allocation1 + $0x8] sm:$0xff pattern:$0x73625140]
    %v2234 = vld.sshfl [vmem:[#allocation1 + $0x10] sm:$0xff pattern:$0x73625140]
    %v2235 = vld.sshfl [vmem:[#allocation1 + $0x18] sm:$0xff pattern:$0x73625140]
    %2240 = vmatpush.msra.mxu0 %v2181
    %2241 = vmatpush.msra.mxu0 %v2180
    %2242 = vmatpush.msra.mxu0 %v2179
    %2243 = vmatpush.msra.mxu0 %v2178
    %2244 = vmatpush.msra.mxu0 %v2177
    %2245 = vmatpush.msra.mxu0 %v2176
    %2246 = vmatpush.msra.mxu0 %v2175
    %2247 = vmatpush.msra.mxu0 %v2174
    %2248 = vmatpush.msra.mxu0 %v2173
    %2249 = vmatpush.msra.mxu0 %v2172
    %2250 = vmatpush.msra.mxu0 %v2171
    %2251 = vmatpush.msra.mxu0 %v2170
    %2252 = vmatpush.msra.mxu0 %v2169
    %2253 = vmatpush.msra.mxu0 %v2168
    %2254 = vmatpush.msra.mxu0 %v2167
    %2255 = vmatpush.msra.mxu0 %v2166
    %2256 = vmatmul.f32.gmra.mxu0 %v2232
    %v2257 = vpop.f32.mrf.mxu0
    %v2258 = vadd.f32 0.0, %v2257
    %2259 = vdwg.mxu0
    %2260 = vmatpush.msra.mxu0 %v2197
    %2261 = vmatpush.msra.mxu0 %v2196
    %2262 = vmatpush.msra.mxu0 %v2195
    %2263 = vmatpush.msra.mxu0 %v2194
    %2264 = vmatpush.msra.mxu0 %v2193
    %2265 = vmatpush.msra.mxu0 %v2192
    %2266 = vmatpush.msra.mxu0 %v2191
    %2267 = vmatpush.msra.mxu0 %v2190
    %2268 = vmatpush.msra.mxu0 %v2189
    %2269 = vmatpush.msra.mxu0 %v2188
    %2270 = vmatpush.msra.mxu0 %v2187
    %2271 = vmatpush.msra.mxu0 %v2186
    %2272 = vmatpush.msra.mxu0 %v2185
    %2273 = vmatpush.msra.mxu0 %v2184
    %2274 = vmatpush.msra.mxu0 %v2183
    %2275 = vmatpush.msra.mxu0 %v2182
    %2276 = vmatmul.f32.gmra.mxu0 %v2233
    %v2277 = vpop.f32.mrf.mxu0
    %v2278 = vadd.f32 %v2258, %v2277
    %2279 = vdwg.mxu0
    %2280 = vmatpush.msra.mxu0 %v2213
    %2281 = vmatpush.msra.mxu0 %v2212
    %2282 = vmatpush.msra.mxu0 %v2211
    %2283 = vmatpush.msra.mxu0 %v2210
    %2284 = vmatpush.msra.mxu0 %v2209
    %2285 = vmatpush.msra.mxu0 %v2208
    %2286 = vmatpush.msra.mxu0 %v2207
    %2287 = vmatpush.msra.mxu0 %v2206
    %2288 = vmatpush.msra.mxu0 %v2205
    %2289 = vmatpush.msra.mxu0 %v2204
    %2290 = vmatpush.msra.mxu0 %v2203
    %2291 = vmatpush.msra.mxu0 %v2202
    %2292 = vmatpush.msra.mxu0 %v2201
    %2293 = vmatpush.msra.mxu0 %v2200
    %2294 = vmatpush.msra.mxu0 %v2199
    %2295 = vmatpush.msra.mxu0 %v2198
    %2296 = vmatmul.f32.gmra.mxu0 %v2234
    %v2297 = vpop.f32.mrf.mxu0
    %v2298 = vadd.f32 %v2278, %v2297
    %2299 = vdwg.mxu0
    %2300 = vmatpush.msra.mxu0 %v2229
    %2301 = vmatpush.msra.mxu0 %v2228
    %2302 = vmatpush.msra.mxu0 %v2227
    %2303 = vmatpush.msra.mxu0 %v2226
    %2304 = vmatpush.msra.mxu0 %v2225
    %2305 = vmatpush.msra.mxu0 %v2224
    %2306 = vmatpush.msra.mxu0 %v2223
    %2307 = vmatpush.msra.mxu0 %v2222
    %2308 = vmatpush.msra.mxu0 %v2221
    %2309 = vmatpush.msra.mxu0 %v2220
    %2310 = vmatpush.msra.mxu0 %v2219
    %2311 = vmatpush.msra.mxu0 %v2218
    %2312 = vmatpush.msra.mxu0 %v2217
    %2313 = vmatpush.msra.mxu0 %v2216
    %2314 = vmatpush.msra.mxu0 %v2215
    %2315 = vmatpush.msra.mxu0 %v2214
    %2316 = vmatmul.f32.gmra.mxu0 %v2235
    %v2317 = vpop.f32.mrf.mxu0
    %v2318 = vadd.f32 %v2298, %v2317
    %2319 = vdwg.mxu0
    %v2320 = vand.u32 2147483647, %v2318
    %v2321 = vsub.f32 0.0, %v2320
    %v2322 = vmul.f32 %v2321, 1.442695
    %v2323 = vpow.pop %v2322
    %vm2324 = vcmp.ge.f32.partialorder %v2318, 0.0
    %v2325 = vsel %vm2324, 1.0, %v2323
    %v2326 = vadd.f32 %v2323, 1.0
    %v2327 = vrcp.pop %v2326
    %v2328 = vmul.f32 %v2326, %v2327
    %v2329 = vsub.f32 1.0, %v2328
    %v2330 = vmul.f32 %v2327, %v2329
    %v2331 = vadd.f32 %v2327, %v2330
    %vm2332 = vweird.f32 %v2326
    %vm2333 = vweird.f32 %v2327
    %vm2334 = vmor %vm2332, %vm2333
    %v2335 = vsel %vm2334, %v2327, %v2331
    %v2336 = vand.u32 2147483647, %v2326
    %vm2337 = vcmp.eq.f32.partialorder %v2336, 8.507059e+37
    %v2338 = vand.u32 %v2326, 2147483648
    %v2339 = vor.u32 1.1754944e-38, %v2338
    %v2340 = vsel %vm2337, %v2339, %v2335
    %v2341 = vmul.f32 %v2325, %v2340
    %vm2342 = vcmask 1024
    %2343 = vst.msk [vmem:[%s9] sm:$0x3] %vm2342, %v2341
    // Predicated region
    $region42: #{_lambda_.1} parent=1 // pred_check
      _
    $region43: #{_lambda_.1} parent=1 // pred_check_branch
      %2345 = sbr.rel (0) target = $region45
    $region44: #{_lambda_.1} parent=1 // pred_region
      _
    $region45: #{_lambda_.1} parent=1 // pred_fallthru
      _
    // Predicated region
    $region46: #{_lambda_.1} parent=1 // pred_check
      _
    $region47: #{_lambda_.1} parent=1 // pred_check_branch
      %2347 = sbr.rel (0) target = $region49
    $region48: #{_lambda_.1} parent=1 // pred_region
      _
    $region49: #{_lambda_.1} parent=1 // pred_fallthru
      _
    %2348 = vsyncpa [#allocation13], 1

</llo_original>
